<compile_context>
chip_gen: v7x
topology: tpu7x:2x2x1
jax: 0.10.0
libtpu: 0.0.40
codegen_flags: <defaults>
</compile_context>

<pallas_src>
import jax
import jax.numpy as jnp
from jax.experimental import pallas as pl
from jax.experimental.pallas import tpu as pltpu


def _rcu_kernel(x_ref, top_ref, bot_ref, w1_ref, b1_ref, w2_ref, b2_ref,
                out_ref, pad_ref):
    # x_ref   : (1, TH, W, C)   current row-tile of the unpadded input
    # top_ref : (1, 2, W, C)    the two rows just above the tile (clamped)
    # bot_ref : (1, 2, W, C)    the two rows just below the tile (clamped)
    # w*_ref  : (3, 3, C, C)    (kh, kw, Cin, Cout)
    # b*_ref  : (1, C)
    # out_ref : (1, TH, W, C)
    # pad_ref : (TH+4, W+2, C)  VMEM scratch, reused for relu(x) and conv1 act.
    _, TH, W, C = out_ref.shape
    i = pl.program_id(1)
    n_i = pl.num_programs(1)
    sdt = pad_ref.dtype

    # ---- stage zero-padded relu(x) tile (+2-row halo) into scratch ----------
    # Only the halo is zeroed: the two pad columns and (at image boundaries)
    # the halo rows.  The interior is written exactly once.
    zcol = jnp.zeros((TH + 4, 1, C), sdt)
    pad_ref[:, 0:1, :] = zcol                       # left pad column
    pad_ref[:, W + 1:W + 2, :] = zcol               # right pad column
    pad_ref[0:2, 1:W + 1, :] = jnp.maximum(top_ref[0], 0.0).astype(sdt)
    pad_ref[2:2 + TH, 1:W + 1, :] = jnp.maximum(x_ref[0], 0.0).astype(sdt)
    pad_ref[2 + TH:4 + TH, 1:W + 1, :] = jnp.maximum(bot_ref[0], 0.0).astype(sdt)

    @pl.when(i == 0)                                # image top: halo rows = pad
    def _():
        pad_ref[0:2, 1:W + 1, :] = jnp.zeros((2, W, C), sdt)

    @pl.when(i == n_i - 1)                          # image bottom
    def _():
        pad_ref[2 + TH:4 + TH, 1:W + 1, :] = jnp.zeros((2, W, C), sdt)

    # ---- conv1 over TH+2 rows (tile rows -1 .. TH), f32 MXU accumulation ----
    a = pad_ref[...]                                # (TH+4, W+2, C)
    R1 = TH + 2
    acc1 = jnp.zeros((R1 * W, C), jnp.float32)
    for dy in range(3):
        for dx in range(3):
            patch = a[dy:dy + R1, dx:dx + W, :].reshape(R1 * W, C)
            acc1 = acc1 + jnp.dot(patch, w1_ref[dy, dx],
                                  preferred_element_type=jnp.float32)
    acc1 = acc1 + b1_ref[0]
    mid = jnp.maximum(acc1, 0.0).reshape(R1, W, C).astype(sdt)

    # Overwrite scratch rows 1..TH+2 with the conv1 activation (pad columns
    # stay zero).  At the image boundary the extra mid row is conv2 *padding*
    # (zero), not conv1-of-padding, so zero exactly that one row.
    pad_ref[1:3 + TH, 1:W + 1, :] = mid

    @pl.when(i == 0)
    def _():
        pad_ref[1:2, 1:W + 1, :] = jnp.zeros((1, W, C), sdt)

    @pl.when(i == n_i - 1)
    def _():
        pad_ref[2 + TH:3 + TH, 1:W + 1, :] = jnp.zeros((1, W, C), sdt)

    # ---- conv2 over the TH output rows + residual add -----------------------
    m = pad_ref[...]
    acc2 = jnp.zeros((TH * W, C), jnp.float32)
    for dy in range(3):
        for dx in range(3):
            patch = m[1 + dy:1 + dy + TH, dx:dx + W, :].reshape(TH * W, C)
            acc2 = acc2 + jnp.dot(patch, w2_ref[dy, dx],
                                  preferred_element_type=jnp.float32)
    acc2 = acc2 + b2_ref[0]

    res = x_ref[0].reshape(TH * W, C).astype(jnp.float32)   # un-ReLU'd input
    out_ref[0] = (acc2 + res).reshape(TH, W, C).astype(out_ref.dtype)


def _pick_tile_h(H, W, C, itemsize, budget_bytes=24 << 20):
    """Largest even row-tile that divides H, keeps the per-step VMEM footprint
    (double-buffered in/out tiles + halos + scratch) under `budget_bytes`, and
    leaves >= 2 row tiles per image when possible (pipeline depth / megacore
    splitting).  The 24 MiB budget leaves headroom on v7x's 64 MiB VMEM."""
    per_row = 5 * (W + 2) * C * itemsize            # rough: 2x in + 2x out + scratch
    max_rows = max(2, int(budget_bytes // max(per_row, 1)))
    divs = [t for t in range(2, H + 1, 2) if H % t == 0]
    if not divs:
        return H
    fitting = [t for t in divs if t <= max_rows] or [min(divs)]
    preferred = [t for t in fitting if t <= max(2, H // 2)]
    return max(preferred) if preferred else max(fitting)


def residual_conv_unit(x_nchw, w1, b1, w2, b2, *, tile_h=None):
    """x_nchw: (B, C, H, W); w*: (Cout, Cin, 3, 3) PyTorch layout; b*: (C,)."""
    B, C, H, W = x_nchw.shape
    assert H % 2 == 0, "kernel assumes an even spatial height (true for DPT)"
    x = jnp.transpose(x_nchw, (0, 2, 3, 1))                  # -> NHWC (lane = C)
    w1k = jnp.transpose(w1, (2, 3, 1, 0))                    # -> (kh, kw, Cin, Cout)
    w2k = jnp.transpose(w2, (2, 3, 1, 0))
    b1k = b1.reshape(1, C)
    b2k = b2.reshape(1, C)

    itemsize = jnp.dtype(x.dtype).itemsize
    th = tile_h if tile_h is not None else _pick_tile_h(H, W, C, itemsize)
    assert th % 2 == 0 and H % th == 0
    nrt = H // th
    hb = th // 2     # halo blocks are 2 rows tall -> block-index granularity

    tile_spec = pl.BlockSpec((1, th, W, C), lambda b, i: (b, i, 0, 0))
    # Two extra views of the same (unpadded) input supply the 2-row halos; the
    # index_map clamps at the image boundary and the kernel masks those rows.
    top_spec = pl.BlockSpec(
        (1, 2, W, C), lambda b, i: (b, jnp.maximum(i * hb - 1, 0), 0, 0))
    bot_spec = pl.BlockSpec(
        (1, 2, W, C), lambda b, i: (b, jnp.minimum((i + 1) * hb, H // 2 - 1), 0, 0))

    out = pl.pallas_call(
        _rcu_kernel,
        out_shape=jax.ShapeDtypeStruct((B, H, W, C), x.dtype),
        grid_spec=pltpu.PrefetchScalarGridSpec(
            num_scalar_prefetch=0,
            grid=(B, nrt),
            in_specs=[
                tile_spec, top_spec, bot_spec,
                pl.BlockSpec((3, 3, C, C), lambda b, i: (0, 0, 0, 0)),
                pl.BlockSpec((1, C), lambda b, i: (0, 0)),
                pl.BlockSpec((3, 3, C, C), lambda b, i: (0, 0, 0, 0)),
                pl.BlockSpec((1, C), lambda b, i: (0, 0)),
            ],
            out_specs=pl.BlockSpec((1, th, W, C), lambda b, i: (b, i, 0, 0)),
            scratch_shapes=[pltpu.VMEM((th + 4, W + 2, C), x.dtype)],
        ),
        compiler_params=pltpu.CompilerParams(
            dimension_semantics=("parallel", "parallel"),
            vmem_limit_bytes=64 * 1024 * 1024,
        ),
    )(x, x, x, w1k, b1k, w2k, b2k)

    return jnp.transpose(out, (0, 3, 1, 2))                  # back to NCHW


def _reference(x, w1, b1, w2, b2):
    """Plain-JAX reference matching the PyTorch module (NCHW)."""
    def conv(y, w, b):
        o = jax.lax.conv_general_dilated(
            y, w, window_strides=(1, 1), padding=((1, 1), (1, 1)),
            dimension_numbers=("NCHW", "OIHW", "NCHW"))
        return o + b.reshape(1, -1, 1, 1)
    out = jnp.maximum(x, 0.0)
    out = conv(out, w1, b1)
    out = jnp.maximum(out, 0.0)
    out = conv(out, w2, b2)
    return out + x


if __name__ == "__main__":
    B, C, H, W = 2, 4, 16, 16
    key = jax.random.PRNGKey(0)
    kx, kw1, kb1, kw2, kb2 = jax.random.split(key, 5)

    x = jax.random.normal(kx, (B, C, H, W), dtype=jnp.float32)
    # Deterministic synthetic parameters (nn.Conv2d shapes: (Cout, Cin, 3, 3))
    w1 = 0.1 * jax.random.normal(kw1, (C, C, 3, 3), dtype=jnp.float32)
    b1 = 0.1 * jax.random.normal(kb1, (C,), dtype=jnp.float32)
    w2 = 0.1 * jax.random.normal(kw2, (C, C, 3, 3), dtype=jnp.float32)
    b2 = 0.1 * jax.random.normal(kb2, (C,), dtype=jnp.float32)

    out = residual_conv_unit(x, w1, b1, w2, b2)   # H=16 -> tile_h=8, 2 row tiles
    out = jax.block_until_ready(out)

    ref = _reference(x, w1, b1, w2, b2)
    assert out.shape == (B, C, H, W)
    assert jnp.allclose(out, ref, atol=1e-4, rtol=1e-4)

    print("KERNEL_OK")
</pallas_src>

<mosaic_0001>
module attributes {stable_mosaic.version = 11 : i64} {
  func.func @_rcu_kernel(%arg0: i32, %arg1: i32, %arg2: memref<1x8x16x4xf32, #tpu.memory_space<vmem>>, %arg3: memref<1x2x16x4xf32, #tpu.memory_space<vmem>>, %arg4: memref<1x2x16x4xf32, #tpu.memory_space<vmem>>, %arg5: memref<3x3x4x4xf32, #tpu.memory_space<vmem>>, %arg6: memref<1x4xf32, #tpu.memory_space<vmem>>, %arg7: memref<3x3x4x4xf32, #tpu.memory_space<vmem>>, %arg8: memref<1x4xf32, #tpu.memory_space<vmem>>, %arg9: memref<1x8x16x4xf32, #tpu.memory_space<vmem>>, %arg10: memref<12x18x4xf32, #tpu.memory_space<vmem>>) attributes {dimension_semantics = [#tpu.dimension_semantics<parallel>, #tpu.dimension_semantics<parallel>], iteration_bounds = array<i64: 2, 2>, scalar_prefetch = 0 : i64, scratch_operands = 1 : i64, tpu.core_type = #tpu.core_type<tc>, window_params = [{transform_indices = @transform_0, window_bounds = array<i64: 1, 8, 16, 4>}, {transform_indices = @transform_1, window_bounds = array<i64: 1, 2, 16, 4>}, {transform_indices = @transform_2, window_bounds = array<i64: 1, 2, 16, 4>}, {pipeline_mode = #tpu.pipeline_mode<synchronous>, transform_indices = @transform_3, window_bounds = array<i64: 3, 3, 4, 4>}, {pipeline_mode = #tpu.pipeline_mode<synchronous>, transform_indices = @transform_4, window_bounds = array<i64: 1, 4>}, {pipeline_mode = #tpu.pipeline_mode<synchronous>, transform_indices = @transform_5, window_bounds = array<i64: 3, 3, 4, 4>}, {pipeline_mode = #tpu.pipeline_mode<synchronous>, transform_indices = @transform_6, window_bounds = array<i64: 1, 4>}, {transform_indices = @transform_7, window_bounds = array<i64: 1, 8, 16, 4>}]} {
    %cst = arith.constant 0.000000e+00 : f32
    %0 = vector.broadcast %cst : f32 to vector<12x1x4xf32>
    %c0 = arith.constant 0 : index
    %c0_0 = arith.constant 0 : index
    %c0_1 = arith.constant 0 : index
    %1 = vector.load %arg10[%c0, %c0_0, %c0_1] : memref<12x18x4xf32, #tpu.memory_space<vmem>>, vector<12x1x4xf32>
    tpu.vector_store %arg10[%c0, %c0_0, %c0_1], %0 {strides = array<i32>} : memref<12x18x4xf32, #tpu.memory_space<vmem>>, vector<12x1x4xf32>,
    %c0_2 = arith.constant 0 : index
    %c17 = arith.constant 17 : index
    %c0_3 = arith.constant 0 : index
    %2 = vector.load %arg10[%c0_2, %c17, %c0_3] : memref<12x18x4xf32, #tpu.memory_space<vmem>>, vector<12x1x4xf32>
    tpu.vector_store %arg10[%c0_2, %c17, %c0_3], %0 {strides = array<i32>} : memref<12x18x4xf32, #tpu.memory_space<vmem>>, vector<12x1x4xf32>,
    %c0_4 = arith.constant 0 : index
    %c0_5 = arith.constant 0 : index
    %c0_6 = arith.constant 0 : index
    %c0_7 = arith.constant 0 : index
    %3 = vector.load %arg3[%c0_4, %c0_5, %c0_6, %c0_7] : memref<1x2x16x4xf32, #tpu.memory_space<vmem>>, vector<1x2x16x4xf32>
    %4 = vector.shape_cast %3 : vector<1x2x16x4xf32> to vector<2x16x4xf32>
    %cst_8 = arith.constant 0.000000e+00 : f32
    %5 = vector.broadcast %cst_8 : f32 to vector<2x16x4xf32>
    %6 = arith.maximumf %4, %5 : vector<2x16x4xf32>
    %c0_9 = arith.constant 0 : index
    %c1 = arith.constant 1 : index
    %c0_10 = arith.constant 0 : index
    %7 = vector.load %arg10[%c0_9, %c1, %c0_10] : memref<12x18x4xf32, #tpu.memory_space<vmem>>, vector<2x16x4xf32>
    tpu.vector_store %arg10[%c0_9, %c1, %c0_10], %6 {strides = array<i32>} : memref<12x18x4xf32, #tpu.memory_space<vmem>>, vector<2x16x4xf32>,
    %c0_11 = arith.constant 0 : index
    %c0_12 = arith.constant 0 : index
    %c0_13 = arith.constant 0 : index
    %c0_14 = arith.constant 0 : index
    %8 = vector.load %arg2[%c0_11, %c0_12, %c0_13, %c0_14] : memref<1x8x16x4xf32, #tpu.memory_space<vmem>>, vector<1x8x16x4xf32>
    %9 = vector.shape_cast %8 : vector<1x8x16x4xf32> to vector<8x16x4xf32>
    %cst_15 = arith.constant 0.000000e+00 : f32
    %10 = vector.broadcast %cst_15 : f32 to vector<8x16x4xf32>
    %11 = arith.maximumf %9, %10 : vector<8x16x4xf32>
    %c2 = arith.constant 2 : index
    %c1_16 = arith.constant 1 : index
    %c0_17 = arith.constant 0 : index
    %12 = vector.load %arg10[%c2, %c1_16, %c0_17] : memref<12x18x4xf32, #tpu.memory_space<vmem>>, vector<8x16x4xf32>
    tpu.vector_store %arg10[%c2, %c1_16, %c0_17], %11 {strides = array<i32>} : memref<12x18x4xf32, #tpu.memory_space<vmem>>, vector<8x16x4xf32>,
    %c0_18 = arith.constant 0 : index
    %c0_19 = arith.constant 0 : index
    %c0_20 = arith.constant 0 : index
    %c0_21 = arith.constant 0 : index
    %13 = vector.load %arg4[%c0_18, %c0_19, %c0_20, %c0_21] : memref<1x2x16x4xf32, #tpu.memory_space<vmem>>, vector<1x2x16x4xf32>
    %14 = vector.shape_cast %13 : vector<1x2x16x4xf32> to vector<2x16x4xf32>
    %cst_22 = arith.constant 0.000000e+00 : f32
    %15 = vector.broadcast %cst_22 : f32 to vector<2x16x4xf32>
    %16 = arith.maximumf %14, %15 : vector<2x16x4xf32>
    %c10 = arith.constant 10 : index
    %c1_23 = arith.constant 1 : index
    %c0_24 = arith.constant 0 : index
    %17 = vector.load %arg10[%c10, %c1_23, %c0_24] : memref<12x18x4xf32, #tpu.memory_space<vmem>>, vector<2x16x4xf32>
    tpu.vector_store %arg10[%c10, %c1_23, %c0_24], %16 {strides = array<i32>} : memref<12x18x4xf32, #tpu.memory_space<vmem>>, vector<2x16x4xf32>,
    %c0_i32 = arith.constant 0 : i32
    %18 = arith.cmpi eq, %arg1, %c0_i32 : i32
    %19 = arith.extui %18 : i1 to i32
    %c0_i32_25 = arith.constant 0 : i32
    %20 = arith.cmpi ne, %19, %c0_i32_25 : i32
    scf.if %20 {
      %cst_145 = arith.constant 0.000000e+00 : f32
      %164 = vector.broadcast %cst_145 : f32 to vector<2x16x4xf32>
      %c0_146 = arith.constant 0 : index
      %c1_147 = arith.constant 1 : index
      %c0_148 = arith.constant 0 : index
      %165 = vector.load %arg10[%c0_146, %c1_147, %c0_148] : memref<12x18x4xf32, #tpu.memory_space<vmem>>, vector<2x16x4xf32>
      tpu.vector_store %arg10[%c0_146, %c1_147, %c0_148], %164 {strides = array<i32>} : memref<12x18x4xf32, #tpu.memory_space<vmem>>, vector<2x16x4xf32>,
    } else {
    }
    %c1_i32 = arith.constant 1 : i32
    %21 = arith.cmpi eq, %arg1, %c1_i32 : i32
    %22 = arith.extui %21 : i1 to i32
    %c0_i32_26 = arith.constant 0 : i32
    %23 = arith.cmpi ne, %22, %c0_i32_26 : i32
    scf.if %23 {
      %cst_145 = arith.constant 0.000000e+00 : f32
      %164 = vector.broadcast %cst_145 : f32 to vector<2x16x4xf32>
      %c10_146 = arith.constant 10 : index
      %c1_147 = arith.constant 1 : index
      %c0_148 = arith.constant 0 : index
      %165 = vector.load %arg10[%c10_146, %c1_147, %c0_148] : memref<12x18x4xf32, #tpu.memory_space<vmem>>, vector<2x16x4xf32>
      tpu.vector_store %arg10[%c10_146, %c1_147, %c0_148], %164 {strides = array<i32>} : memref<12x18x4xf32, #tpu.memory_space<vmem>>, vector<2x16x4xf32>,
    } else {
    }
    %c0_27 = arith.constant 0 : index
    %c0_28 = arith.constant 0 : index
    %c0_29 = arith.constant 0 : index
    %24 = vector.load %arg10[%c0_27, %c0_28, %c0_29] : memref<12x18x4xf32, #tpu.memory_space<vmem>>, vector<12x18x4xf32>
    %cst_30 = arith.constant 0.000000e+00 : f32
    %25 = vector.broadcast %cst_30 : f32 to vector<160x4xf32>
    %26 = vector.extract_strided_slice %24 {offsets = [0, 0, 0], sizes = [10, 16, 4], strides = [1, 1, 1]} : vector<12x18x4xf32> to vector<10x16x4xf32>
    %27 = vector.shape_cast %26 : vector<10x16x4xf32> to vector<160x4xf32>
    %c0_31 = arith.constant 0 : index
    %c0_32 = arith.constant 0 : index
    %c0_33 = arith.constant 0 : index
    %c0_34 = arith.constant 0 : index
    %28 = vector.load %arg5[%c0_31, %c0_32, %c0_33, %c0_34] : memref<3x3x4x4xf32, #tpu.memory_space<vmem>>, vector<1x1x4x4xf32>
    %29 = vector.shape_cast %28 : vector<1x1x4x4xf32> to vector<4x4xf32>
    %cst_35 = arith.constant dense<0.000000e+00> : vector<160x4xf32>
    %30 = tpu.matmul %27, %29, %cst_35 {dimension_numbers = #tpu.dot_dimension_numbers<[1], [0], [0], [1], [0, 0, 1, 1], [], []>} : vector<160x4xf32>, vector<4x4xf32>, vector<160x4xf32> -> vector<160x4xf32>
    %31 = arith.addf %25, %30 : vector<160x4xf32>
    %32 = vector.extract_strided_slice %24 {offsets = [0, 1, 0], sizes = [10, 16, 4], strides = [1, 1, 1]} : vector<12x18x4xf32> to vector<10x16x4xf32>
    %33 = vector.shape_cast %32 : vector<10x16x4xf32> to vector<160x4xf32>
    %c0_36 = arith.constant 0 : index
    %c1_37 = arith.constant 1 : index
    %c0_38 = arith.constant 0 : index
    %c0_39 = arith.constant 0 : index
    %34 = vector.load %arg5[%c0_36, %c1_37, %c0_38, %c0_39] : memref<3x3x4x4xf32, #tpu.memory_space<vmem>>, vector<1x1x4x4xf32>
    %35 = vector.shape_cast %34 : vector<1x1x4x4xf32> to vector<4x4xf32>
    %cst_40 = arith.constant dense<0.000000e+00> : vector<160x4xf32>
    %36 = tpu.matmul %33, %35, %cst_40 {dimension_numbers = #tpu.dot_dimension_numbers<[1], [0], [0], [1], [0, 0, 1, 1], [], []>} : vector<160x4xf32>, vector<4x4xf32>, vector<160x4xf32> -> vector<160x4xf32>
    %37 = arith.addf %31, %36 : vector<160x4xf32>
    %38 = vector.extract_strided_slice %24 {offsets = [0, 2, 0], sizes = [10, 16, 4], strides = [1, 1, 1]} : vector<12x18x4xf32> to vector<10x16x4xf32>
    %39 = vector.shape_cast %38 : vector<10x16x4xf32> to vector<160x4xf32>
    %c0_41 = arith.constant 0 : index
    %c2_42 = arith.constant 2 : index
    %c0_43 = arith.constant 0 : index
    %c0_44 = arith.constant 0 : index
    %40 = vector.load %arg5[%c0_41, %c2_42, %c0_43, %c0_44] : memref<3x3x4x4xf32, #tpu.memory_space<vmem>>, vector<1x1x4x4xf32>
    %41 = vector.shape_cast %40 : vector<1x1x4x4xf32> to vector<4x4xf32>
    %cst_45 = arith.constant dense<0.000000e+00> : vector<160x4xf32>
    %42 = tpu.matmul %39, %41, %cst_45 {dimension_numbers = #tpu.dot_dimension_numbers<[1], [0], [0], [1], [0, 0, 1, 1], [], []>} : vector<160x4xf32>, vector<4x4xf32>, vector<160x4xf32> -> vector<160x4xf32>
    %43 = arith.addf %37, %42 : vector<160x4xf32>
    %44 = vector.extract_strided_slice %24 {offsets = [1, 0, 0], sizes = [10, 16, 4], strides = [1, 1, 1]} : vector<12x18x4xf32> to vector<10x16x4xf32>
    %45 = vector.shape_cast %44 : vector<10x16x4xf32> to vector<160x4xf32>
    %c1_46 = arith.constant 1 : index
    %c0_47 = arith.constant 0 : index
    %c0_48 = arith.constant 0 : index
    %c0_49 = arith.constant 0 : index
    %46 = vector.load %arg5[%c1_46, %c0_47, %c0_48, %c0_49] : memref<3x3x4x4xf32, #tpu.memory_space<vmem>>, vector<1x1x4x4xf32>
    %47 = vector.shape_cast %46 : vector<1x1x4x4xf32> to vector<4x4xf32>
    %cst_50 = arith.constant dense<0.000000e+00> : vector<160x4xf32>
    %48 = tpu.matmul %45, %47, %cst_50 {dimension_numbers = #tpu.dot_dimension_numbers<[1], [0], [0], [1], [0, 0, 1, 1], [], []>} : vector<160x4xf32>, vector<4x4xf32>, vector<160x4xf32> -> vector<160x4xf32>
    %49 = arith.addf %43, %48 : vector<160x4xf32>
    %50 = vector.extract_strided_slice %24 {offsets = [1, 1, 0], sizes = [10, 16, 4], strides = [1, 1, 1]} : vector<12x18x4xf32> to vector<10x16x4xf32>
    %51 = vector.shape_cast %50 : vector<10x16x4xf32> to vector<160x4xf32>
    %c1_51 = arith.constant 1 : index
    %c1_52 = arith.constant 1 : index
    %c0_53 = arith.constant 0 : index
    %c0_54 = arith.constant 0 : index
    %52 = vector.load %arg5[%c1_51, %c1_52, %c0_53, %c0_54] : memref<3x3x4x4xf32, #tpu.memory_space<vmem>>, vector<1x1x4x4xf32>
    %53 = vector.shape_cast %52 : vector<1x1x4x4xf32> to vector<4x4xf32>
    %cst_55 = arith.constant dense<0.000000e+00> : vector<160x4xf32>
    %54 = tpu.matmul %51, %53, %cst_55 {dimension_numbers = #tpu.dot_dimension_numbers<[1], [0], [0], [1], [0, 0, 1, 1], [], []>} : vector<160x4xf32>, vector<4x4xf32>, vector<160x4xf32> -> vector<160x4xf32>
    %55 = arith.addf %49, %54 : vector<160x4xf32>
    %56 = vector.extract_strided_slice %24 {offsets = [1, 2, 0], sizes = [10, 16, 4], strides = [1, 1, 1]} : vector<12x18x4xf32> to vector<10x16x4xf32>
    %57 = vector.shape_cast %56 : vector<10x16x4xf32> to vector<160x4xf32>
    %c1_56 = arith.constant 1 : index
    %c2_57 = arith.constant 2 : index
    %c0_58 = arith.constant 0 : index
    %c0_59 = arith.constant 0 : index
    %58 = vector.load %arg5[%c1_56, %c2_57, %c0_58, %c0_59] : memref<3x3x4x4xf32, #tpu.memory_space<vmem>>, vector<1x1x4x4xf32>
    %59 = vector.shape_cast %58 : vector<1x1x4x4xf32> to vector<4x4xf32>
    %cst_60 = arith.constant dense<0.000000e+00> : vector<160x4xf32>
    %60 = tpu.matmul %57, %59, %cst_60 {dimension_numbers = #tpu.dot_dimension_numbers<[1], [0], [0], [1], [0, 0, 1, 1], [], []>} : vector<160x4xf32>, vector<4x4xf32>, vector<160x4xf32> -> vector<160x4xf32>
    %61 = arith.addf %55, %60 : vector<160x4xf32>
    %62 = vector.extract_strided_slice %24 {offsets = [2, 0, 0], sizes = [10, 16, 4], strides = [1, 1, 1]} : vector<12x18x4xf32> to vector<10x16x4xf32>
    %63 = vector.shape_cast %62 : vector<10x16x4xf32> to vector<160x4xf32>
    %c2_61 = arith.constant 2 : index
    %c0_62 = arith.constant 0 : index
    %c0_63 = arith.constant 0 : index
    %c0_64 = arith.constant 0 : index
    %64 = vector.load %arg5[%c2_61, %c0_62, %c0_63, %c0_64] : memref<3x3x4x4xf32, #tpu.memory_space<vmem>>, vector<1x1x4x4xf32>
    %65 = vector.shape_cast %64 : vector<1x1x4x4xf32> to vector<4x4xf32>
    %cst_65 = arith.constant dense<0.000000e+00> : vector<160x4xf32>
    %66 = tpu.matmul %63, %65, %cst_65 {dimension_numbers = #tpu.dot_dimension_numbers<[1], [0], [0], [1], [0, 0, 1, 1], [], []>} : vector<160x4xf32>, vector<4x4xf32>, vector<160x4xf32> -> vector<160x4xf32>
    %67 = arith.addf %61, %66 : vector<160x4xf32>
    %68 = vector.extract_strided_slice %24 {offsets = [2, 1, 0], sizes = [10, 16, 4], strides = [1, 1, 1]} : vector<12x18x4xf32> to vector<10x16x4xf32>
    %69 = vector.shape_cast %68 : vector<10x16x4xf32> to vector<160x4xf32>
    %c2_66 = arith.constant 2 : index
    %c1_67 = arith.constant 1 : index
    %c0_68 = arith.constant 0 : index
    %c0_69 = arith.constant 0 : index
    %70 = vector.load %arg5[%c2_66, %c1_67, %c0_68, %c0_69] : memref<3x3x4x4xf32, #tpu.memory_space<vmem>>, vector<1x1x4x4xf32>
    %71 = vector.shape_cast %70 : vector<1x1x4x4xf32> to vector<4x4xf32>
    %cst_70 = arith.constant dense<0.000000e+00> : vector<160x4xf32>
    %72 = tpu.matmul %69, %71, %cst_70 {dimension_numbers = #tpu.dot_dimension_numbers<[1], [0], [0], [1], [0, 0, 1, 1], [], []>} : vector<160x4xf32>, vector<4x4xf32>, vector<160x4xf32> -> vector<160x4xf32>
    %73 = arith.addf %67, %72 : vector<160x4xf32>
    %74 = vector.extract_strided_slice %24 {offsets = [2, 2, 0], sizes = [10, 16, 4], strides = [1, 1, 1]} : vector<12x18x4xf32> to vector<10x16x4xf32>
    %75 = vector.shape_cast %74 : vector<10x16x4xf32> to vector<160x4xf32>
    %c2_71 = arith.constant 2 : index
    %c2_72 = arith.constant 2 : index
    %c0_73 = arith.constant 0 : index
    %c0_74 = arith.constant 0 : index
    %76 = vector.load %arg5[%c2_71, %c2_72, %c0_73, %c0_74] : memref<3x3x4x4xf32, #tpu.memory_space<vmem>>, vector<1x1x4x4xf32>
    %77 = vector.shape_cast %76 : vector<1x1x4x4xf32> to vector<4x4xf32>
    %cst_75 = arith.constant dense<0.000000e+00> : vector<160x4xf32>
    %78 = tpu.matmul %75, %77, %cst_75 {dimension_numbers = #tpu.dot_dimension_numbers<[1], [0], [0], [1], [0, 0, 1, 1], [], []>} : vector<160x4xf32>, vector<4x4xf32>, vector<160x4xf32> -> vector<160x4xf32>
    %79 = arith.addf %73, %78 : vector<160x4xf32>
    %c0_76 = arith.constant 0 : index
    %c0_77 = arith.constant 0 : index
    %80 = vector.load %arg6[%c0_76, %c0_77] : memref<1x4xf32, #tpu.memory_space<vmem>>, vector<1x4xf32>
    %81 = vector.shape_cast %80 : vector<1x4xf32> to vector<4xf32>
    %82 = vector.shape_cast %81 : vector<4xf32> to vector<1x4xf32>
    %83 = vector.broadcast %82 : vector<1x4xf32> to vector<160x4xf32>
    %84 = arith.addf %79, %83 : vector<160x4xf32>
    %cst_78 = arith.constant 0.000000e+00 : f32
    %85 = vector.broadcast %cst_78 : f32 to vector<160x4xf32>
    %86 = arith.maximumf %84, %85 : vector<160x4xf32>
    %87 = vector.shape_cast %86 : vector<160x4xf32> to vector<10x16x4xf32>
    %c1_79 = arith.constant 1 : index
    %c1_80 = arith.constant 1 : index
    %c0_81 = arith.constant 0 : index
    %88 = vector.load %arg10[%c1_79, %c1_80, %c0_81] : memref<12x18x4xf32, #tpu.memory_space<vmem>>, vector<10x16x4xf32>
    tpu.vector_store %arg10[%c1_79, %c1_80, %c0_81], %87 {strides = array<i32>} : memref<12x18x4xf32, #tpu.memory_space<vmem>>, vector<10x16x4xf32>,
    %c0_i32_82 = arith.constant 0 : i32
    %89 = arith.cmpi eq, %arg1, %c0_i32_82 : i32
    %90 = arith.extui %89 : i1 to i32
    %c0_i32_83 = arith.constant 0 : i32
    %91 = arith.cmpi ne, %90, %c0_i32_83 : i32
    scf.if %91 {
      %cst_145 = arith.constant 0.000000e+00 : f32
      %164 = vector.broadcast %cst_145 : f32 to vector<1x16x4xf32>
      %c1_146 = arith.constant 1 : index
      %c1_147 = arith.constant 1 : index
      %c0_148 = arith.constant 0 : index
      %165 = vector.load %arg10[%c1_146, %c1_147, %c0_148] : memref<12x18x4xf32, #tpu.memory_space<vmem>>, vector<1x16x4xf32>
      tpu.vector_store %arg10[%c1_146, %c1_147, %c0_148], %164 {strides = array<i32>} : memref<12x18x4xf32, #tpu.memory_space<vmem>>, vector<1x16x4xf32>,
    } else {
    }
    %c1_i32_84 = arith.constant 1 : i32
    %92 = arith.cmpi eq, %arg1, %c1_i32_84 : i32
    %93 = arith.extui %92 : i1 to i32
    %c0_i32_85 = arith.constant 0 : i32
    %94 = arith.cmpi ne, %93, %c0_i32_85 : i32
    scf.if %94 {
      %cst_145 = arith.constant 0.000000e+00 : f32
      %164 = vector.broadcast %cst_145 : f32 to vector<1x16x4xf32>
      %c10_146 = arith.constant 10 : index
      %c1_147 = arith.constant 1 : index
      %c0_148 = arith.constant 0 : index
      %165 = vector.load %arg10[%c10_146, %c1_147, %c0_148] : memref<12x18x4xf32, #tpu.memory_space<vmem>>, vector<1x16x4xf32>
      tpu.vector_store %arg10[%c10_146, %c1_147, %c0_148], %164 {strides = array<i32>} : memref<12x18x4xf32, #tpu.memory_space<vmem>>, vector<1x16x4xf32>,
    } else {
    }
    %c0_86 = arith.constant 0 : index
    %c0_87 = arith.constant 0 : index
    %c0_88 = arith.constant 0 : index
    %95 = vector.load %arg10[%c0_86, %c0_87, %c0_88] : memref<12x18x4xf32, #tpu.memory_space<vmem>>, vector<12x18x4xf32>
    %cst_89 = arith.constant 0.000000e+00 : f32
    %96 = vector.broadcast %cst_89 : f32 to vector<128x4xf32>
    %97 = vector.extract_strided_slice %95 {offsets = [1, 0, 0], sizes = [8, 16, 4], strides = [1, 1, 1]} : vector<12x18x4xf32> to vector<8x16x4xf32>
    %98 = vector.shape_cast %97 : vector<8x16x4xf32> to vector<128x4xf32>
    %c0_90 = arith.constant 0 : index
    %c0_91 = arith.constant 0 : index
    %c0_92 = arith.constant 0 : index
    %c0_93 = arith.constant 0 : index
    %99 = vector.load %arg7[%c0_90, %c0_91, %c0_92, %c0_93] : memref<3x3x4x4xf32, #tpu.memory_space<vmem>>, vector<1x1x4x4xf32>
    %100 = vector.shape_cast %99 : vector<1x1x4x4xf32> to vector<4x4xf32>
    %cst_94 = arith.constant dense<0.000000e+00> : vector<128x4xf32>
    %101 = tpu.matmul %98, %100, %cst_94 {dimension_numbers = #tpu.dot_dimension_numbers<[1], [0], [0], [1], [0, 0, 1, 1], [], []>} : vector<128x4xf32>, vector<4x4xf32>, vector<128x4xf32> -> vector<128x4xf32>
    %102 = arith.addf %96, %101 : vector<128x4xf32>
    %103 = vector.extract_strided_slice %95 {offsets = [1, 1, 0], sizes = [8, 16, 4], strides = [1, 1, 1]} : vector<12x18x4xf32> to vector<8x16x4xf32>
    %104 = vector.shape_cast %103 : vector<8x16x4xf32> to vector<128x4xf32>
    %c0_95 = arith.constant 0 : index
    %c1_96 = arith.constant 1 : index
    %c0_97 = arith.constant 0 : index
    %c0_98 = arith.constant 0 : index
    %105 = vector.load %arg7[%c0_95, %c1_96, %c0_97, %c0_98] : memref<3x3x4x4xf32, #tpu.memory_space<vmem>>, vector<1x1x4x4xf32>
    %106 = vector.shape_cast %105 : vector<1x1x4x4xf32> to vector<4x4xf32>
    %cst_99 = arith.constant dense<0.000000e+00> : vector<128x4xf32>
    %107 = tpu.matmul %104, %106, %cst_99 {dimension_numbers = #tpu.dot_dimension_numbers<[1], [0], [0], [1], [0, 0, 1, 1], [], []>} : vector<128x4xf32>, vector<4x4xf32>, vector<128x4xf32> -> vector<128x4xf32>
    %108 = arith.addf %102, %107 : vector<128x4xf32>
    %109 = vector.extract_strided_slice %95 {offsets = [1, 2, 0], sizes = [8, 16, 4], strides = [1, 1, 1]} : vector<12x18x4xf32> to vector<8x16x4xf32>
    %110 = vector.shape_cast %109 : vector<8x16x4xf32> to vector<128x4xf32>
    %c0_100 = arith.constant 0 : index
    %c2_101 = arith.constant 2 : index
    %c0_102 = arith.constant 0 : index
    %c0_103 = arith.constant 0 : index
    %111 = vector.load %arg7[%c0_100, %c2_101, %c0_102, %c0_103] : memref<3x3x4x4xf32, #tpu.memory_space<vmem>>, vector<1x1x4x4xf32>
    %112 = vector.shape_cast %111 : vector<1x1x4x4xf32> to vector<4x4xf32>
    %cst_104 = arith.constant dense<0.000000e+00> : vector<128x4xf32>
    %113 = tpu.matmul %110, %112, %cst_104 {dimension_numbers = #tpu.dot_dimension_numbers<[1], [0], [0], [1], [0, 0, 1, 1], [], []>} : vector<128x4xf32>, vector<4x4xf32>, vector<128x4xf32> -> vector<128x4xf32>
    %114 = arith.addf %108, %113 : vector<128x4xf32>
    %115 = vector.extract_strided_slice %95 {offsets = [2, 0, 0], sizes = [8, 16, 4], strides = [1, 1, 1]} : vector<12x18x4xf32> to vector<8x16x4xf32>
    %116 = vector.shape_cast %115 : vector<8x16x4xf32> to vector<128x4xf32>
    %c1_105 = arith.constant 1 : index
    %c0_106 = arith.constant 0 : index
    %c0_107 = arith.constant 0 : index
    %c0_108 = arith.constant 0 : index
    %117 = vector.load %arg7[%c1_105, %c0_106, %c0_107, %c0_108] : memref<3x3x4x4xf32, #tpu.memory_space<vmem>>, vector<1x1x4x4xf32>
    %118 = vector.shape_cast %117 : vector<1x1x4x4xf32> to vector<4x4xf32>
    %cst_109 = arith.constant dense<0.000000e+00> : vector<128x4xf32>
    %119 = tpu.matmul %116, %118, %cst_109 {dimension_numbers = #tpu.dot_dimension_numbers<[1], [0], [0], [1], [0, 0, 1, 1], [], []>} : vector<128x4xf32>, vector<4x4xf32>, vector<128x4xf32> -> vector<128x4xf32>
    %120 = arith.addf %114, %119 : vector<128x4xf32>
    %121 = vector.extract_strided_slice %95 {offsets = [2, 1, 0], sizes = [8, 16, 4], strides = [1, 1, 1]} : vector<12x18x4xf32> to vector<8x16x4xf32>
    %122 = vector.shape_cast %121 : vector<8x16x4xf32> to vector<128x4xf32>
    %c1_110 = arith.constant 1 : index
    %c1_111 = arith.constant 1 : index
    %c0_112 = arith.constant 0 : index
    %c0_113 = arith.constant 0 : index
    %123 = vector.load %arg7[%c1_110, %c1_111, %c0_112, %c0_113] : memref<3x3x4x4xf32, #tpu.memory_space<vmem>>, vector<1x1x4x4xf32>
    %124 = vector.shape_cast %123 : vector<1x1x4x4xf32> to vector<4x4xf32>
    %cst_114 = arith.constant dense<0.000000e+00> : vector<128x4xf32>
    %125 = tpu.matmul %122, %124, %cst_114 {dimension_numbers = #tpu.dot_dimension_numbers<[1], [0], [0], [1], [0, 0, 1, 1], [], []>} : vector<128x4xf32>, vector<4x4xf32>, vector<128x4xf32> -> vector<128x4xf32>
    %126 = arith.addf %120, %125 : vector<128x4xf32>
    %127 = vector.extract_strided_slice %95 {offsets = [2, 2, 0], sizes = [8, 16, 4], strides = [1, 1, 1]} : vector<12x18x4xf32> to vector<8x16x4xf32>
    %128 = vector.shape_cast %127 : vector<8x16x4xf32> to vector<128x4xf32>
    %c1_115 = arith.constant 1 : index
    %c2_116 = arith.constant 2 : index
    %c0_117 = arith.constant 0 : index
    %c0_118 = arith.constant 0 : index
    %129 = vector.load %arg7[%c1_115, %c2_116, %c0_117, %c0_118] : memref<3x3x4x4xf32, #tpu.memory_space<vmem>>, vector<1x1x4x4xf32>
    %130 = vector.shape_cast %129 : vector<1x1x4x4xf32> to vector<4x4xf32>
    %cst_119 = arith.constant dense<0.000000e+00> : vector<128x4xf32>
    %131 = tpu.matmul %128, %130, %cst_119 {dimension_numbers = #tpu.dot_dimension_numbers<[1], [0], [0], [1], [0, 0, 1, 1], [], []>} : vector<128x4xf32>, vector<4x4xf32>, vector<128x4xf32> -> vector<128x4xf32>
    %132 = arith.addf %126, %131 : vector<128x4xf32>
    %133 = vector.extract_strided_slice %95 {offsets = [3, 0, 0], sizes = [8, 16, 4], strides = [1, 1, 1]} : vector<12x18x4xf32> to vector<8x16x4xf32>
    %134 = vector.shape_cast %133 : vector<8x16x4xf32> to vector<128x4xf32>
    %c2_120 = arith.constant 2 : index
    %c0_121 = arith.constant 0 : index
    %c0_122 = arith.constant 0 : index
    %c0_123 = arith.constant 0 : index
    %135 = vector.load %arg7[%c2_120, %c0_121, %c0_122, %c0_123] : memref<3x3x4x4xf32, #tpu.memory_space<vmem>>, vector<1x1x4x4xf32>
    %136 = vector.shape_cast %135 : vector<1x1x4x4xf32> to vector<4x4xf32>
    %cst_124 = arith.constant dense<0.000000e+00> : vector<128x4xf32>
    %137 = tpu.matmul %134, %136, %cst_124 {dimension_numbers = #tpu.dot_dimension_numbers<[1], [0], [0], [1], [0, 0, 1, 1], [], []>} : vector<128x4xf32>, vector<4x4xf32>, vector<128x4xf32> -> vector<128x4xf32>
    %138 = arith.addf %132, %137 : vector<128x4xf32>
    %139 = vector.extract_strided_slice %95 {offsets = [3, 1, 0], sizes = [8, 16, 4], strides = [1, 1, 1]} : vector<12x18x4xf32> to vector<8x16x4xf32>
    %140 = vector.shape_cast %139 : vector<8x16x4xf32> to vector<128x4xf32>
    %c2_125 = arith.constant 2 : index
    %c1_126 = arith.constant 1 : index
    %c0_127 = arith.constant 0 : index
    %c0_128 = arith.constant 0 : index
    %141 = vector.load %arg7[%c2_125, %c1_126, %c0_127, %c0_128] : memref<3x3x4x4xf32, #tpu.memory_space<vmem>>, vector<1x1x4x4xf32>
    %142 = vector.shape_cast %141 : vector<1x1x4x4xf32> to vector<4x4xf32>
    %cst_129 = arith.constant dense<0.000000e+00> : vector<128x4xf32>
    %143 = tpu.matmul %140, %142, %cst_129 {dimension_numbers = #tpu.dot_dimension_numbers<[1], [0], [0], [1], [0, 0, 1, 1], [], []>} : vector<128x4xf32>, vector<4x4xf32>, vector<128x4xf32> -> vector<128x4xf32>
    %144 = arith.addf %138, %143 : vector<128x4xf32>
    %145 = vector.extract_strided_slice %95 {offsets = [3, 2, 0], sizes = [8, 16, 4], strides = [1, 1, 1]} : vector<12x18x4xf32> to vector<8x16x4xf32>
    %146 = vector.shape_cast %145 : vector<8x16x4xf32> to vector<128x4xf32>
    %c2_130 = arith.constant 2 : index
    %c2_131 = arith.constant 2 : index
    %c0_132 = arith.constant 0 : index
    %c0_133 = arith.constant 0 : index
    %147 = vector.load %arg7[%c2_130, %c2_131, %c0_132, %c0_133] : memref<3x3x4x4xf32, #tpu.memory_space<vmem>>, vector<1x1x4x4xf32>
    %148 = vector.shape_cast %147 : vector<1x1x4x4xf32> to vector<4x4xf32>
    %cst_134 = arith.constant dense<0.000000e+00> : vector<128x4xf32>
    %149 = tpu.matmul %146, %148, %cst_134 {dimension_numbers = #tpu.dot_dimension_numbers<[1], [0], [0], [1], [0, 0, 1, 1], [], []>} : vector<128x4xf32>, vector<4x4xf32>, vector<128x4xf32> -> vector<128x4xf32>
    %150 = arith.addf %144, %149 : vector<128x4xf32>
    %c0_135 = arith.constant 0 : index
    %c0_136 = arith.constant 0 : index
    %151 = vector.load %arg8[%c0_135, %c0_136] : memref<1x4xf32, #tpu.memory_space<vmem>>, vector<1x4xf32>
    %152 = vector.shape_cast %151 : vector<1x4xf32> to vector<4xf32>
    %153 = vector.shape_cast %152 : vector<4xf32> to vector<1x4xf32>
    %154 = vector.broadcast %153 : vector<1x4xf32> to vector<128x4xf32>
    %155 = arith.addf %150, %154 : vector<128x4xf32>
    %c0_137 = arith.constant 0 : index
    %c0_138 = arith.constant 0 : index
    %c0_139 = arith.constant 0 : index
    %c0_140 = arith.constant 0 : index
    %156 = vector.load %arg2[%c0_137, %c0_138, %c0_139, %c0_140] : memref<1x8x16x4xf32, #tpu.memory_space<vmem>>, vector<1x8x16x4xf32>
    %157 = vector.shape_cast %156 : vector<1x8x16x4xf32> to vector<8x16x4xf32>
    %158 = vector.shape_cast %157 : vector<8x16x4xf32> to vector<128x4xf32>
    %159 = arith.addf %155, %158 : vector<128x4xf32>
    %160 = vector.shape_cast %159 : vector<128x4xf32> to vector<8x16x4xf32>
    %c0_141 = arith.constant 0 : index
    %c0_142 = arith.constant 0 : index
    %c0_143 = arith.constant 0 : index
    %c0_144 = arith.constant 0 : index
    %161 = vector.load %arg9[%c0_141, %c0_142, %c0_143, %c0_144] : memref<1x8x16x4xf32, #tpu.memory_space<vmem>>, vector<1x8x16x4xf32>
    %162 = vector.shape_cast %161 : vector<1x8x16x4xf32> to vector<8x16x4xf32>
    %163 = vector.shape_cast %160 : vector<8x16x4xf32> to vector<1x8x16x4xf32>
    tpu.vector_store %arg9[%c0_141, %c0_142, %c0_143, %c0_144], %163 {strides = array<i32>} : memref<1x8x16x4xf32, #tpu.memory_space<vmem>>, vector<1x8x16x4xf32>,
    return
  }
  func.func @transform_0(%arg0: i32, %arg1: i32) -> (i32, i32, i32, i32) {
    %c0_i32 = arith.constant 0 : i32
    %c0_i32_0 = arith.constant 0 : i32
    %c0_i32_1 = arith.constant 0 : i32
    return %arg0, %arg1, %c0_i32, %c0_i32_0 : i32, i32, i32, i32
  }
  func.func @transform_1(%arg0: i32, %arg1: i32) -> (i32, i32, i32, i32) {
    %c4_i32 = arith.constant 4 : i32
    %0 = arith.muli %arg1, %c4_i32 : i32
    %c1_i32 = arith.constant 1 : i32
    %1 = arith.subi %0, %c1_i32 : i32
    %c0_i32 = arith.constant 0 : i32
    %2 = arith.maxsi %1, %c0_i32 : i32
    %c0_i32_0 = arith.constant 0 : i32
    %c0_i32_1 = arith.constant 0 : i32
    %c0_i32_2 = arith.constant 0 : i32
    return %arg0, %2, %c0_i32_0, %c0_i32_1 : i32, i32, i32, i32
  }
  func.func @transform_2(%arg0: i32, %arg1: i32) -> (i32, i32, i32, i32) {
    %c1_i32 = arith.constant 1 : i32
    %0 = arith.addi %arg1, %c1_i32 : i32
    %c4_i32 = arith.constant 4 : i32
    %1 = arith.muli %0, %c4_i32 : i32
    %c7_i32 = arith.constant 7 : i32
    %2 = arith.minsi %1, %c7_i32 : i32
    %c0_i32 = arith.constant 0 : i32
    %c0_i32_0 = arith.constant 0 : i32
    %c0_i32_1 = arith.constant 0 : i32
    return %arg0, %2, %c0_i32, %c0_i32_0 : i32, i32, i32, i32
  }
  func.func @transform_3(%arg0: i32, %arg1: i32) -> (i32, i32, i32, i32) {
    %c0_i32 = arith.constant 0 : i32
    %c0_i32_0 = arith.constant 0 : i32
    %c0_i32_1 = arith.constant 0 : i32
    %c0_i32_2 = arith.constant 0 : i32
    %c0_i32_3 = arith.constant 0 : i32
    return %c0_i32, %c0_i32_0, %c0_i32_1, %c0_i32_2 : i32, i32, i32, i32
  }
  func.func @transform_4(%arg0: i32, %arg1: i32) -> (i32, i32) {
    %c0_i32 = arith.constant 0 : i32
    %c0_i32_0 = arith.constant 0 : i32
    %c0_i32_1 = arith.constant 0 : i32
    return %c0_i32, %c0_i32_0 : i32, i32
  }
  func.func @transform_5(%arg0: i32, %arg1: i32) -> (i32, i32, i32, i32) {
    %c0_i32 = arith.constant 0 : i32
    %c0_i32_0 = arith.constant 0 : i32
    %c0_i32_1 = arith.constant 0 : i32
    %c0_i32_2 = arith.constant 0 : i32
    %c0_i32_3 = arith.constant 0 : i32
    return %c0_i32, %c0_i32_0, %c0_i32_1, %c0_i32_2 : i32, i32, i32, i32
  }
  func.func @transform_6(%arg0: i32, %arg1: i32) -> (i32, i32) {
    %c0_i32 = arith.constant 0 : i32
    %c0_i32_0 = arith.constant 0 : i32
    %c0_i32_1 = arith.constant 0 : i32
    return %c0_i32, %c0_i32_0 : i32, i32
  }
  func.func @transform_7(%arg0: i32, %arg1: i32) -> (i32, i32, i32, i32) {
    %c0_i32 = arith.constant 0 : i32
    %c0_i32_0 = arith.constant 0 : i32
    %c0_i32_1 = arith.constant 0 : i32
    return %arg0, %arg1, %c0_i32, %c0_i32_0 : i32, i32, i32, i32
  }
}

</mosaic_0001>

<llo_original>
// kernel: tpu_custom_call.1
$region0: #{tpu_custom_call.1}
  #allocation0 [shape = 'u32[]', space=smem, size = 0x4, offset = 0x4, fixed_abs, tag = 'smem constant byte address 0x4 - core index']
  #allocation1 [shape = 'u32[144,128]{1,0:T(1,128)}', space=vmem, size = 0x12000, scoped, tag = 'internal scratch']
  #allocation2 [shape = 'f32[12,18,4]{2,1,0:T(8,128)}', space=vmem, size = 0x24000, scoped, tag = 'scratch operand']
  %s0 = inlined_call_operand.hbm [shape: f32[2,16,16,4], index: 0, kind: input, shape index: {}]
  %s1 = inlined_call_operand.hbm [shape: f32[2,16,16,4], index: 1, kind: input, shape index: {}]
  %s2 = inlined_call_operand.hbm [shape: f32[2,16,16,4], index: 2, kind: input, shape index: {}]
  %s3 = inlined_call_operand.hbm [shape: f32[3,3,4,4], index: 3, kind: input, shape index: {}]
  %s4 = inlined_call_operand.hbm [shape: f32[1,4], index: 4, kind: input, shape index: {}]
  %s5 = inlined_call_operand.hbm [shape: f32[3,3,4,4], index: 5, kind: input, shape index: {}]
  %s6 = inlined_call_operand.hbm [shape: f32[1,4], index: 6, kind: input, shape index: {}]
  %s7 = inlined_call_operand.hbm [shape: f32[2,16,16,4], index: 7, kind: output, shape index: {}]
  %s8 = sld [smem:[#allocation0]]
  $region105: #{tpu_custom_call.1} parent=0
    _
  %s10 = ssub.s32 1, %s8
  %s11 = scalar_select 0, %s10, %s8
  $region1: #{tpu_custom_call.1} parent=0
    #allocation3 [shape = 'u8[131072]{0}', space=vmem, size = 0x20000, scoped, tag = 'input window, operand 0']
    #allocation4 [shape = 's32[2]{0}', space=sflag, size = 0x8, scoped, tag = 'scoped memory for tpu_custom_call.1']
    #allocation5 [shape = 's32[2]{0}', space=sflag, size = 0x8, scoped, tag = 'scoped memory for tpu_custom_call.1']
    #allocation6 [shape = 'u8[32768]{0}', space=vmem, size = 0x8000, scoped, tag = 'input window, operand 1']
    #allocation7 [shape = 's32[2]{0}', space=sflag, size = 0x8, scoped, tag = 'scoped memory for tpu_custom_call.1']
    #allocation8 [shape = 'u8[32768]{0}', space=vmem, size = 0x8000, scoped, tag = 'input window, operand 2']
    #allocation9 [shape = 'u8[18432]{0}', space=vmem, size = 0x4800, scoped, tag = 'input window, operand 3, single buffered']
    #allocation10 [shape = 's32[1]{0}', space=sflag, size = 0x4, scoped, tag = 'scoped memory for tpu_custom_call.1']
    #allocation11 [shape = 'u8[512]{0}', space=vmem, size = 0x400, scoped, tag = 'input window, operand 4, single buffered']
    #allocation12 [shape = 'u8[18432]{0}', space=vmem, size = 0x4800, scoped, tag = 'input window, operand 5, single buffered']
    #allocation13 [shape = 's32[1]{0}', space=sflag, size = 0x4, scoped, tag = 'scoped memory for tpu_custom_call.1']
    #allocation14 [shape = 'u8[512]{0}', space=vmem, size = 0x400, scoped, tag = 'input window, operand 6, single buffered']
    #allocation15 [shape = 'u8[131072]{0}', space=vmem, size = 0x20000, scoped, tag = 'output window, operand 0']
    %12 = vsyncpa [#allocation4], 0
    %s13 = scalar_lea.sflag [#allocation4], 1
    %14 = vsyncpa %s13, 0
    %15 = vsyncpa [#allocation7], 0
    %s16 = scalar_lea.sflag [#allocation7], 1
    %17 = vsyncpa %s16, 0
    %18 = vsyncpa [#allocation10], 0
    %19 = vsyncpa [#allocation13], 0
    %20 = vsyncpa [#allocation5], 0
    %s21 = scalar_lea.sflag [#allocation5], 1
    %22 = vsyncpa %s21, 0
    loop: start=0, step=1, limit=6
    $region2: #{tpu_custom_call.1} parent=1 // loop_pre_header
      _
    $region3: #{tpu_custom_call.1} parent=1 // loop_header
      %s24 = sphi 0, %s28
      %p25 = scmp.ge.s32.totalorder %s24, 6
      %s31 = sphi 0, %s43
      %s32 = sphi 0, %s39
      %s33 = sphi 0, %s31
      %s34 = sphi 0, %s32
      %s35 = sphi 0, %s33
      %s36 = sphi 0, %s34
      %s48 = sphi 0, %s50
      %s51 = sphi 0, %s48
      %s52 = sphi 0, %s51
      %s68 = sphi 0, %s52
      %s84 = sphi 0, %s86
      %s87 = sphi 0, %s84
      %s88 = sphi 0, %s87
      %s104 = sphi 0, %s88
      %s120 = sphi 0, %s122
      %s123 = sphi 0, %s120
      %s124 = sphi 0, %s123
      %s140 = sphi 0, %s124
      %s144 = sphi 0, %s144
      %s146 = sphi 0, %s144
      %s147 = sphi 0, %s146
      %s161 = sphi 0, %s147
      %s165 = sphi 0, %s165
      %s167 = sphi 0, %s165
      %s168 = sphi 0, %s167
      %s182 = sphi 0, %s168
      %s186 = sphi 0, %s186
      %s188 = sphi 0, %s186
      %s189 = sphi 0, %s188
      %s203 = sphi 0, %s189
      %s207 = sphi 0, %s207
      %s209 = sphi 0, %s207
      %s210 = sphi 0, %s209
      %s224 = sphi 0, %s210
      %s232 = sphi 0, %s234
      %s235 = sphi 0, %s232
      %s236 = sphi 0, %s235
      %s252 = sphi 0, %s236
    $region4: #{tpu_custom_call.1} parent=1 // loop_header_branch
      %27 = sbr.rel (%p25) target = $region8
    $region5: #{tpu_custom_call.1} parent=1 // loop_body
      %s29 = ssub.s32 %s24, 1
      %s30 = ssub.s32 %s24, 2
      %s37 = sadd.s32 1, %s32
      %p38 = scmp.ge.s32.totalorder %s37, 2
      %s39 = scalar_select %p38, 0, %s37
      %s40 = sadd.s32 1, %s31
      %s41 = scalar_select %p38, %s40, %s31
      %p42 = scmp.ge.s32.totalorder %s41, 2
      %s43 = scalar_select %p42, 0, %s41
      %s44 = ssub.s32 %s31, %s43
      %s45 = ssub.s32 %s32, %s39
      %s46 = sor.u32 %s44, %s45
      %p47 = scmp.eq.s32.totalorder %s46, 0
      %s49 = sadd.s32 %s48, 1
      %s50 = scalar_select %p47, %s48, %s49
      %p53 = pneg %p47
      %p54 = scmp.eq.s32.totalorder %s24, 3
      %p55 = por %p53, %p54
      %p56 = scmp.ne.s32.totalorder %s48, %s51
      %p57 = scmp.eq.s32.totalorder %s24, 0
      %p58 = por %p56, %p57
      %p59 = scmp.ne.s32.totalorder %s48, %s51
      %p60 = scmp.eq.s32.totalorder %s29, 3
      %p61 = por %p59, %p60
      %p62 = scmp.ne.s32.totalorder %s51, %s52
      %p63 = scmp.eq.s32.totalorder %s29, 0
      %p64 = por %p62, %p63
      %p65 = scmp.ne.s32.totalorder %s51, %s52
      %p66 = scmp.eq.s32.totalorder %s30, 3
      %p67 = por %p65, %p66
      %p69 = scmp.ne.s32.totalorder %s52, %s68
      %p70 = scmp.eq.s32.totalorder %s30, 0
      %p71 = por %p69, %p70
      %s72 = smul.u32 %s32, 4
      %s73 = ssub.s32 %s72, 1
      %p74 = scmp.gt.s32.totalorder %s73, 0
      %s75 = scalar_select %p74, %s73, 0
      %s76 = smul.u32 %s39, 4
      %s77 = ssub.s32 %s76, 1
      %p78 = scmp.gt.s32.totalorder %s77, 0
      %s79 = scalar_select %p78, %s77, 0
      %s80 = ssub.s32 %s31, %s43
      %s81 = ssub.s32 %s75, %s79
      %s82 = sor.u32 %s80, %s81
      %p83 = scmp.eq.s32.totalorder %s82, 0
      %s85 = sadd.s32 %s84, 1
      %s86 = scalar_select %p83, %s84, %s85
      %p89 = pneg %p83
      %p90 = scmp.eq.s32.totalorder %s24, 3
      %p91 = por %p89, %p90
      %p92 = scmp.ne.s32.totalorder %s84, %s87
      %p93 = scmp.eq.s32.totalorder %s24, 0
      %p94 = por %p92, %p93
      %p95 = scmp.ne.s32.totalorder %s84, %s87
      %p96 = scmp.eq.s32.totalorder %s29, 3
      %p97 = por %p95, %p96
      %p98 = scmp.ne.s32.totalorder %s87, %s88
      %p99 = scmp.eq.s32.totalorder %s29, 0
      %p100 = por %p98, %p99
      %p101 = scmp.ne.s32.totalorder %s87, %s88
      %p102 = scmp.eq.s32.totalorder %s30, 3
      %p103 = por %p101, %p102
      %p105 = scmp.ne.s32.totalorder %s88, %s104
      %p106 = scmp.eq.s32.totalorder %s30, 0
      %p107 = por %p105, %p106
      %s108 = sadd.s32 %s32, 1
      %s109 = smul.u32 %s108, 4
      %p110 = scmp.lt.s32.totalorder %s109, 7
      %s111 = scalar_select %p110, %s109, 7
      %s112 = sadd.s32 %s39, 1
      %s113 = smul.u32 %s112, 4
      %p114 = scmp.lt.s32.totalorder %s113, 7
      %s115 = scalar_select %p114, %s113, 7
      %s116 = ssub.s32 %s31, %s43
      %s117 = ssub.s32 %s111, %s115
      %s118 = sor.u32 %s116, %s117
      %p119 = scmp.eq.s32.totalorder %s118, 0
      %s121 = sadd.s32 %s120, 1
      %s122 = scalar_select %p119, %s120, %s121
      %p125 = pneg %p119
      %p126 = scmp.eq.s32.totalorder %s24, 3
      %p127 = por %p125, %p126
      %p128 = scmp.ne.s32.totalorder %s120, %s123
      %p129 = scmp.eq.s32.totalorder %s24, 0
      %p130 = por %p128, %p129
      %p131 = scmp.ne.s32.totalorder %s120, %s123
      %p132 = scmp.eq.s32.totalorder %s29, 3
      %p133 = por %p131, %p132
      %p134 = scmp.ne.s32.totalorder %s123, %s124
      %p135 = scmp.eq.s32.totalorder %s29, 0
      %p136 = por %p134, %p135
      %p137 = scmp.ne.s32.totalorder %s123, %s124
      %p138 = scmp.eq.s32.totalorder %s30, 3
      %p139 = por %p137, %p138
      %p141 = scmp.ne.s32.totalorder %s124, %s140
      %p142 = scmp.eq.s32.totalorder %s30, 0
      %p143 = por %p141, %p142
      %s145 = sadd.s32 %s144, 1
      %p148 = scmp.eq.s32.totalorder %s24, 3
      %p149 = scmp.ne.s32.totalorder %s144, %s146
      %p150 = scmp.eq.s32.totalorder %s24, 0
      %p151 = por %p149, %p150
      %p152 = scmp.ne.s32.totalorder %s144, %s146
      %p153 = scmp.eq.s32.totalorder %s29, 3
      %p154 = por %p152, %p153
      %p155 = scmp.ne.s32.totalorder %s146, %s147
      %p156 = scmp.eq.s32.totalorder %s29, 0
      %p157 = por %p155, %p156
      %p158 = scmp.ne.s32.totalorder %s146, %s147
      %p159 = scmp.eq.s32.totalorder %s30, 3
      %p160 = por %p158, %p159
      %p162 = scmp.ne.s32.totalorder %s147, %s161
      %p163 = scmp.eq.s32.totalorder %s30, 0
      %p164 = por %p162, %p163
      %s166 = sadd.s32 %s165, 1
      %p169 = scmp.eq.s32.totalorder %s24, 3
      %p170 = scmp.ne.s32.totalorder %s165, %s167
      %p171 = scmp.eq.s32.totalorder %s24, 0
      %p172 = por %p170, %p171
      %p173 = scmp.ne.s32.totalorder %s165, %s167
      %p174 = scmp.eq.s32.totalorder %s29, 3
      %p175 = por %p173, %p174
      %p176 = scmp.ne.s32.totalorder %s167, %s168
      %p177 = scmp.eq.s32.totalorder %s29, 0
      %p178 = por %p176, %p177
      %p179 = scmp.ne.s32.totalorder %s167, %s168
      %p180 = scmp.eq.s32.totalorder %s30, 3
      %p181 = por %p179, %p180
      %p183 = scmp.ne.s32.totalorder %s168, %s182
      %p184 = scmp.eq.s32.totalorder %s30, 0
      %p185 = por %p183, %p184
      %s187 = sadd.s32 %s186, 1
      %p190 = scmp.eq.s32.totalorder %s24, 3
      %p191 = scmp.ne.s32.totalorder %s186, %s188
      %p192 = scmp.eq.s32.totalorder %s24, 0
      %p193 = por %p191, %p192
      %p194 = scmp.ne.s32.totalorder %s186, %s188
      %p195 = scmp.eq.s32.totalorder %s29, 3
      %p196 = por %p194, %p195
      %p197 = scmp.ne.s32.totalorder %s188, %s189
      %p198 = scmp.eq.s32.totalorder %s29, 0
      %p199 = por %p197, %p198
      %p200 = scmp.ne.s32.totalorder %s188, %s189
      %p201 = scmp.eq.s32.totalorder %s30, 3
      %p202 = por %p200, %p201
      %p204 = scmp.ne.s32.totalorder %s189, %s203
      %p205 = scmp.eq.s32.totalorder %s30, 0
      %p206 = por %p204, %p205
      %s208 = sadd.s32 %s207, 1
      %p211 = scmp.eq.s32.totalorder %s24, 3
      %p212 = scmp.ne.s32.totalorder %s207, %s209
      %p213 = scmp.eq.s32.totalorder %s24, 0
      %p214 = por %p212, %p213
      %p215 = scmp.ne.s32.totalorder %s207, %s209
      %p216 = scmp.eq.s32.totalorder %s29, 3
      %p217 = por %p215, %p216
      %p218 = scmp.ne.s32.totalorder %s209, %s210
      %p219 = scmp.eq.s32.totalorder %s29, 0
      %p220 = por %p218, %p219
      %p221 = scmp.ne.s32.totalorder %s209, %s210
      %p222 = scmp.eq.s32.totalorder %s30, 3
      %p223 = por %p221, %p222
      %p225 = scmp.ne.s32.totalorder %s210, %s224
      %p226 = scmp.eq.s32.totalorder %s30, 0
      %p227 = por %p225, %p226
      %s228 = ssub.s32 %s31, %s43
      %s229 = ssub.s32 %s32, %s39
      %s230 = sor.u32 %s228, %s229
      %p231 = scmp.eq.s32.totalorder %s230, 0
      %s233 = sadd.s32 %s232, 1
      %s234 = scalar_select %p231, %s232, %s233
      %p237 = pneg %p231
      %p238 = scmp.eq.s32.totalorder %s24, 3
      %p239 = por %p237, %p238
      %p240 = scmp.ne.s32.totalorder %s232, %s235
      %p241 = scmp.eq.s32.totalorder %s24, 0
      %p242 = por %p240, %p241
      %p243 = scmp.ne.s32.totalorder %s232, %s235
      %p244 = scmp.eq.s32.totalorder %s29, 3
      %p245 = por %p243, %p244
      %p246 = scmp.ne.s32.totalorder %s235, %s236
      %p247 = scmp.eq.s32.totalorder %s29, 0
      %p248 = por %p246, %p247
      %p249 = scmp.ne.s32.totalorder %s235, %s236
      %p250 = scmp.eq.s32.totalorder %s30, 3
      %p251 = por %p249, %p250
      %p253 = scmp.ne.s32.totalorder %s236, %s252
      %p254 = scmp.eq.s32.totalorder %s30, 0
      %p255 = por %p253, %p254
      %p256 = scmp.le.s32.totalorder 1, %s24
      %p257 = scmp.lt.s32.totalorder %s24, 5
      %p258 = pnand %p256, %p257
      %p259 = pneg %p258
      // Predicated region
      $region9: #{tpu_custom_call.1} parent=5 // pred_check
        _
      $region10: #{tpu_custom_call.1} parent=5 // pred_check_branch
        %261 = sbr.rel (%p258) target = $region12
      $region11: #{tpu_custom_call.1} parent=5 // pred_region
        %s262 = ssub.s32 %s24, 1
        // Predicated region
        $region13: #{tpu_custom_call.1} parent=11 // pred_check
          %p263 = pneg %p157
        $region14: #{tpu_custom_call.1} parent=11 // pred_check_branch
          %265 = sbr.rel (%p263) target = $region16
        $region15: #{tpu_custom_call.1} parent=11 // pred_region
          %s267 = ssub.s32 576, 576
          %268 = vsyncadd [#allocation10], %s267
          %s269 = sshll.u32 [#allocation9], 4
          %s270 = int_to_ptr.vmem [resolvable:$true] %s269
          %275 = dma.hbm_to_vmem [thread:$0]  %s3, 576, %s270, [#allocation10], 64, 64, 4
        $region16: #{tpu_custom_call.1} parent=11 // pred_fallthru
          _
        // Predicated region
        $region17: #{tpu_custom_call.1} parent=11 // pred_check
          %p276 = pneg %p178
        $region18: #{tpu_custom_call.1} parent=11 // pred_check_branch
          %278 = sbr.rel (%p276) target = $region20
        $region19: #{tpu_custom_call.1} parent=11 // pred_region
          %s280 = ssub.s32 16, 16
          %281 = vsyncadd [#allocation10], %s280
          %s283 = sshll.u32 [#allocation11], 4
          %s284 = int_to_ptr.vmem [resolvable:$true] %s283
          %286 = dma.hbm_to_vmem [thread:$0]  %s4, 16, %s284, [#allocation10]
        $region20: #{tpu_custom_call.1} parent=11 // pred_fallthru
          _
        // Predicated region
        $region21: #{tpu_custom_call.1} parent=11 // pred_check
          %p287 = pneg %p199
        $region22: #{tpu_custom_call.1} parent=11 // pred_check_branch
          %289 = sbr.rel (%p287) target = $region24
        $region23: #{tpu_custom_call.1} parent=11 // pred_region
          %s291 = ssub.s32 576, 576
          %292 = vsyncadd [#allocation13], %s291
          %s293 = sshll.u32 [#allocation12], 4
          %s294 = int_to_ptr.vmem [resolvable:$true] %s293
          %299 = dma.hbm_to_vmem [thread:$0]  %s5, 576, %s294, [#allocation13], 64, 64, 4
        $region24: #{tpu_custom_call.1} parent=11 // pred_fallthru
          _
        // Predicated region
        $region25: #{tpu_custom_call.1} parent=11 // pred_check
          %p300 = pneg %p220
        $region26: #{tpu_custom_call.1} parent=11 // pred_check_branch
          %302 = sbr.rel (%p300) target = $region28
        $region27: #{tpu_custom_call.1} parent=11 // pred_region
          %s304 = ssub.s32 16, 16
          %305 = vsyncadd [#allocation13], %s304
          %s307 = sshll.u32 [#allocation14], 4
          %s308 = int_to_ptr.vmem [resolvable:$true] %s307
          %310 = dma.hbm_to_vmem [thread:$0]  %s6, 16, %s308, [#allocation13]
        $region28: #{tpu_custom_call.1} parent=11 // pred_fallthru
          _
      $region12: #{tpu_custom_call.1} parent=5 // pred_fallthru
        _
      %p311 = scmp.lt.s32.totalorder %s24, 4
      // Predicated region
      $region29: #{tpu_custom_call.1} parent=5 // pred_check
        %p312 = pneg %p311
      $region30: #{tpu_custom_call.1} parent=5 // pred_check_branch
        %314 = sbr.rel (%p312) target = $region32
      $region31: #{tpu_custom_call.1} parent=5 // pred_region
        // Predicated region
        $region33: #{tpu_custom_call.1} parent=31 // pred_check
          %p315 = pneg %p58
        $region34: #{tpu_custom_call.1} parent=31 // pred_check_branch
          %317 = sbr.rel (%p315) target = $region36
        $region35: #{tpu_custom_call.1} parent=31 // pred_region
          %s318 = sand.u32 %s48, 1
          %s319 = scalar_lea.sflag [#allocation4], %s318
          %s320 = sand.u32 %s48, 1
          %s321 = smul.addr %s320, 128
          %s322 = scalar_lea.vmem [#allocation3], %s321
          %s323 = smul.u32 8, %s32
          %s325 = ssub.s32 2048, 2048
          %326 = vsyncadd %s319, %s325
          %s327 = smul.addr %s323, 2
          %s328 = smul.addr %s31, 32
          %s329 = sadd.s32 %s327, %s328
          %s330 = smul.addr %s329, 128
          %s331 = scalar_lea.hbm %s0, %s330
          %s332 = sshll.u32 %s322, 4
          %s333 = int_to_ptr.vmem [resolvable:$true] %s332
          %338 = dma.hbm_to_vmem [thread:$0]  %s331, 2048, %s333, %s319, 128, 128, 8
        $region36: #{tpu_custom_call.1} parent=31 // pred_fallthru
          _
        // Predicated region
        $region37: #{tpu_custom_call.1} parent=31 // pred_check
          %p339 = pneg %p94
        $region38: #{tpu_custom_call.1} parent=31 // pred_check_branch
          %341 = sbr.rel (%p339) target = $region40
        $region39: #{tpu_custom_call.1} parent=31 // pred_region
          %s342 = sand.u32 %s24, 1
          %s343 = scalar_lea.sflag [#allocation7], %s342
          %s344 = sand.u32 %s84, 1
          %s345 = smul.addr %s344, 32
          %s346 = scalar_lea.vmem [#allocation6], %s345
          %s347 = smul.u32 %s32, 4
          %s348 = ssub.s32 %s347, 1
          %p349 = scmp.gt.s32.totalorder %s348, 0
          %s350 = scalar_select %p349, %s348, 0
          %s351 = smul.u32 2, %s350
          %s353 = ssub.s32 512, 512
          %354 = vsyncadd %s343, %s353
          %s355 = smul.addr %s351, 2
          %s356 = smul.addr %s31, 32
          %s357 = sadd.s32 %s355, %s356
          %s358 = smul.addr %s357, 128
          %s359 = scalar_lea.hbm %s1, %s358
          %s360 = sshll.u32 %s346, 4
          %s361 = int_to_ptr.vmem [resolvable:$true] %s360
          %366 = dma.hbm_to_vmem [thread:$0]  %s359, 512, %s361, %s343, 128, 128, 8
        $region40: #{tpu_custom_call.1} parent=31 // pred_fallthru
          _
        // Predicated region
        $region41: #{tpu_custom_call.1} parent=31 // pred_check
          %p367 = pneg %p130
        $region42: #{tpu_custom_call.1} parent=31 // pred_check_branch
          %369 = sbr.rel (%p367) target = $region44
        $region43: #{tpu_custom_call.1} parent=31 // pred_region
          %s370 = sand.u32 %s24, 1
          %s371 = scalar_lea.sflag [#allocation7], %s370
          %s372 = sand.u32 %s120, 1
          %s373 = smul.addr %s372, 32
          %s374 = scalar_lea.vmem [#allocation8], %s373
          %s375 = sadd.s32 %s32, 1
          %s376 = smul.u32 %s375, 4
          %p377 = scmp.lt.s32.totalorder %s376, 7
          %s378 = scalar_select %p377, %s376, 7
          %s379 = smul.u32 2, %s378
          %s381 = ssub.s32 512, 512
          %382 = vsyncadd %s371, %s381
          %s383 = smul.addr %s379, 2
          %s384 = smul.addr %s31, 32
          %s385 = sadd.s32 %s383, %s384
          %s386 = smul.addr %s385, 128
          %s387 = scalar_lea.hbm %s2, %s386
          %s388 = sshll.u32 %s374, 4
          %s389 = int_to_ptr.vmem [resolvable:$true] %s388
          %394 = dma.hbm_to_vmem [thread:$0]  %s387, 512, %s389, %s371, 128, 128, 8
        $region44: #{tpu_custom_call.1} parent=31 // pred_fallthru
          _
      $region32: #{tpu_custom_call.1} parent=5 // pred_fallthru
        _
      %p395 = scmp.le.s32.totalorder 1, %s24
      %p396 = scmp.lt.s32.totalorder %s24, 5
      %p397 = pnand %p395, %p396
      %p398 = pneg %p397
      // Predicated region
      $region45: #{tpu_custom_call.1} parent=5 // pred_check
        _
      $region46: #{tpu_custom_call.1} parent=5 // pred_check_branch
        %400 = sbr.rel (%p397) target = $region48
      $region47: #{tpu_custom_call.1} parent=5 // pred_region
        %s401 = ssub.s32 %s24, 1
        %s402 = sand.u32 %s51, 1
        %s403 = scalar_lea.sflag [#allocation4], %s402
        %s404 = sand.u32 %s51, 1
        %s405 = smul.addr %s404, 128
        %s406 = scalar_lea.vmem [#allocation3], %s405
        // Predicated region
        $region49: #{tpu_custom_call.1} parent=47 // pred_check
          %p407 = pneg %p64
        $region50: #{tpu_custom_call.1} parent=47 // pred_check_branch
          %409 = sbr.rel (%p407) target = $region52
        $region51: #{tpu_custom_call.1} parent=47 // pred_region
          %410 = dma.done %s403, 2048
        $region52: #{tpu_custom_call.1} parent=47 // pred_fallthru
          _
        %s411 = sand.u32 %s29, 1
        %s412 = scalar_lea.sflag [#allocation7], %s411
        %s413 = sand.u32 %s87, 1
        %s414 = smul.addr %s413, 32
        %s415 = scalar_lea.vmem [#allocation6], %s414
        // Predicated region
        $region53: #{tpu_custom_call.1} parent=47 // pred_check
          %p416 = pneg %p100
        $region54: #{tpu_custom_call.1} parent=47 // pred_check_branch
          %418 = sbr.rel (%p416) target = $region56
        $region55: #{tpu_custom_call.1} parent=47 // pred_region
          %419 = dma.done %s412, 512
        $region56: #{tpu_custom_call.1} parent=47 // pred_fallthru
          _
        %s420 = sand.u32 %s29, 1
        %s421 = scalar_lea.sflag [#allocation7], %s420
        %s422 = sand.u32 %s123, 1
        %s423 = smul.addr %s422, 32
        %s424 = scalar_lea.vmem [#allocation8], %s423
        // Predicated region
        $region57: #{tpu_custom_call.1} parent=47 // pred_check
          %p425 = pneg %p136
        $region58: #{tpu_custom_call.1} parent=47 // pred_check_branch
          %427 = sbr.rel (%p425) target = $region60
        $region59: #{tpu_custom_call.1} parent=47 // pred_region
          %428 = dma.done %s421, 512
        $region60: #{tpu_custom_call.1} parent=47 // pred_fallthru
          _
        // Predicated region
        $region61: #{tpu_custom_call.1} parent=47 // pred_check
          %p429 = pneg %p157
        $region62: #{tpu_custom_call.1} parent=47 // pred_check_branch
          %431 = sbr.rel (%p429) target = $region64
        $region63: #{tpu_custom_call.1} parent=47 // pred_region
          %432 = dma.done [#allocation10], 576
        $region64: #{tpu_custom_call.1} parent=47 // pred_fallthru
          _
        // Predicated region
        $region65: #{tpu_custom_call.1} parent=47 // pred_check
          %p433 = pneg %p178
        $region66: #{tpu_custom_call.1} parent=47 // pred_check_branch
          %435 = sbr.rel (%p433) target = $region68
        $region67: #{tpu_custom_call.1} parent=47 // pred_region
          %436 = dma.done [#allocation10], 16
        $region68: #{tpu_custom_call.1} parent=47 // pred_fallthru
          _
        // Predicated region
        $region69: #{tpu_custom_call.1} parent=47 // pred_check
          %p437 = pneg %p199
        $region70: #{tpu_custom_call.1} parent=47 // pred_check_branch
          %439 = sbr.rel (%p437) target = $region72
        $region71: #{tpu_custom_call.1} parent=47 // pred_region
          %440 = dma.done [#allocation13], 576
        $region72: #{tpu_custom_call.1} parent=47 // pred_fallthru
          _
        // Predicated region
        $region73: #{tpu_custom_call.1} parent=47 // pred_check
          %p441 = pneg %p220
        $region74: #{tpu_custom_call.1} parent=47 // pred_check_branch
          %443 = sbr.rel (%p441) target = $region76
        $region75: #{tpu_custom_call.1} parent=47 // pred_region
          %444 = dma.done [#allocation13], 16
        $region76: #{tpu_custom_call.1} parent=47 // pred_fallthru
          _
        %s445 = sand.u32 %s51, 1
        %s446 = scalar_lea.sflag [#allocation4], %s445
        %s447 = sand.u32 %s51, 1
        %s448 = smul.addr %s447, 128
        %s449 = scalar_lea.vmem [#allocation3], %s448
        %p450 = pneg %p64
        %p451 = pneg %p61
        %s452 = sand.u32 %s29, 1
        %s453 = scalar_lea.sflag [#allocation7], %s452
        %s454 = sand.u32 %s87, 1
        %s455 = smul.addr %s454, 32
        %s456 = scalar_lea.vmem [#allocation6], %s455
        %p457 = pneg %p100
        %p458 = pneg %p97
        %s459 = sand.u32 %s29, 1
        %s460 = scalar_lea.sflag [#allocation7], %s459
        %s461 = sand.u32 %s123, 1
        %s462 = smul.addr %s461, 32
        %s463 = scalar_lea.vmem [#allocation8], %s462
        %p464 = pneg %p136
        %p465 = pneg %p133
        %p466 = pneg %p157
        %p467 = pneg %p154
        %p468 = pneg %p178
        %p469 = pneg %p175
        %p470 = pneg %p199
        %p471 = pneg %p196
        %p472 = pneg %p220
        %p473 = pneg %p217
        %p474 = pneg %p248
        %p475 = pneg %p245
        %s476 = sand.u32 %s235, 1
        %s477 = scalar_lea.sflag [#allocation5], %s476
        %s478 = sand.u32 %s235, 1
        %s479 = smul.addr %s478, 128
        %s480 = scalar_lea.vmem [#allocation15], %s479
        %s481 = smul.u32 8, %s34
        %s482 = smul.u32 %s34, 4
        %s483 = ssub.s32 %s482, 1
        %p484 = scmp.gt.s32.totalorder %s483, 0
        %s485 = scalar_select %p484, %s483, 0
        %s486 = smul.u32 2, %s485
        %s487 = sadd.s32 %s34, 1
        %s488 = smul.u32 %s487, 4
        %p489 = scmp.lt.s32.totalorder %s488, 7
        %s490 = scalar_select %p489, %s488, 7
        %s491 = smul.u32 2, %s490
        %s492 = smul.u32 8, %s34
        %vm493 = vcmask 24576
        %494 = vst.msk [vmem:[#allocation2] sm:$0x1] %vm493, 0.0
        %495 = vst.msk [vmem:[#allocation2 + $0x18] sm:$0x1] %vm493, 0.0
        %496 = vst.msk [vmem:[#allocation2 + $0x30] sm:$0x1] %vm493, 0.0
        %497 = vst.msk [vmem:[#allocation2 + $0x48] sm:$0x1] %vm493, 0.0
        %498 = vst.msk [vmem:[#allocation2 + $0x60] sm:$0x1] %vm493, 0.0
        %499 = vst.msk [vmem:[#allocation2 + $0x78] sm:$0x1] %vm493, 0.0
        %500 = vst.msk [vmem:[#allocation2 + $0x90] sm:$0x1] %vm493, 0.0
        %501 = vst.msk [vmem:[#allocation2 + $0xa8] sm:$0x1] %vm493, 0.0
        %502 = vst.msk [vmem:[#allocation2 + $0xc0] sm:$0x1] %vm493, 0.0
        %503 = vst.msk [vmem:[#allocation2 + $0xd8] sm:$0x1] %vm493, 0.0
        %504 = vst.msk [vmem:[#allocation2 + $0xf0] sm:$0x1] %vm493, 0.0
        %505 = vst.msk [vmem:[#allocation2 + $0x108] sm:$0x1] %vm493, 0.0
        %506 = vst.msk [vmem:[#allocation2 + $0x11] sm:$0x1] %vm493, 0.0
        %507 = vst.msk [vmem:[#allocation2 + $0x29] sm:$0x1] %vm493, 0.0
        %508 = vst.msk [vmem:[#allocation2 + $0x41] sm:$0x1] %vm493, 0.0
        %509 = vst.msk [vmem:[#allocation2 + $0x59] sm:$0x1] %vm493, 0.0
        %510 = vst.msk [vmem:[#allocation2 + $0x71] sm:$0x1] %vm493, 0.0
        %511 = vst.msk [vmem:[#allocation2 + $0x89] sm:$0x1] %vm493, 0.0
        %512 = vst.msk [vmem:[#allocation2 + $0xa1] sm:$0x1] %vm493, 0.0
        %513 = vst.msk [vmem:[#allocation2 + $0xb9] sm:$0x1] %vm493, 0.0
        %514 = vst.msk [vmem:[#allocation2 + $0xd1] sm:$0x1] %vm493, 0.0
        %515 = vst.msk [vmem:[#allocation2 + $0xe9] sm:$0x1] %vm493, 0.0
        %516 = vst.msk [vmem:[#allocation2 + $0x101] sm:$0x1] %vm493, 0.0
        %517 = vst.msk [vmem:[#allocation2 + $0x119] sm:$0x1] %vm493, 0.0
        %v518 = vld [vmem:[%s415] sm:$0xff]
        %v519 = vld [vmem:[%s415 + $0x8] sm:$0xff]
        %v520 = vld [vmem:[%s415 + $0x10] sm:$0xff]
        %v521 = vld [vmem:[%s415 + $0x18] sm:$0xff]
        %v522 = vmax.f32 %v518, 0.0
        %v523 = vmax.f32 %v519, 0.0
        %v524 = vmax.f32 %v520, 0.0
        %v525 = vmax.f32 %v521, 0.0
        %vm526 = vcmask 31744
        %527 = vst.msk [vmem:[#allocation2 + $0x1] sm:$0xff] %vm526, %v522
        %528 = vst.msk [vmem:[#allocation2 + $0x9] sm:$0xff] %vm526, %v523
        %529 = vst.msk [vmem:[#allocation2 + $0x19] sm:$0xff] %vm526, %v524
        %530 = vst.msk [vmem:[#allocation2 + $0x21] sm:$0xff] %vm526, %v525
        %v531 = vld [vmem:[%s406] sm:$0xff]
        %v532 = vld [vmem:[%s406 + $0x8] sm:$0xff]
        %v533 = vld [vmem:[%s406 + $0x10] sm:$0xff]
        %v534 = vld [vmem:[%s406 + $0x18] sm:$0xff]
        %v535 = vld [vmem:[%s406 + $0x20] sm:$0xff]
        %v536 = vld [vmem:[%s406 + $0x28] sm:$0xff]
        %v537 = vld [vmem:[%s406 + $0x30] sm:$0xff]
        %v538 = vld [vmem:[%s406 + $0x38] sm:$0xff]
        %v539 = vld [vmem:[%s406 + $0x40] sm:$0xff]
        %v540 = vld [vmem:[%s406 + $0x48] sm:$0xff]
        %v541 = vld [vmem:[%s406 + $0x50] sm:$0xff]
        %v542 = vld [vmem:[%s406 + $0x58] sm:$0xff]
        %v543 = vld [vmem:[%s406 + $0x60] sm:$0xff]
        %v544 = vld [vmem:[%s406 + $0x68] sm:$0xff]
        %v545 = vld [vmem:[%s406 + $0x70] sm:$0xff]
        %v546 = vld [vmem:[%s406 + $0x78] sm:$0xff]
        %v547 = vmax.f32 %v531, 0.0
        %v548 = vmax.f32 %v532, 0.0
        %v549 = vmax.f32 %v533, 0.0
        %v550 = vmax.f32 %v534, 0.0
        %v551 = vmax.f32 %v535, 0.0
        %v552 = vmax.f32 %v536, 0.0
        %v553 = vmax.f32 %v537, 0.0
        %v554 = vmax.f32 %v538, 0.0
        %v555 = vmax.f32 %v539, 0.0
        %v556 = vmax.f32 %v540, 0.0
        %v557 = vmax.f32 %v541, 0.0
        %v558 = vmax.f32 %v542, 0.0
        %v559 = vmax.f32 %v543, 0.0
        %v560 = vmax.f32 %v544, 0.0
        %v561 = vmax.f32 %v545, 0.0
        %v562 = vmax.f32 %v546, 0.0
        %s563 = scalar_lea.vmem [#allocation2], 48
        %564 = vst.msk [vmem:[%s563 + $0x1] sm:$0xff] %vm526, %v547
        %565 = vst.msk [vmem:[%s563 + $0x9] sm:$0xff] %vm526, %v548
        %566 = vst.msk [vmem:[%s563 + $0x19] sm:$0xff] %vm526, %v549
        %567 = vst.msk [vmem:[%s563 + $0x21] sm:$0xff] %vm526, %v550
        %568 = vst.msk [vmem:[%s563 + $0x31] sm:$0xff] %vm526, %v551
        %569 = vst.msk [vmem:[%s563 + $0x39] sm:$0xff] %vm526, %v552
        %570 = vst.msk [vmem:[%s563 + $0x49] sm:$0xff] %vm526, %v553
        %571 = vst.msk [vmem:[%s563 + $0x51] sm:$0xff] %vm526, %v554
        %572 = vst.msk [vmem:[%s563 + $0x61] sm:$0xff] %vm526, %v555
        %573 = vst.msk [vmem:[%s563 + $0x69] sm:$0xff] %vm526, %v556
        %574 = vst.msk [vmem:[%s563 + $0x79] sm:$0xff] %vm526, %v557
        %575 = vst.msk [vmem:[%s563 + $0x81] sm:$0xff] %vm526, %v558
        %576 = vst.msk [vmem:[%s563 + $0x91] sm:$0xff] %vm526, %v559
        %577 = vst.msk [vmem:[%s563 + $0x99] sm:$0xff] %vm526, %v560
        %578 = vst.msk [vmem:[%s563 + $0xa9] sm:$0xff] %vm526, %v561
        %579 = vst.msk [vmem:[%s563 + $0xb1] sm:$0xff] %vm526, %v562
        %v580 = vld [vmem:[%s424] sm:$0xff]
        %v581 = vld [vmem:[%s424 + $0x8] sm:$0xff]
        %v582 = vld [vmem:[%s424 + $0x10] sm:$0xff]
        %v583 = vld [vmem:[%s424 + $0x18] sm:$0xff]
        %v584 = vmax.f32 %v580, 0.0
        %v585 = vmax.f32 %v581, 0.0
        %v586 = vmax.f32 %v582, 0.0
        %v587 = vmax.f32 %v583, 0.0
        %s588 = scalar_lea.vmem [#allocation2], 240
        %589 = vst.msk [vmem:[%s588 + $0x1] sm:$0xff] %vm526, %v584
        %590 = vst.msk [vmem:[%s588 + $0x9] sm:$0xff] %vm526, %v585
        %591 = vst.msk [vmem:[%s588 + $0x19] sm:$0xff] %vm526, %v586
        %592 = vst.msk [vmem:[%s588 + $0x21] sm:$0xff] %vm526, %v587
        %p593 = scmp.eq.s32.totalorder %s34, 0
        // Predicated region
        $region77: #{tpu_custom_call.1} parent=47 // pred_check
          %p594 = pneg %p593
        $region78: #{tpu_custom_call.1} parent=47 // pred_check_branch
          %596 = sbr.rel (%p594) target = $region80
        $region79: #{tpu_custom_call.1} parent=47 // pred_region
          %597 = vst.msk [vmem:[#allocation2 + $0x1] sm:$0xff] %vm526, 0.0
          %598 = vst.msk [vmem:[#allocation2 + $0x9] sm:$0xff] %vm526, 0.0
          %599 = vst.msk [vmem:[#allocation2 + $0x19] sm:$0xff] %vm526, 0.0
          %600 = vst.msk [vmem:[#allocation2 + $0x21] sm:$0xff] %vm526, 0.0
        $region80: #{tpu_custom_call.1} parent=47 // pred_fallthru
          _
        %p601 = scmp.eq.s32.totalorder %s34, 1
        // Predicated region
        $region81: #{tpu_custom_call.1} parent=47 // pred_check
          %p602 = pneg %p601
        $region82: #{tpu_custom_call.1} parent=47 // pred_check_branch
          %604 = sbr.rel (%p602) target = $region84
        $region83: #{tpu_custom_call.1} parent=47 // pred_region
          %605 = vst.msk [vmem:[%s588 + $0x1] sm:$0xff] %vm526, 0.0
          %606 = vst.msk [vmem:[%s588 + $0x9] sm:$0xff] %vm526, 0.0
          %607 = vst.msk [vmem:[%s588 + $0x19] sm:$0xff] %vm526, 0.0
          %608 = vst.msk [vmem:[%s588 + $0x21] sm:$0xff] %vm526, 0.0
        $region84: #{tpu_custom_call.1} parent=47 // pred_fallthru
          _
        %v609 = vld [vmem:[#allocation2] sm:$0xff]
        %v610 = vld [vmem:[#allocation2 + $0x8] sm:$0xff]
        %v611 = vld [vmem:[#allocation2 + $0x10] sm:$0x3]
        %v612 = vld [vmem:[#allocation2 + $0x18] sm:$0xff]
        %v613 = vld [vmem:[#allocation2 + $0x20] sm:$0xff]
        %v614 = vld [vmem:[#allocation2 + $0x28] sm:$0x3]
        %v615 = vld [vmem:[#allocation2 + $0x30] sm:$0xff]
        %v616 = vld [vmem:[#allocation2 + $0x38] sm:$0xff]
        %v617 = vld [vmem:[#allocation2 + $0x40] sm:$0x3]
        %v618 = vld [vmem:[#allocation2 + $0x48] sm:$0xff]
        %v619 = vld [vmem:[#allocation2 + $0x50] sm:$0xff]
        %v620 = vld [vmem:[#allocation2 + $0x58] sm:$0x3]
        %v621 = vld [vmem:[#allocation2 + $0x60] sm:$0xff]
        %v622 = vld [vmem:[#allocation2 + $0x68] sm:$0xff]
        %v623 = vld [vmem:[#allocation2 + $0x70] sm:$0x3]
        %v624 = vld [vmem:[#allocation2 + $0x78] sm:$0xff]
        %v625 = vld [vmem:[#allocation2 + $0x80] sm:$0xff]
        %v626 = vld [vmem:[#allocation2 + $0x88] sm:$0x3]
        %v627 = vld [vmem:[#allocation2 + $0x90] sm:$0xff]
        %v628 = vld [vmem:[#allocation2 + $0x98] sm:$0xff]
        %v629 = vld [vmem:[#allocation2 + $0xa0] sm:$0x3]
        %v630 = vld [vmem:[#allocation2 + $0xa8] sm:$0xff]
        %v631 = vld [vmem:[#allocation2 + $0xb0] sm:$0xff]
        %v632 = vld [vmem:[#allocation2 + $0xb8] sm:$0x3]
        %v633 = vld [vmem:[#allocation2 + $0xc0] sm:$0xff]
        %v634 = vld [vmem:[#allocation2 + $0xc8] sm:$0xff]
        %v635 = vld [vmem:[#allocation2 + $0xd0] sm:$0x3]
        %v636 = vld [vmem:[#allocation2 + $0xd8] sm:$0xff]
        %v637 = vld [vmem:[#allocation2 + $0xe0] sm:$0xff]
        %v638 = vld [vmem:[#allocation2 + $0xe8] sm:$0x3]
        %v639 = vld [vmem:[#allocation2 + $0xf0] sm:$0xff]
        %v640 = vld [vmem:[#allocation2 + $0xf8] sm:$0xff]
        %v641 = vld [vmem:[#allocation2 + $0x100] sm:$0x3]
        %v642 = vld [vmem:[#allocation2 + $0x108] sm:$0xff]
        %v643 = vld [vmem:[#allocation2 + $0x110] sm:$0xff]
        %v644 = vld [vmem:[#allocation2 + $0x118] sm:$0x3]
        %v645 = vld [vmem:[#allocation9] sm:$0xf]
        %vm676 = vcmask 1046528
        %v677 = vrot.slane %v609, 1
        %v678 = vrot.slane %v610, 1
        %v679 = vsel %vm676, %v677, %v678
        %v680 = vrot.slane %v611, 1
        %v681 = vsel %vm676, %v678, %v680
        %v682 = vrot.slane %v612, 1
        %v683 = vrot.slane %v613, 1
        %v684 = vsel %vm676, %v682, %v683
        %v685 = vrot.slane %v614, 1
        %v686 = vsel %vm676, %v683, %v685
        %v687 = vrot.slane %v615, 1
        %v688 = vrot.slane %v616, 1
        %v689 = vsel %vm676, %v687, %v688
        %v690 = vrot.slane %v617, 1
        %v691 = vsel %vm676, %v688, %v690
        %v692 = vrot.slane %v618, 1
        %v693 = vrot.slane %v619, 1
        %v694 = vsel %vm676, %v692, %v693
        %v695 = vrot.slane %v620, 1
        %v696 = vsel %vm676, %v693, %v695
        %v697 = vrot.slane %v621, 1
        %v698 = vrot.slane %v622, 1
        %v699 = vsel %vm676, %v697, %v698
        %v700 = vrot.slane %v623, 1
        %v701 = vsel %vm676, %v698, %v700
        %v702 = vrot.slane %v624, 1
        %v703 = vrot.slane %v625, 1
        %v704 = vsel %vm676, %v702, %v703
        %v705 = vrot.slane %v626, 1
        %v706 = vsel %vm676, %v703, %v705
        %v707 = vrot.slane %v627, 1
        %v708 = vrot.slane %v628, 1
        %v709 = vsel %vm676, %v707, %v708
        %v710 = vrot.slane %v629, 1
        %v711 = vsel %vm676, %v708, %v710
        %v712 = vrot.slane %v630, 1
        %v713 = vrot.slane %v631, 1
        %v714 = vsel %vm676, %v712, %v713
        %v715 = vrot.slane %v632, 1
        %v716 = vsel %vm676, %v713, %v715
        %v717 = vrot.slane %v633, 1
        %v718 = vrot.slane %v634, 1
        %v719 = vsel %vm676, %v717, %v718
        %v720 = vrot.slane %v635, 1
        %v721 = vsel %vm676, %v718, %v720
        %v722 = vrot.slane %v636, 1
        %v723 = vrot.slane %v637, 1
        %v724 = vsel %vm676, %v722, %v723
        %v725 = vrot.slane %v638, 1
        %v726 = vsel %vm676, %v723, %v725
        %s727 = scalar_lea.vmem [#allocation9], 4
        %v728 = vld [vmem:[%s727] sm:$0xf]
        %v729 = vsel %vm526, %v679, 0
        %v731 = vsel %vm526, %v681, 0
        %v733 = vsel %vm526, %v684, 0
        %v735 = vsel %vm526, %v686, 0
        %v737 = vsel %vm526, %v689, 0
        %v739 = vsel %vm526, %v691, 0
        %v741 = vsel %vm526, %v694, 0
        %v743 = vsel %vm526, %v696, 0
        %v745 = vsel %vm526, %v699, 0
        %v747 = vsel %vm526, %v701, 0
        %v749 = vsel %vm526, %v704, 0
        %v751 = vsel %vm526, %v706, 0
        %v753 = vsel %vm526, %v709, 0
        %v755 = vsel %vm526, %v711, 0
        %v757 = vsel %vm526, %v714, 0
        %v759 = vsel %vm526, %v716, 0
        %v761 = vsel %vm526, %v719, 0
        %v763 = vsel %vm526, %v721, 0
        %v765 = vsel %vm526, %v724, 0
        %v767 = vsel %vm526, %v726, 0
        %vm769 = vcmask 1043456
        %v771 = vsel %vm769, %v728, 0
        %773 = vmatprep.subr.mxu0 0.0
        %774 = vmatpush1.msra.mxu0 %v771
        %775 = vmatprep.subr.mxu0 0.0
        %776 = vmatpush1.msra.mxu0 0.0
        %777 = vmatprep.subr.mxu0 0.0
        %778 = vmatpush1.msra.mxu0 0.0
        %779 = vmatprep.subr.mxu0 0.0
        %780 = vmatpush1.msra.mxu0 0.0
        %781 = vmatprep.subr.mxu0 0.0
        %782 = vmatpush1.msra.mxu0 0.0
        %783 = vmatprep.subr.mxu0 0.0
        %784 = vmatpush1.msra.mxu0 0.0
        %785 = vmatprep.subr.mxu0 0.0
        %786 = vmatpush1.msra.mxu0 0.0
        %787 = vmatprep.subr.mxu0 0.0
        %788 = vmatpush1.msra.mxu0 0.0
        %789 = vmatprep.subr.mxu0 0.0
        %790 = vmatpush1.msra.mxu0 0.0
        %791 = vmatprep.subr.mxu0 0.0
        %792 = vmatpush1.msra.mxu0 0.0
        %793 = vmatprep.subr.mxu0 0.0
        %794 = vmatpush1.msra.mxu0 0.0
        %795 = vmatprep.subr.mxu0 0.0
        %796 = vmatpush1.msra.mxu0 0.0
        %797 = vmatprep.subr.mxu0 0.0
        %798 = vmatpush1.msra.mxu0 0.0
        %799 = vmatprep.subr.mxu0 0.0
        %800 = vmatpush1.msra.mxu0 0.0
        %801 = vmatprep.subr.mxu0 0.0
        %802 = vmatpush1.msra.mxu0 0.0
        %803 = vmatprep.subr.mxu0 0.0
        %804 = vmatpush1.msra.mxu0 0.0
        %805 = vmatprep.subr.mxu0 0.0
        %806 = vmatpush1.msra.mxu0 0.0
        %807 = vmatprep.subr.mxu0 0.0
        %808 = vmatpush1.msra.mxu0 0.0
        %809 = vmatprep.subr.mxu0 0.0
        %810 = vmatpush1.msra.mxu0 0.0
        %811 = vmatprep.subr.mxu0 0.0
        %812 = vmatpush1.msra.mxu0 0.0
        %813 = vmatprep.subr.mxu0 0.0
        %814 = vmatpush1.msra.mxu0 0.0
        %815 = vmatprep.subr.mxu0 0.0
        %816 = vmatpush1.msra.mxu0 0.0
        %817 = vmatprep.subr.mxu0 0.0
        %818 = vmatpush1.msra.mxu0 0.0
        %819 = vmatprep.subr.mxu0 0.0
        %820 = vmatpush1.msra.mxu0 0.0
        %821 = vmatprep.subr.mxu0 0.0
        %822 = vmatpush1.msra.mxu0 0.0
        %823 = vmatprep.subr.mxu0 0.0
        %824 = vmatpush1.msra.mxu0 0.0
        %825 = vmatprep.subr.mxu0 0.0
        %826 = vmatpush1.msra.mxu0 0.0
        %827 = vmatprep.subr.mxu0 0.0
        %828 = vmatpush1.msra.mxu0 0.0
        %829 = vmatprep.subr.mxu0 0.0
        %830 = vmatpush1.msra.mxu0 0.0
        %831 = vmatprep.subr.mxu0 0.0
        %832 = vmatpush1.msra.mxu0 0.0
        %833 = vmatprep.subr.mxu0 0.0
        %834 = vmatpush1.msra.mxu0 0.0
        %835 = vmatprep.subr.mxu0 0.0
        %836 = vmatpush1.msra.mxu0 0.0
        %837 = vmatprep.mubr.f32.mxu0 0.0
        %838 = vmatmul.mubr.f32.gmra.mrb[0].mxu0 %v729
        %v839 = vpop.f32.mrb[0].mxu0
        %v840 = vadd.f32 0.0, %v839
        %v841 = vpop.f32.mrb[0].mxu0
        %842 = vmatprep.mubr.f32.mxu0 0.0
        %843 = vmatmul.mubr.f32.gmra.mrb[0].mxu0 %v731
        %v844 = vpop.f32.mrb[0].mxu0
        %v845 = vadd.f32 0.0, %v844
        %v846 = vpop.f32.mrb[0].mxu0
        %847 = vmatprep.mubr.f32.mxu0 0.0
        %848 = vmatmul.mubr.f32.gmra.mrb[0].mxu0 %v733
        %v849 = vpop.f32.mrb[0].mxu0
        %v850 = vadd.f32 0.0, %v849
        %v851 = vpop.f32.mrb[0].mxu0
        %852 = vmatprep.mubr.f32.mxu0 0.0
        %853 = vmatmul.mubr.f32.gmra.mrb[0].mxu0 %v735
        %v854 = vpop.f32.mrb[0].mxu0
        %v855 = vadd.f32 0.0, %v854
        %v856 = vpop.f32.mrb[0].mxu0
        %857 = vmatprep.mubr.f32.mxu0 0.0
        %858 = vmatmul.mubr.f32.gmra.mrb[0].mxu0 %v737
        %v859 = vpop.f32.mrb[0].mxu0
        %v860 = vadd.f32 0.0, %v859
        %v861 = vpop.f32.mrb[0].mxu0
        %862 = vmatprep.mubr.f32.mxu0 0.0
        %863 = vmatmul.mubr.f32.gmra.mrb[0].mxu0 %v739
        %v864 = vpop.f32.mrb[0].mxu0
        %v865 = vadd.f32 0.0, %v864
        %v866 = vpop.f32.mrb[0].mxu0
        %867 = vmatprep.mubr.f32.mxu0 0.0
        %868 = vmatmul.mubr.f32.gmra.mrb[0].mxu0 %v741
        %v869 = vpop.f32.mrb[0].mxu0
        %v870 = vadd.f32 0.0, %v869
        %v871 = vpop.f32.mrb[0].mxu0
        %872 = vmatprep.mubr.f32.mxu0 0.0
        %873 = vmatmul.mubr.f32.gmra.mrb[0].mxu0 %v743
        %v874 = vpop.f32.mrb[0].mxu0
        %v875 = vadd.f32 0.0, %v874
        %v876 = vpop.f32.mrb[0].mxu0
        %877 = vmatprep.mubr.f32.mxu0 0.0
        %878 = vmatmul.mubr.f32.gmra.mrb[0].mxu0 %v745
        %v879 = vpop.f32.mrb[0].mxu0
        %v880 = vadd.f32 0.0, %v879
        %v881 = vpop.f32.mrb[0].mxu0
        %882 = vmatprep.mubr.f32.mxu0 0.0
        %883 = vmatmul.mubr.f32.gmra.mrb[0].mxu0 %v747
        %v884 = vpop.f32.mrb[0].mxu0
        %v885 = vadd.f32 0.0, %v884
        %v886 = vpop.f32.mrb[0].mxu0
        %887 = vmatprep.mubr.f32.mxu0 0.0
        %888 = vmatmul.mubr.f32.gmra.mrb[0].mxu0 %v749
        %v889 = vpop.f32.mrb[0].mxu0
        %v890 = vadd.f32 0.0, %v889
        %v891 = vpop.f32.mrb[0].mxu0
        %892 = vmatprep.mubr.f32.mxu0 0.0
        %893 = vmatmul.mubr.f32.gmra.mrb[0].mxu0 %v751
        %v894 = vpop.f32.mrb[0].mxu0
        %v895 = vadd.f32 0.0, %v894
        %v896 = vpop.f32.mrb[0].mxu0
        %897 = vmatprep.mubr.f32.mxu0 0.0
        %898 = vmatmul.mubr.f32.gmra.mrb[0].mxu0 %v753
        %v899 = vpop.f32.mrb[0].mxu0
        %v900 = vadd.f32 0.0, %v899
        %v901 = vpop.f32.mrb[0].mxu0
        %902 = vmatprep.mubr.f32.mxu0 0.0
        %903 = vmatmul.mubr.f32.gmra.mrb[0].mxu0 %v755
        %v904 = vpop.f32.mrb[0].mxu0
        %v905 = vadd.f32 0.0, %v904
        %v906 = vpop.f32.mrb[0].mxu0
        %907 = vmatprep.mubr.f32.mxu0 0.0
        %908 = vmatmul.mubr.f32.gmra.mrb[0].mxu0 %v757
        %v909 = vpop.f32.mrb[0].mxu0
        %v910 = vadd.f32 0.0, %v909
        %v911 = vpop.f32.mrb[0].mxu0
        %912 = vmatprep.mubr.f32.mxu0 0.0
        %913 = vmatmul.mubr.f32.gmra.mrb[0].mxu0 %v759
        %v914 = vpop.f32.mrb[0].mxu0
        %v915 = vadd.f32 0.0, %v914
        %v916 = vpop.f32.mrb[0].mxu0
        %917 = vmatprep.mubr.f32.mxu0 0.0
        %918 = vmatmul.mubr.f32.gmra.mrb[0].mxu0 %v761
        %v919 = vpop.f32.mrb[0].mxu0
        %v920 = vadd.f32 0.0, %v919
        %v921 = vpop.f32.mrb[0].mxu0
        %922 = vmatprep.mubr.f32.mxu0 0.0
        %923 = vmatmul.mubr.f32.gmra.mrb[0].mxu0 %v763
        %v924 = vpop.f32.mrb[0].mxu0
        %v925 = vadd.f32 0.0, %v924
        %v926 = vpop.f32.mrb[0].mxu0
        %927 = vmatprep.mubr.f32.mxu0 0.0
        %928 = vmatmul.mubr.f32.gmra.mrb[0].mxu0 %v765
        %v929 = vpop.f32.mrb[0].mxu0
        %v930 = vadd.f32 0.0, %v929
        %v931 = vpop.f32.mrb[0].mxu0
        %932 = vmatprep.mubr.f32.mxu0 0.0
        %933 = vmatmul.mubr.f32.gmra.mrb[0].mxu0 %v767
        %v934 = vpop.f32.mrb[0].mxu0
        %v935 = vadd.f32 0.0, %v934
        %v936 = vpop.f32.mrb[0].mxu0
        %937 = vdwg.mxu0
        %v938 = vsel %vm526, %v609, 0
        %v940 = vsel %vm526, %v610, 0
        %v942 = vsel %vm526, %v612, 0
        %v944 = vsel %vm526, %v613, 0
        %v946 = vsel %vm526, %v615, 0
        %v948 = vsel %vm526, %v616, 0
        %v950 = vsel %vm526, %v618, 0
        %v952 = vsel %vm526, %v619, 0
        %v954 = vsel %vm526, %v621, 0
        %v956 = vsel %vm526, %v622, 0
        %v958 = vsel %vm526, %v624, 0
        %v960 = vsel %vm526, %v625, 0
        %v962 = vsel %vm526, %v627, 0
        %v964 = vsel %vm526, %v628, 0
        %v966 = vsel %vm526, %v630, 0
        %v968 = vsel %vm526, %v631, 0
        %v970 = vsel %vm526, %v633, 0
        %v972 = vsel %vm526, %v634, 0
        %v974 = vsel %vm526, %v636, 0
        %v976 = vsel %vm526, %v637, 0
        %v979 = vsel %vm769, %v645, 0
        %981 = vmatprep.subr.mxu0 0.0
        %982 = vmatpush1.msra.mxu0 %v979
        %983 = vmatprep.subr.mxu0 0.0
        %984 = vmatpush1.msra.mxu0 0.0
        %985 = vmatprep.subr.mxu0 0.0
        %986 = vmatpush1.msra.mxu0 0.0
        %987 = vmatprep.subr.mxu0 0.0
        %988 = vmatpush1.msra.mxu0 0.0
        %989 = vmatprep.subr.mxu0 0.0
        %990 = vmatpush1.msra.mxu0 0.0
        %991 = vmatprep.subr.mxu0 0.0
        %992 = vmatpush1.msra.mxu0 0.0
        %993 = vmatprep.subr.mxu0 0.0
        %994 = vmatpush1.msra.mxu0 0.0
        %995 = vmatprep.subr.mxu0 0.0
        %996 = vmatpush1.msra.mxu0 0.0
        %997 = vmatprep.subr.mxu0 0.0
        %998 = vmatpush1.msra.mxu0 0.0
        %999 = vmatprep.subr.mxu0 0.0
        %1000 = vmatpush1.msra.mxu0 0.0
        %1001 = vmatprep.subr.mxu0 0.0
        %1002 = vmatpush1.msra.mxu0 0.0
        %1003 = vmatprep.subr.mxu0 0.0
        %1004 = vmatpush1.msra.mxu0 0.0
        %1005 = vmatprep.subr.mxu0 0.0
        %1006 = vmatpush1.msra.mxu0 0.0
        %1007 = vmatprep.subr.mxu0 0.0
        %1008 = vmatpush1.msra.mxu0 0.0
        %1009 = vmatprep.subr.mxu0 0.0
        %1010 = vmatpush1.msra.mxu0 0.0
        %1011 = vmatprep.subr.mxu0 0.0
        %1012 = vmatpush1.msra.mxu0 0.0
        %1013 = vmatprep.subr.mxu0 0.0
        %1014 = vmatpush1.msra.mxu0 0.0
        %1015 = vmatprep.subr.mxu0 0.0
        %1016 = vmatpush1.msra.mxu0 0.0
        %1017 = vmatprep.subr.mxu0 0.0
        %1018 = vmatpush1.msra.mxu0 0.0
        %1019 = vmatprep.subr.mxu0 0.0
        %1020 = vmatpush1.msra.mxu0 0.0
        %1021 = vmatprep.subr.mxu0 0.0
        %1022 = vmatpush1.msra.mxu0 0.0
        %1023 = vmatprep.subr.mxu0 0.0
        %1024 = vmatpush1.msra.mxu0 0.0
        %1025 = vmatprep.subr.mxu0 0.0
        %1026 = vmatpush1.msra.mxu0 0.0
        %1027 = vmatprep.subr.mxu0 0.0
        %1028 = vmatpush1.msra.mxu0 0.0
        %1029 = vmatprep.subr.mxu0 0.0
        %1030 = vmatpush1.msra.mxu0 0.0
        %1031 = vmatprep.subr.mxu0 0.0
        %1032 = vmatpush1.msra.mxu0 0.0
        %1033 = vmatprep.subr.mxu0 0.0
        %1034 = vmatpush1.msra.mxu0 0.0
        %1035 = vmatprep.subr.mxu0 0.0
        %1036 = vmatpush1.msra.mxu0 0.0
        %1037 = vmatprep.subr.mxu0 0.0
        %1038 = vmatpush1.msra.mxu0 0.0
        %1039 = vmatprep.subr.mxu0 0.0
        %1040 = vmatpush1.msra.mxu0 0.0
        %1041 = vmatprep.subr.mxu0 0.0
        %1042 = vmatpush1.msra.mxu0 0.0
        %1043 = vmatprep.subr.mxu0 0.0
        %1044 = vmatpush1.msra.mxu0 0.0
        %1045 = vmatprep.mubr.f32.mxu0 0.0
        %1046 = vmatmul.mubr.f32.gmra.mrb[0].mxu0 %v938
        %v1047 = vpop.f32.mrb[0].mxu0
        %v1048 = vadd.f32 %v840, %v1047
        %v1049 = vpop.f32.mrb[0].mxu0
        %1050 = vmatprep.mubr.f32.mxu0 0.0
        %1051 = vmatmul.mubr.f32.gmra.mrb[0].mxu0 %v940
        %v1052 = vpop.f32.mrb[0].mxu0
        %v1053 = vadd.f32 %v845, %v1052
        %v1054 = vpop.f32.mrb[0].mxu0
        %1055 = vmatprep.mubr.f32.mxu0 0.0
        %1056 = vmatmul.mubr.f32.gmra.mrb[0].mxu0 %v942
        %v1057 = vpop.f32.mrb[0].mxu0
        %v1058 = vadd.f32 %v850, %v1057
        %v1059 = vpop.f32.mrb[0].mxu0
        %1060 = vmatprep.mubr.f32.mxu0 0.0
        %1061 = vmatmul.mubr.f32.gmra.mrb[0].mxu0 %v944
        %v1062 = vpop.f32.mrb[0].mxu0
        %v1063 = vadd.f32 %v855, %v1062
        %v1064 = vpop.f32.mrb[0].mxu0
        %1065 = vmatprep.mubr.f32.mxu0 0.0
        %1066 = vmatmul.mubr.f32.gmra.mrb[0].mxu0 %v946
        %v1067 = vpop.f32.mrb[0].mxu0
        %v1068 = vadd.f32 %v860, %v1067
        %v1069 = vpop.f32.mrb[0].mxu0
        %1070 = vmatprep.mubr.f32.mxu0 0.0
        %1071 = vmatmul.mubr.f32.gmra.mrb[0].mxu0 %v948
        %v1072 = vpop.f32.mrb[0].mxu0
        %v1073 = vadd.f32 %v865, %v1072
        %v1074 = vpop.f32.mrb[0].mxu0
        %1075 = vmatprep.mubr.f32.mxu0 0.0
        %1076 = vmatmul.mubr.f32.gmra.mrb[0].mxu0 %v950
        %v1077 = vpop.f32.mrb[0].mxu0
        %v1078 = vadd.f32 %v870, %v1077
        %v1079 = vpop.f32.mrb[0].mxu0
        %1080 = vmatprep.mubr.f32.mxu0 0.0
        %1081 = vmatmul.mubr.f32.gmra.mrb[0].mxu0 %v952
        %v1082 = vpop.f32.mrb[0].mxu0
        %v1083 = vadd.f32 %v875, %v1082
        %v1084 = vpop.f32.mrb[0].mxu0
        %1085 = vmatprep.mubr.f32.mxu0 0.0
        %1086 = vmatmul.mubr.f32.gmra.mrb[0].mxu0 %v954
        %v1087 = vpop.f32.mrb[0].mxu0
        %v1088 = vadd.f32 %v880, %v1087
        %v1089 = vpop.f32.mrb[0].mxu0
        %1090 = vmatprep.mubr.f32.mxu0 0.0
        %1091 = vmatmul.mubr.f32.gmra.mrb[0].mxu0 %v956
        %v1092 = vpop.f32.mrb[0].mxu0
        %v1093 = vadd.f32 %v885, %v1092
        %v1094 = vpop.f32.mrb[0].mxu0
        %1095 = vmatprep.mubr.f32.mxu0 0.0
        %1096 = vmatmul.mubr.f32.gmra.mrb[0].mxu0 %v958
        %v1097 = vpop.f32.mrb[0].mxu0
        %v1098 = vadd.f32 %v890, %v1097
        %v1099 = vpop.f32.mrb[0].mxu0
        %1100 = vmatprep.mubr.f32.mxu0 0.0
        %1101 = vmatmul.mubr.f32.gmra.mrb[0].mxu0 %v960
        %v1102 = vpop.f32.mrb[0].mxu0
        %v1103 = vadd.f32 %v895, %v1102
        %v1104 = vpop.f32.mrb[0].mxu0
        %1105 = vmatprep.mubr.f32.mxu0 0.0
        %1106 = vmatmul.mubr.f32.gmra.mrb[0].mxu0 %v962
        %v1107 = vpop.f32.mrb[0].mxu0
        %v1108 = vadd.f32 %v900, %v1107
        %v1109 = vpop.f32.mrb[0].mxu0
        %1110 = vmatprep.mubr.f32.mxu0 0.0
        %1111 = vmatmul.mubr.f32.gmra.mrb[0].mxu0 %v964
        %v1112 = vpop.f32.mrb[0].mxu0
        %v1113 = vadd.f32 %v905, %v1112
        %v1114 = vpop.f32.mrb[0].mxu0
        %1115 = vmatprep.mubr.f32.mxu0 0.0
        %1116 = vmatmul.mubr.f32.gmra.mrb[0].mxu0 %v966
        %v1117 = vpop.f32.mrb[0].mxu0
        %v1118 = vadd.f32 %v910, %v1117
        %v1119 = vpop.f32.mrb[0].mxu0
        %1120 = vmatprep.mubr.f32.mxu0 0.0
        %1121 = vmatmul.mubr.f32.gmra.mrb[0].mxu0 %v968
        %v1122 = vpop.f32.mrb[0].mxu0
        %v1123 = vadd.f32 %v915, %v1122
        %v1124 = vpop.f32.mrb[0].mxu0
        %1125 = vmatprep.mubr.f32.mxu0 0.0
        %1126 = vmatmul.mubr.f32.gmra.mrb[0].mxu0 %v970
        %v1127 = vpop.f32.mrb[0].mxu0
        %v1128 = vadd.f32 %v920, %v1127
        %v1129 = vpop.f32.mrb[0].mxu0
        %1130 = vmatprep.mubr.f32.mxu0 0.0
        %1131 = vmatmul.mubr.f32.gmra.mrb[0].mxu0 %v972
        %v1132 = vpop.f32.mrb[0].mxu0
        %v1133 = vadd.f32 %v925, %v1132
        %v1134 = vpop.f32.mrb[0].mxu0
        %1135 = vmatprep.mubr.f32.mxu0 0.0
        %1136 = vmatmul.mubr.f32.gmra.mrb[0].mxu0 %v974
        %v1137 = vpop.f32.mrb[0].mxu0
        %v1138 = vadd.f32 %v930, %v1137
        %v1139 = vpop.f32.mrb[0].mxu0
        %1140 = vmatprep.mubr.f32.mxu0 0.0
        %1141 = vmatmul.mubr.f32.gmra.mrb[0].mxu0 %v976
        %v1142 = vpop.f32.mrb[0].mxu0
        %v1143 = vadd.f32 %v935, %v1142
        %v1144 = vpop.f32.mrb[0].mxu0
        %1145 = vdwg.mxu0
        %vm1146 = vcmask 1045504
        %v1147 = vrot.slane %v609, 2
        %v1148 = vrot.slane %v610, 2
        %v1149 = vsel %vm1146, %v1147, %v1148
        %v1150 = vrot.slane %v611, 2
        %v1151 = vsel %vm1146, %v1148, %v1150
        %v1152 = vrot.slane %v612, 2
        %v1153 = vrot.slane %v613, 2
        %v1154 = vsel %vm1146, %v1152, %v1153
        %v1155 = vrot.slane %v614, 2
        %v1156 = vsel %vm1146, %v1153, %v1155
        %v1157 = vrot.slane %v615, 2
        %v1158 = vrot.slane %v616, 2
        %v1159 = vsel %vm1146, %v1157, %v1158
        %v1160 = vrot.slane %v617, 2
        %v1161 = vsel %vm1146, %v1158, %v1160
        %v1162 = vrot.slane %v618, 2
        %v1163 = vrot.slane %v619, 2
        %v1164 = vsel %vm1146, %v1162, %v1163
        %v1165 = vrot.slane %v620, 2
        %v1166 = vsel %vm1146, %v1163, %v1165
        %v1167 = vrot.slane %v621, 2
        %v1168 = vrot.slane %v622, 2
        %v1169 = vsel %vm1146, %v1167, %v1168
        %v1170 = vrot.slane %v623, 2
        %v1171 = vsel %vm1146, %v1168, %v1170
        %v1172 = vrot.slane %v624, 2
        %v1173 = vrot.slane %v625, 2
        %v1174 = vsel %vm1146, %v1172, %v1173
        %v1175 = vrot.slane %v626, 2
        %v1176 = vsel %vm1146, %v1173, %v1175
        %v1177 = vrot.slane %v627, 2
        %v1178 = vrot.slane %v628, 2
        %v1179 = vsel %vm1146, %v1177, %v1178
        %v1180 = vrot.slane %v629, 2
        %v1181 = vsel %vm1146, %v1178, %v1180
        %v1182 = vrot.slane %v630, 2
        %v1183 = vrot.slane %v631, 2
        %v1184 = vsel %vm1146, %v1182, %v1183
        %v1185 = vrot.slane %v632, 2
        %v1186 = vsel %vm1146, %v1183, %v1185
        %v1187 = vrot.slane %v633, 2
        %v1188 = vrot.slane %v634, 2
        %v1189 = vsel %vm1146, %v1187, %v1188
        %v1190 = vrot.slane %v635, 2
        %v1191 = vsel %vm1146, %v1188, %v1190
        %v1192 = vrot.slane %v636, 2
        %v1193 = vrot.slane %v637, 2
        %v1194 = vsel %vm1146, %v1192, %v1193
        %v1195 = vrot.slane %v638, 2
        %v1196 = vsel %vm1146, %v1193, %v1195
        %s1197 = scalar_lea.vmem [#allocation9], 8
        %v1198 = vld [vmem:[%s1197] sm:$0xf]
        %v1199 = vsel %vm526, %v1149, 0
        %v1201 = vsel %vm526, %v1151, 0
        %v1203 = vsel %vm526, %v1154, 0
        %v1205 = vsel %vm526, %v1156, 0
        %v1207 = vsel %vm526, %v1159, 0
        %v1209 = vsel %vm526, %v1161, 0
        %v1211 = vsel %vm526, %v1164, 0
        %v1213 = vsel %vm526, %v1166, 0
        %v1215 = vsel %vm526, %v1169, 0
        %v1217 = vsel %vm526, %v1171, 0
        %v1219 = vsel %vm526, %v1174, 0
        %v1221 = vsel %vm526, %v1176, 0
        %v1223 = vsel %vm526, %v1179, 0
        %v1225 = vsel %vm526, %v1181, 0
        %v1227 = vsel %vm526, %v1184, 0
        %v1229 = vsel %vm526, %v1186, 0
        %v1231 = vsel %vm526, %v1189, 0
        %v1233 = vsel %vm526, %v1191, 0
        %v1235 = vsel %vm526, %v1194, 0
        %v1237 = vsel %vm526, %v1196, 0
        %v1240 = vsel %vm769, %v1198, 0
        %1242 = vmatprep.subr.mxu0 0.0
        %1243 = vmatpush1.msra.mxu0 %v1240
        %1244 = vmatprep.subr.mxu0 0.0
        %1245 = vmatpush1.msra.mxu0 0.0
        %1246 = vmatprep.subr.mxu0 0.0
        %1247 = vmatpush1.msra.mxu0 0.0
        %1248 = vmatprep.subr.mxu0 0.0
        %1249 = vmatpush1.msra.mxu0 0.0
        %1250 = vmatprep.subr.mxu0 0.0
        %1251 = vmatpush1.msra.mxu0 0.0
        %1252 = vmatprep.subr.mxu0 0.0
        %1253 = vmatpush1.msra.mxu0 0.0
        %1254 = vmatprep.subr.mxu0 0.0
        %1255 = vmatpush1.msra.mxu0 0.0
        %1256 = vmatprep.subr.mxu0 0.0
        %1257 = vmatpush1.msra.mxu0 0.0
        %1258 = vmatprep.subr.mxu0 0.0
        %1259 = vmatpush1.msra.mxu0 0.0
        %1260 = vmatprep.subr.mxu0 0.0
        %1261 = vmatpush1.msra.mxu0 0.0
        %1262 = vmatprep.subr.mxu0 0.0
        %1263 = vmatpush1.msra.mxu0 0.0
        %1264 = vmatprep.subr.mxu0 0.0
        %1265 = vmatpush1.msra.mxu0 0.0
        %1266 = vmatprep.subr.mxu0 0.0
        %1267 = vmatpush1.msra.mxu0 0.0
        %1268 = vmatprep.subr.mxu0 0.0
        %1269 = vmatpush1.msra.mxu0 0.0
        %1270 = vmatprep.subr.mxu0 0.0
        %1271 = vmatpush1.msra.mxu0 0.0
        %1272 = vmatprep.subr.mxu0 0.0
        %1273 = vmatpush1.msra.mxu0 0.0
        %1274 = vmatprep.subr.mxu0 0.0
        %1275 = vmatpush1.msra.mxu0 0.0
        %1276 = vmatprep.subr.mxu0 0.0
        %1277 = vmatpush1.msra.mxu0 0.0
        %1278 = vmatprep.subr.mxu0 0.0
        %1279 = vmatpush1.msra.mxu0 0.0
        %1280 = vmatprep.subr.mxu0 0.0
        %1281 = vmatpush1.msra.mxu0 0.0
        %1282 = vmatprep.subr.mxu0 0.0
        %1283 = vmatpush1.msra.mxu0 0.0
        %1284 = vmatprep.subr.mxu0 0.0
        %1285 = vmatpush1.msra.mxu0 0.0
        %1286 = vmatprep.subr.mxu0 0.0
        %1287 = vmatpush1.msra.mxu0 0.0
        %1288 = vmatprep.subr.mxu0 0.0
        %1289 = vmatpush1.msra.mxu0 0.0
        %1290 = vmatprep.subr.mxu0 0.0
        %1291 = vmatpush1.msra.mxu0 0.0
        %1292 = vmatprep.subr.mxu0 0.0
        %1293 = vmatpush1.msra.mxu0 0.0
        %1294 = vmatprep.subr.mxu0 0.0
        %1295 = vmatpush1.msra.mxu0 0.0
        %1296 = vmatprep.subr.mxu0 0.0
        %1297 = vmatpush1.msra.mxu0 0.0
        %1298 = vmatprep.subr.mxu0 0.0
        %1299 = vmatpush1.msra.mxu0 0.0
        %1300 = vmatprep.subr.mxu0 0.0
        %1301 = vmatpush1.msra.mxu0 0.0
        %1302 = vmatprep.subr.mxu0 0.0
        %1303 = vmatpush1.msra.mxu0 0.0
        %1304 = vmatprep.subr.mxu0 0.0
        %1305 = vmatpush1.msra.mxu0 0.0
        %1306 = vmatprep.mubr.f32.mxu0 0.0
        %1307 = vmatmul.mubr.f32.gmra.mrb[0].mxu0 %v1199
        %v1308 = vpop.f32.mrb[0].mxu0
        %v1309 = vadd.f32 0.0, %v1308
        %v1310 = vpop.f32.mrb[0].mxu0
        %1311 = vmatprep.mubr.f32.mxu0 0.0
        %1312 = vmatmul.mubr.f32.gmra.mrb[0].mxu0 %v1201
        %v1313 = vpop.f32.mrb[0].mxu0
        %v1314 = vadd.f32 0.0, %v1313
        %v1315 = vpop.f32.mrb[0].mxu0
        %1316 = vmatprep.mubr.f32.mxu0 0.0
        %1317 = vmatmul.mubr.f32.gmra.mrb[0].mxu0 %v1203
        %v1318 = vpop.f32.mrb[0].mxu0
        %v1319 = vadd.f32 0.0, %v1318
        %v1320 = vpop.f32.mrb[0].mxu0
        %1321 = vmatprep.mubr.f32.mxu0 0.0
        %1322 = vmatmul.mubr.f32.gmra.mrb[0].mxu0 %v1205
        %v1323 = vpop.f32.mrb[0].mxu0
        %v1324 = vadd.f32 0.0, %v1323
        %v1325 = vpop.f32.mrb[0].mxu0
        %1326 = vmatprep.mubr.f32.mxu0 0.0
        %1327 = vmatmul.mubr.f32.gmra.mrb[0].mxu0 %v1207
        %v1328 = vpop.f32.mrb[0].mxu0
        %v1329 = vadd.f32 0.0, %v1328
        %v1330 = vpop.f32.mrb[0].mxu0
        %1331 = vmatprep.mubr.f32.mxu0 0.0
        %1332 = vmatmul.mubr.f32.gmra.mrb[0].mxu0 %v1209
        %v1333 = vpop.f32.mrb[0].mxu0
        %v1334 = vadd.f32 0.0, %v1333
        %v1335 = vpop.f32.mrb[0].mxu0
        %1336 = vmatprep.mubr.f32.mxu0 0.0
        %1337 = vmatmul.mubr.f32.gmra.mrb[0].mxu0 %v1211
        %v1338 = vpop.f32.mrb[0].mxu0
        %v1339 = vadd.f32 0.0, %v1338
        %v1340 = vpop.f32.mrb[0].mxu0
        %1341 = vmatprep.mubr.f32.mxu0 0.0
        %1342 = vmatmul.mubr.f32.gmra.mrb[0].mxu0 %v1213
        %v1343 = vpop.f32.mrb[0].mxu0
        %v1344 = vadd.f32 0.0, %v1343
        %v1345 = vpop.f32.mrb[0].mxu0
        %1346 = vmatprep.mubr.f32.mxu0 0.0
        %1347 = vmatmul.mubr.f32.gmra.mrb[0].mxu0 %v1215
        %v1348 = vpop.f32.mrb[0].mxu0
        %v1349 = vadd.f32 0.0, %v1348
        %v1350 = vpop.f32.mrb[0].mxu0
        %1351 = vmatprep.mubr.f32.mxu0 0.0
        %1352 = vmatmul.mubr.f32.gmra.mrb[0].mxu0 %v1217
        %v1353 = vpop.f32.mrb[0].mxu0
        %v1354 = vadd.f32 0.0, %v1353
        %v1355 = vpop.f32.mrb[0].mxu0
        %1356 = vmatprep.mubr.f32.mxu0 0.0
        %1357 = vmatmul.mubr.f32.gmra.mrb[0].mxu0 %v1219
        %v1358 = vpop.f32.mrb[0].mxu0
        %v1359 = vadd.f32 0.0, %v1358
        %v1360 = vpop.f32.mrb[0].mxu0
        %1361 = vmatprep.mubr.f32.mxu0 0.0
        %1362 = vmatmul.mubr.f32.gmra.mrb[0].mxu0 %v1221
        %v1363 = vpop.f32.mrb[0].mxu0
        %v1364 = vadd.f32 0.0, %v1363
        %v1365 = vpop.f32.mrb[0].mxu0
        %1366 = vmatprep.mubr.f32.mxu0 0.0
        %1367 = vmatmul.mubr.f32.gmra.mrb[0].mxu0 %v1223
        %v1368 = vpop.f32.mrb[0].mxu0
        %v1369 = vadd.f32 0.0, %v1368
        %v1370 = vpop.f32.mrb[0].mxu0
        %1371 = vmatprep.mubr.f32.mxu0 0.0
        %1372 = vmatmul.mubr.f32.gmra.mrb[0].mxu0 %v1225
        %v1373 = vpop.f32.mrb[0].mxu0
        %v1374 = vadd.f32 0.0, %v1373
        %v1375 = vpop.f32.mrb[0].mxu0
        %1376 = vmatprep.mubr.f32.mxu0 0.0
        %1377 = vmatmul.mubr.f32.gmra.mrb[0].mxu0 %v1227
        %v1378 = vpop.f32.mrb[0].mxu0
        %v1379 = vadd.f32 0.0, %v1378
        %v1380 = vpop.f32.mrb[0].mxu0
        %1381 = vmatprep.mubr.f32.mxu0 0.0
        %1382 = vmatmul.mubr.f32.gmra.mrb[0].mxu0 %v1229
        %v1383 = vpop.f32.mrb[0].mxu0
        %v1384 = vadd.f32 0.0, %v1383
        %v1385 = vpop.f32.mrb[0].mxu0
        %1386 = vmatprep.mubr.f32.mxu0 0.0
        %1387 = vmatmul.mubr.f32.gmra.mrb[0].mxu0 %v1231
        %v1388 = vpop.f32.mrb[0].mxu0
        %v1389 = vadd.f32 0.0, %v1388
        %v1390 = vpop.f32.mrb[0].mxu0
        %1391 = vmatprep.mubr.f32.mxu0 0.0
        %1392 = vmatmul.mubr.f32.gmra.mrb[0].mxu0 %v1233
        %v1393 = vpop.f32.mrb[0].mxu0
        %v1394 = vadd.f32 0.0, %v1393
        %v1395 = vpop.f32.mrb[0].mxu0
        %1396 = vmatprep.mubr.f32.mxu0 0.0
        %1397 = vmatmul.mubr.f32.gmra.mrb[0].mxu0 %v1235
        %v1398 = vpop.f32.mrb[0].mxu0
        %v1399 = vadd.f32 0.0, %v1398
        %v1400 = vpop.f32.mrb[0].mxu0
        %1401 = vmatprep.mubr.f32.mxu0 0.0
        %1402 = vmatmul.mubr.f32.gmra.mrb[0].mxu0 %v1237
        %v1403 = vpop.f32.mrb[0].mxu0
        %v1404 = vadd.f32 0.0, %v1403
        %v1405 = vpop.f32.mrb[0].mxu0
        %1406 = vdwg.mxu0
        %v1407 = vadd.f32 %v1048, %v1309
        %v1408 = vadd.f32 %v1053, %v1314
        %v1409 = vadd.f32 %v1058, %v1319
        %v1410 = vadd.f32 %v1063, %v1324
        %v1411 = vadd.f32 %v1068, %v1329
        %v1412 = vadd.f32 %v1073, %v1334
        %v1413 = vadd.f32 %v1078, %v1339
        %v1414 = vadd.f32 %v1083, %v1344
        %v1415 = vadd.f32 %v1088, %v1349
        %v1416 = vadd.f32 %v1093, %v1354
        %v1417 = vadd.f32 %v1098, %v1359
        %v1418 = vadd.f32 %v1103, %v1364
        %v1419 = vadd.f32 %v1108, %v1369
        %v1420 = vadd.f32 %v1113, %v1374
        %v1421 = vadd.f32 %v1118, %v1379
        %v1422 = vadd.f32 %v1123, %v1384
        %v1423 = vadd.f32 %v1128, %v1389
        %v1424 = vadd.f32 %v1133, %v1394
        %v1425 = vadd.f32 %v1138, %v1399
        %v1426 = vadd.f32 %v1143, %v1404
        %s1427 = scalar_lea.vmem [#allocation9], 12
        %v1428 = vld [vmem:[%s1427] sm:$0xf]
        %v1430 = vsel %vm526, %v639, 0
        %v1433 = vsel %vm526, %v640, 0
        %v1436 = vsel %vm769, %v1428, 0
        %1438 = vmatprep.subr.mxu0 0.0
        %1439 = vmatpush1.msra.mxu0 %v1436
        %1440 = vmatprep.subr.mxu0 0.0
        %1441 = vmatpush1.msra.mxu0 0.0
        %1442 = vmatprep.subr.mxu0 0.0
        %1443 = vmatpush1.msra.mxu0 0.0
        %1444 = vmatprep.subr.mxu0 0.0
        %1445 = vmatpush1.msra.mxu0 0.0
        %1446 = vmatprep.subr.mxu0 0.0
        %1447 = vmatpush1.msra.mxu0 0.0
        %1448 = vmatprep.subr.mxu0 0.0
        %1449 = vmatpush1.msra.mxu0 0.0
        %1450 = vmatprep.subr.mxu0 0.0
        %1451 = vmatpush1.msra.mxu0 0.0
        %1452 = vmatprep.subr.mxu0 0.0
        %1453 = vmatpush1.msra.mxu0 0.0
        %1454 = vmatprep.subr.mxu0 0.0
        %1455 = vmatpush1.msra.mxu0 0.0
        %1456 = vmatprep.subr.mxu0 0.0
        %1457 = vmatpush1.msra.mxu0 0.0
        %1458 = vmatprep.subr.mxu0 0.0
        %1459 = vmatpush1.msra.mxu0 0.0
        %1460 = vmatprep.subr.mxu0 0.0
        %1461 = vmatpush1.msra.mxu0 0.0
        %1462 = vmatprep.subr.mxu0 0.0
        %1463 = vmatpush1.msra.mxu0 0.0
        %1464 = vmatprep.subr.mxu0 0.0
        %1465 = vmatpush1.msra.mxu0 0.0
        %1466 = vmatprep.subr.mxu0 0.0
        %1467 = vmatpush1.msra.mxu0 0.0
        %1468 = vmatprep.subr.mxu0 0.0
        %1469 = vmatpush1.msra.mxu0 0.0
        %1470 = vmatprep.subr.mxu0 0.0
        %1471 = vmatpush1.msra.mxu0 0.0
        %1472 = vmatprep.subr.mxu0 0.0
        %1473 = vmatpush1.msra.mxu0 0.0
        %1474 = vmatprep.subr.mxu0 0.0
        %1475 = vmatpush1.msra.mxu0 0.0
        %1476 = vmatprep.subr.mxu0 0.0
        %1477 = vmatpush1.msra.mxu0 0.0
        %1478 = vmatprep.subr.mxu0 0.0
        %1479 = vmatpush1.msra.mxu0 0.0
        %1480 = vmatprep.subr.mxu0 0.0
        %1481 = vmatpush1.msra.mxu0 0.0
        %1482 = vmatprep.subr.mxu0 0.0
        %1483 = vmatpush1.msra.mxu0 0.0
        %1484 = vmatprep.subr.mxu0 0.0
        %1485 = vmatpush1.msra.mxu0 0.0
        %1486 = vmatprep.subr.mxu0 0.0
        %1487 = vmatpush1.msra.mxu0 0.0
        %1488 = vmatprep.subr.mxu0 0.0
        %1489 = vmatpush1.msra.mxu0 0.0
        %1490 = vmatprep.subr.mxu0 0.0
        %1491 = vmatpush1.msra.mxu0 0.0
        %1492 = vmatprep.subr.mxu0 0.0
        %1493 = vmatpush1.msra.mxu0 0.0
        %1494 = vmatprep.subr.mxu0 0.0
        %1495 = vmatpush1.msra.mxu0 0.0
        %1496 = vmatprep.subr.mxu0 0.0
        %1497 = vmatpush1.msra.mxu0 0.0
        %1498 = vmatprep.subr.mxu0 0.0
        %1499 = vmatpush1.msra.mxu0 0.0
        %1500 = vmatprep.subr.mxu0 0.0
        %1501 = vmatpush1.msra.mxu0 0.0
        %1502 = vmatprep.mubr.f32.mxu0 0.0
        %1503 = vmatmul.mubr.f32.gmra.mrb[0].mxu0 %v942
        %v1504 = vpop.f32.mrb[0].mxu0
        %v1505 = vadd.f32 0.0, %v1504
        %v1506 = vpop.f32.mrb[0].mxu0
        %1507 = vmatprep.mubr.f32.mxu0 0.0
        %1508 = vmatmul.mubr.f32.gmra.mrb[0].mxu0 %v944
        %v1509 = vpop.f32.mrb[0].mxu0
        %v1510 = vadd.f32 0.0, %v1509
        %v1511 = vpop.f32.mrb[0].mxu0
        %1512 = vmatprep.mubr.f32.mxu0 0.0
        %1513 = vmatmul.mubr.f32.gmra.mrb[0].mxu0 %v946
        %v1514 = vpop.f32.mrb[0].mxu0
        %v1515 = vadd.f32 0.0, %v1514
        %v1516 = vpop.f32.mrb[0].mxu0
        %1517 = vmatprep.mubr.f32.mxu0 0.0
        %1518 = vmatmul.mubr.f32.gmra.mrb[0].mxu0 %v948
        %v1519 = vpop.f32.mrb[0].mxu0
        %v1520 = vadd.f32 0.0, %v1519
        %v1521 = vpop.f32.mrb[0].mxu0
        %1522 = vmatprep.mubr.f32.mxu0 0.0
        %1523 = vmatmul.mubr.f32.gmra.mrb[0].mxu0 %v950
        %v1524 = vpop.f32.mrb[0].mxu0
        %v1525 = vadd.f32 0.0, %v1524
        %v1526 = vpop.f32.mrb[0].mxu0
        %1527 = vmatprep.mubr.f32.mxu0 0.0
        %1528 = vmatmul.mubr.f32.gmra.mrb[0].mxu0 %v952
        %v1529 = vpop.f32.mrb[0].mxu0
        %v1530 = vadd.f32 0.0, %v1529
        %v1531 = vpop.f32.mrb[0].mxu0
        %1532 = vmatprep.mubr.f32.mxu0 0.0
        %1533 = vmatmul.mubr.f32.gmra.mrb[0].mxu0 %v954
        %v1534 = vpop.f32.mrb[0].mxu0
        %v1535 = vadd.f32 0.0, %v1534
        %v1536 = vpop.f32.mrb[0].mxu0
        %1537 = vmatprep.mubr.f32.mxu0 0.0
        %1538 = vmatmul.mubr.f32.gmra.mrb[0].mxu0 %v956
        %v1539 = vpop.f32.mrb[0].mxu0
        %v1540 = vadd.f32 0.0, %v1539
        %v1541 = vpop.f32.mrb[0].mxu0
        %1542 = vmatprep.mubr.f32.mxu0 0.0
        %1543 = vmatmul.mubr.f32.gmra.mrb[0].mxu0 %v958
        %v1544 = vpop.f32.mrb[0].mxu0
        %v1545 = vadd.f32 0.0, %v1544
        %v1546 = vpop.f32.mrb[0].mxu0
        %1547 = vmatprep.mubr.f32.mxu0 0.0
        %1548 = vmatmul.mubr.f32.gmra.mrb[0].mxu0 %v960
        %v1549 = vpop.f32.mrb[0].mxu0
        %v1550 = vadd.f32 0.0, %v1549
        %v1551 = vpop.f32.mrb[0].mxu0
        %1552 = vmatprep.mubr.f32.mxu0 0.0
        %1553 = vmatmul.mubr.f32.gmra.mrb[0].mxu0 %v962
        %v1554 = vpop.f32.mrb[0].mxu0
        %v1555 = vadd.f32 0.0, %v1554
        %v1556 = vpop.f32.mrb[0].mxu0
        %1557 = vmatprep.mubr.f32.mxu0 0.0
        %1558 = vmatmul.mubr.f32.gmra.mrb[0].mxu0 %v964
        %v1559 = vpop.f32.mrb[0].mxu0
        %v1560 = vadd.f32 0.0, %v1559
        %v1561 = vpop.f32.mrb[0].mxu0
        %1562 = vmatprep.mubr.f32.mxu0 0.0
        %1563 = vmatmul.mubr.f32.gmra.mrb[0].mxu0 %v966
        %v1564 = vpop.f32.mrb[0].mxu0
        %v1565 = vadd.f32 0.0, %v1564
        %v1566 = vpop.f32.mrb[0].mxu0
        %1567 = vmatprep.mubr.f32.mxu0 0.0
        %1568 = vmatmul.mubr.f32.gmra.mrb[0].mxu0 %v968
        %v1569 = vpop.f32.mrb[0].mxu0
        %v1570 = vadd.f32 0.0, %v1569
        %v1571 = vpop.f32.mrb[0].mxu0
        %1572 = vmatprep.mubr.f32.mxu0 0.0
        %1573 = vmatmul.mubr.f32.gmra.mrb[0].mxu0 %v970
        %v1574 = vpop.f32.mrb[0].mxu0
        %v1575 = vadd.f32 0.0, %v1574
        %v1576 = vpop.f32.mrb[0].mxu0
        %1577 = vmatprep.mubr.f32.mxu0 0.0
        %1578 = vmatmul.mubr.f32.gmra.mrb[0].mxu0 %v972
        %v1579 = vpop.f32.mrb[0].mxu0
        %v1580 = vadd.f32 0.0, %v1579
        %v1581 = vpop.f32.mrb[0].mxu0
        %1582 = vmatprep.mubr.f32.mxu0 0.0
        %1583 = vmatmul.mubr.f32.gmra.mrb[0].mxu0 %v974
        %v1584 = vpop.f32.mrb[0].mxu0
        %v1585 = vadd.f32 0.0, %v1584
        %v1586 = vpop.f32.mrb[0].mxu0
        %1587 = vmatprep.mubr.f32.mxu0 0.0
        %1588 = vmatmul.mubr.f32.gmra.mrb[0].mxu0 %v976
        %v1589 = vpop.f32.mrb[0].mxu0
        %v1590 = vadd.f32 0.0, %v1589
        %v1591 = vpop.f32.mrb[0].mxu0
        %1592 = vmatprep.mubr.f32.mxu0 0.0
        %1593 = vmatmul.mubr.f32.gmra.mrb[0].mxu0 %v1430
        %v1594 = vpop.f32.mrb[0].mxu0
        %v1595 = vadd.f32 0.0, %v1594
        %v1596 = vpop.f32.mrb[0].mxu0
        %1597 = vmatprep.mubr.f32.mxu0 0.0
        %1598 = vmatmul.mubr.f32.gmra.mrb[0].mxu0 %v1433
        %v1599 = vpop.f32.mrb[0].mxu0
        %v1600 = vadd.f32 0.0, %v1599
        %v1601 = vpop.f32.mrb[0].mxu0
        %1602 = vdwg.mxu0
        %v1603 = vadd.f32 %v1407, %v1505
        %v1604 = vadd.f32 %v1408, %v1510
        %v1605 = vadd.f32 %v1409, %v1515
        %v1606 = vadd.f32 %v1410, %v1520
        %v1607 = vadd.f32 %v1411, %v1525
        %v1608 = vadd.f32 %v1412, %v1530
        %v1609 = vadd.f32 %v1413, %v1535
        %v1610 = vadd.f32 %v1414, %v1540
        %v1611 = vadd.f32 %v1415, %v1545
        %v1612 = vadd.f32 %v1416, %v1550
        %v1613 = vadd.f32 %v1417, %v1555
        %v1614 = vadd.f32 %v1418, %v1560
        %v1615 = vadd.f32 %v1419, %v1565
        %v1616 = vadd.f32 %v1420, %v1570
        %v1617 = vadd.f32 %v1421, %v1575
        %v1618 = vadd.f32 %v1422, %v1580
        %v1619 = vadd.f32 %v1423, %v1585
        %v1620 = vadd.f32 %v1424, %v1590
        %v1621 = vadd.f32 %v1425, %v1595
        %v1622 = vadd.f32 %v1426, %v1600
        %v1624 = vrot.slane %v639, 1
        %v1625 = vrot.slane %v640, 1
        %v1626 = vsel %vm676, %v1624, %v1625
        %v1627 = vrot.slane %v641, 1
        %v1628 = vsel %vm676, %v1625, %v1627
        %s1629 = scalar_lea.vmem [#allocation9], 16
        %v1630 = vld [vmem:[%s1629] sm:$0xf]
        %v1631 = vsel %vm526, %v1626, 0
        %v1633 = vsel %vm526, %v1628, 0
        %v1636 = vsel %vm769, %v1630, 0
        %1638 = vmatprep.subr.mxu0 0.0
        %1639 = vmatpush1.msra.mxu0 %v1636
        %1640 = vmatprep.subr.mxu0 0.0
        %1641 = vmatpush1.msra.mxu0 0.0
        %1642 = vmatprep.subr.mxu0 0.0
        %1643 = vmatpush1.msra.mxu0 0.0
        %1644 = vmatprep.subr.mxu0 0.0
        %1645 = vmatpush1.msra.mxu0 0.0
        %1646 = vmatprep.subr.mxu0 0.0
        %1647 = vmatpush1.msra.mxu0 0.0
        %1648 = vmatprep.subr.mxu0 0.0
        %1649 = vmatpush1.msra.mxu0 0.0
        %1650 = vmatprep.subr.mxu0 0.0
        %1651 = vmatpush1.msra.mxu0 0.0
        %1652 = vmatprep.subr.mxu0 0.0
        %1653 = vmatpush1.msra.mxu0 0.0
        %1654 = vmatprep.subr.mxu0 0.0
        %1655 = vmatpush1.msra.mxu0 0.0
        %1656 = vmatprep.subr.mxu0 0.0
        %1657 = vmatpush1.msra.mxu0 0.0
        %1658 = vmatprep.subr.mxu0 0.0
        %1659 = vmatpush1.msra.mxu0 0.0
        %1660 = vmatprep.subr.mxu0 0.0
        %1661 = vmatpush1.msra.mxu0 0.0
        %1662 = vmatprep.subr.mxu0 0.0
        %1663 = vmatpush1.msra.mxu0 0.0
        %1664 = vmatprep.subr.mxu0 0.0
        %1665 = vmatpush1.msra.mxu0 0.0
        %1666 = vmatprep.subr.mxu0 0.0
        %1667 = vmatpush1.msra.mxu0 0.0
        %1668 = vmatprep.subr.mxu0 0.0
        %1669 = vmatpush1.msra.mxu0 0.0
        %1670 = vmatprep.subr.mxu0 0.0
        %1671 = vmatpush1.msra.mxu0 0.0
        %1672 = vmatprep.subr.mxu0 0.0
        %1673 = vmatpush1.msra.mxu0 0.0
        %1674 = vmatprep.subr.mxu0 0.0
        %1675 = vmatpush1.msra.mxu0 0.0
        %1676 = vmatprep.subr.mxu0 0.0
        %1677 = vmatpush1.msra.mxu0 0.0
        %1678 = vmatprep.subr.mxu0 0.0
        %1679 = vmatpush1.msra.mxu0 0.0
        %1680 = vmatprep.subr.mxu0 0.0
        %1681 = vmatpush1.msra.mxu0 0.0
        %1682 = vmatprep.subr.mxu0 0.0
        %1683 = vmatpush1.msra.mxu0 0.0
        %1684 = vmatprep.subr.mxu0 0.0
        %1685 = vmatpush1.msra.mxu0 0.0
        %1686 = vmatprep.subr.mxu0 0.0
        %1687 = vmatpush1.msra.mxu0 0.0
        %1688 = vmatprep.subr.mxu0 0.0
        %1689 = vmatpush1.msra.mxu0 0.0
        %1690 = vmatprep.subr.mxu0 0.0
        %1691 = vmatpush1.msra.mxu0 0.0
        %1692 = vmatprep.subr.mxu0 0.0
        %1693 = vmatpush1.msra.mxu0 0.0
        %1694 = vmatprep.subr.mxu0 0.0
        %1695 = vmatpush1.msra.mxu0 0.0
        %1696 = vmatprep.subr.mxu0 0.0
        %1697 = vmatpush1.msra.mxu0 0.0
        %1698 = vmatprep.subr.mxu0 0.0
        %1699 = vmatpush1.msra.mxu0 0.0
        %1700 = vmatprep.subr.mxu0 0.0
        %1701 = vmatpush1.msra.mxu0 0.0
        %1702 = vmatprep.mubr.f32.mxu0 0.0
        %1703 = vmatmul.mubr.f32.gmra.mrb[0].mxu0 %v733
        %v1704 = vpop.f32.mrb[0].mxu0
        %v1705 = vadd.f32 0.0, %v1704
        %v1706 = vpop.f32.mrb[0].mxu0
        %1707 = vmatprep.mubr.f32.mxu0 0.0
        %1708 = vmatmul.mubr.f32.gmra.mrb[0].mxu0 %v735
        %v1709 = vpop.f32.mrb[0].mxu0
        %v1710 = vadd.f32 0.0, %v1709
        %v1711 = vpop.f32.mrb[0].mxu0
        %1712 = vmatprep.mubr.f32.mxu0 0.0
        %1713 = vmatmul.mubr.f32.gmra.mrb[0].mxu0 %v737
        %v1714 = vpop.f32.mrb[0].mxu0
        %v1715 = vadd.f32 0.0, %v1714
        %v1716 = vpop.f32.mrb[0].mxu0
        %1717 = vmatprep.mubr.f32.mxu0 0.0
        %1718 = vmatmul.mubr.f32.gmra.mrb[0].mxu0 %v739
        %v1719 = vpop.f32.mrb[0].mxu0
        %v1720 = vadd.f32 0.0, %v1719
        %v1721 = vpop.f32.mrb[0].mxu0
        %1722 = vmatprep.mubr.f32.mxu0 0.0
        %1723 = vmatmul.mubr.f32.gmra.mrb[0].mxu0 %v741
        %v1724 = vpop.f32.mrb[0].mxu0
        %v1725 = vadd.f32 0.0, %v1724
        %v1726 = vpop.f32.mrb[0].mxu0
        %1727 = vmatprep.mubr.f32.mxu0 0.0
        %1728 = vmatmul.mubr.f32.gmra.mrb[0].mxu0 %v743
        %v1729 = vpop.f32.mrb[0].mxu0
        %v1730 = vadd.f32 0.0, %v1729
        %v1731 = vpop.f32.mrb[0].mxu0
        %1732 = vmatprep.mubr.f32.mxu0 0.0
        %1733 = vmatmul.mubr.f32.gmra.mrb[0].mxu0 %v745
        %v1734 = vpop.f32.mrb[0].mxu0
        %v1735 = vadd.f32 0.0, %v1734
        %v1736 = vpop.f32.mrb[0].mxu0
        %1737 = vmatprep.mubr.f32.mxu0 0.0
        %1738 = vmatmul.mubr.f32.gmra.mrb[0].mxu0 %v747
        %v1739 = vpop.f32.mrb[0].mxu0
        %v1740 = vadd.f32 0.0, %v1739
        %v1741 = vpop.f32.mrb[0].mxu0
        %1742 = vmatprep.mubr.f32.mxu0 0.0
        %1743 = vmatmul.mubr.f32.gmra.mrb[0].mxu0 %v749
        %v1744 = vpop.f32.mrb[0].mxu0
        %v1745 = vadd.f32 0.0, %v1744
        %v1746 = vpop.f32.mrb[0].mxu0
        %1747 = vmatprep.mubr.f32.mxu0 0.0
        %1748 = vmatmul.mubr.f32.gmra.mrb[0].mxu0 %v751
        %v1749 = vpop.f32.mrb[0].mxu0
        %v1750 = vadd.f32 0.0, %v1749
        %v1751 = vpop.f32.mrb[0].mxu0
        %1752 = vmatprep.mubr.f32.mxu0 0.0
        %1753 = vmatmul.mubr.f32.gmra.mrb[0].mxu0 %v753
        %v1754 = vpop.f32.mrb[0].mxu0
        %v1755 = vadd.f32 0.0, %v1754
        %v1756 = vpop.f32.mrb[0].mxu0
        %1757 = vmatprep.mubr.f32.mxu0 0.0
        %1758 = vmatmul.mubr.f32.gmra.mrb[0].mxu0 %v755
        %v1759 = vpop.f32.mrb[0].mxu0
        %v1760 = vadd.f32 0.0, %v1759
        %v1761 = vpop.f32.mrb[0].mxu0
        %1762 = vmatprep.mubr.f32.mxu0 0.0
        %1763 = vmatmul.mubr.f32.gmra.mrb[0].mxu0 %v757
        %v1764 = vpop.f32.mrb[0].mxu0
        %v1765 = vadd.f32 0.0, %v1764
        %v1766 = vpop.f32.mrb[0].mxu0
        %1767 = vmatprep.mubr.f32.mxu0 0.0
        %1768 = vmatmul.mubr.f32.gmra.mrb[0].mxu0 %v759
        %v1769 = vpop.f32.mrb[0].mxu0
        %v1770 = vadd.f32 0.0, %v1769
        %v1771 = vpop.f32.mrb[0].mxu0
        %1772 = vmatprep.mubr.f32.mxu0 0.0
        %1773 = vmatmul.mubr.f32.gmra.mrb[0].mxu0 %v761
        %v1774 = vpop.f32.mrb[0].mxu0
        %v1775 = vadd.f32 0.0, %v1774
        %v1776 = vpop.f32.mrb[0].mxu0
        %1777 = vmatprep.mubr.f32.mxu0 0.0
        %1778 = vmatmul.mubr.f32.gmra.mrb[0].mxu0 %v763
        %v1779 = vpop.f32.mrb[0].mxu0
        %v1780 = vadd.f32 0.0, %v1779
        %v1781 = vpop.f32.mrb[0].mxu0
        %1782 = vmatprep.mubr.f32.mxu0 0.0
        %1783 = vmatmul.mubr.f32.gmra.mrb[0].mxu0 %v765
        %v1784 = vpop.f32.mrb[0].mxu0
        %v1785 = vadd.f32 0.0, %v1784
        %v1786 = vpop.f32.mrb[0].mxu0
        %1787 = vmatprep.mubr.f32.mxu0 0.0
        %1788 = vmatmul.mubr.f32.gmra.mrb[0].mxu0 %v767
        %v1789 = vpop.f32.mrb[0].mxu0
        %v1790 = vadd.f32 0.0, %v1789
        %v1791 = vpop.f32.mrb[0].mxu0
        %1792 = vmatprep.mubr.f32.mxu0 0.0
        %1793 = vmatmul.mubr.f32.gmra.mrb[0].mxu0 %v1631
        %v1794 = vpop.f32.mrb[0].mxu0
        %v1795 = vadd.f32 0.0, %v1794
        %v1796 = vpop.f32.mrb[0].mxu0
        %1797 = vmatprep.mubr.f32.mxu0 0.0
        %1798 = vmatmul.mubr.f32.gmra.mrb[0].mxu0 %v1633
        %v1799 = vpop.f32.mrb[0].mxu0
        %v1800 = vadd.f32 0.0, %v1799
        %v1801 = vpop.f32.mrb[0].mxu0
        %1802 = vdwg.mxu0
        %v1803 = vadd.f32 %v1603, %v1705
        %v1804 = vadd.f32 %v1604, %v1710
        %v1805 = vadd.f32 %v1605, %v1715
        %v1806 = vadd.f32 %v1606, %v1720
        %v1807 = vadd.f32 %v1607, %v1725
        %v1808 = vadd.f32 %v1608, %v1730
        %v1809 = vadd.f32 %v1609, %v1735
        %v1810 = vadd.f32 %v1610, %v1740
        %v1811 = vadd.f32 %v1611, %v1745
        %v1812 = vadd.f32 %v1612, %v1750
        %v1813 = vadd.f32 %v1613, %v1755
        %v1814 = vadd.f32 %v1614, %v1760
        %v1815 = vadd.f32 %v1615, %v1765
        %v1816 = vadd.f32 %v1616, %v1770
        %v1817 = vadd.f32 %v1617, %v1775
        %v1818 = vadd.f32 %v1618, %v1780
        %v1819 = vadd.f32 %v1619, %v1785
        %v1820 = vadd.f32 %v1620, %v1790
        %v1821 = vadd.f32 %v1621, %v1795
        %v1822 = vadd.f32 %v1622, %v1800
        %v1823 = vrot.slane %v639, 2
        %v1824 = vrot.slane %v640, 2
        %v1825 = vsel %vm1146, %v1823, %v1824
        %v1826 = vrot.slane %v641, 2
        %v1827 = vsel %vm1146, %v1824, %v1826
        %s1828 = scalar_lea.vmem [#allocation9], 20
        %v1829 = vld [vmem:[%s1828] sm:$0xf]
        %v1830 = vsel %vm526, %v1825, 0
        %v1832 = vsel %vm526, %v1827, 0
        %v1835 = vsel %vm769, %v1829, 0
        %1837 = vmatprep.subr.mxu0 0.0
        %1838 = vmatpush1.msra.mxu0 %v1835
        %1839 = vmatprep.subr.mxu0 0.0
        %1840 = vmatpush1.msra.mxu0 0.0
        %1841 = vmatprep.subr.mxu0 0.0
        %1842 = vmatpush1.msra.mxu0 0.0
        %1843 = vmatprep.subr.mxu0 0.0
        %1844 = vmatpush1.msra.mxu0 0.0
        %1845 = vmatprep.subr.mxu0 0.0
        %1846 = vmatpush1.msra.mxu0 0.0
        %1847 = vmatprep.subr.mxu0 0.0
        %1848 = vmatpush1.msra.mxu0 0.0
        %1849 = vmatprep.subr.mxu0 0.0
        %1850 = vmatpush1.msra.mxu0 0.0
        %1851 = vmatprep.subr.mxu0 0.0
        %1852 = vmatpush1.msra.mxu0 0.0
        %1853 = vmatprep.subr.mxu0 0.0
        %1854 = vmatpush1.msra.mxu0 0.0
        %1855 = vmatprep.subr.mxu0 0.0
        %1856 = vmatpush1.msra.mxu0 0.0
        %1857 = vmatprep.subr.mxu0 0.0
        %1858 = vmatpush1.msra.mxu0 0.0
        %1859 = vmatprep.subr.mxu0 0.0
        %1860 = vmatpush1.msra.mxu0 0.0
        %1861 = vmatprep.subr.mxu0 0.0
        %1862 = vmatpush1.msra.mxu0 0.0
        %1863 = vmatprep.subr.mxu0 0.0
        %1864 = vmatpush1.msra.mxu0 0.0
        %1865 = vmatprep.subr.mxu0 0.0
        %1866 = vmatpush1.msra.mxu0 0.0
        %1867 = vmatprep.subr.mxu0 0.0
        %1868 = vmatpush1.msra.mxu0 0.0
        %1869 = vmatprep.subr.mxu0 0.0
        %1870 = vmatpush1.msra.mxu0 0.0
        %1871 = vmatprep.subr.mxu0 0.0
        %1872 = vmatpush1.msra.mxu0 0.0
        %1873 = vmatprep.subr.mxu0 0.0
        %1874 = vmatpush1.msra.mxu0 0.0
        %1875 = vmatprep.subr.mxu0 0.0
        %1876 = vmatpush1.msra.mxu0 0.0
        %1877 = vmatprep.subr.mxu0 0.0
        %1878 = vmatpush1.msra.mxu0 0.0
        %1879 = vmatprep.subr.mxu0 0.0
        %1880 = vmatpush1.msra.mxu0 0.0
        %1881 = vmatprep.subr.mxu0 0.0
        %1882 = vmatpush1.msra.mxu0 0.0
        %1883 = vmatprep.subr.mxu0 0.0
        %1884 = vmatpush1.msra.mxu0 0.0
        %1885 = vmatprep.subr.mxu0 0.0
        %1886 = vmatpush1.msra.mxu0 0.0
        %1887 = vmatprep.subr.mxu0 0.0
        %1888 = vmatpush1.msra.mxu0 0.0
        %1889 = vmatprep.subr.mxu0 0.0
        %1890 = vmatpush1.msra.mxu0 0.0
        %1891 = vmatprep.subr.mxu0 0.0
        %1892 = vmatpush1.msra.mxu0 0.0
        %1893 = vmatprep.subr.mxu0 0.0
        %1894 = vmatpush1.msra.mxu0 0.0
        %1895 = vmatprep.subr.mxu0 0.0
        %1896 = vmatpush1.msra.mxu0 0.0
        %1897 = vmatprep.subr.mxu0 0.0
        %1898 = vmatpush1.msra.mxu0 0.0
        %1899 = vmatprep.subr.mxu0 0.0
        %1900 = vmatpush1.msra.mxu0 0.0
        %1901 = vmatprep.mubr.f32.mxu0 0.0
        %1902 = vmatmul.mubr.f32.gmra.mrb[0].mxu0 %v1203
        %v1903 = vpop.f32.mrb[0].mxu0
        %v1904 = vadd.f32 0.0, %v1903
        %v1905 = vpop.f32.mrb[0].mxu0
        %1906 = vmatprep.mubr.f32.mxu0 0.0
        %1907 = vmatmul.mubr.f32.gmra.mrb[0].mxu0 %v1205
        %v1908 = vpop.f32.mrb[0].mxu0
        %v1909 = vadd.f32 0.0, %v1908
        %v1910 = vpop.f32.mrb[0].mxu0
        %1911 = vmatprep.mubr.f32.mxu0 0.0
        %1912 = vmatmul.mubr.f32.gmra.mrb[0].mxu0 %v1207
        %v1913 = vpop.f32.mrb[0].mxu0
        %v1914 = vadd.f32 0.0, %v1913
        %v1915 = vpop.f32.mrb[0].mxu0
        %1916 = vmatprep.mubr.f32.mxu0 0.0
        %1917 = vmatmul.mubr.f32.gmra.mrb[0].mxu0 %v1209
        %v1918 = vpop.f32.mrb[0].mxu0
        %v1919 = vadd.f32 0.0, %v1918
        %v1920 = vpop.f32.mrb[0].mxu0
        %1921 = vmatprep.mubr.f32.mxu0 0.0
        %1922 = vmatmul.mubr.f32.gmra.mrb[0].mxu0 %v1211
        %v1923 = vpop.f32.mrb[0].mxu0
        %v1924 = vadd.f32 0.0, %v1923
        %v1925 = vpop.f32.mrb[0].mxu0
        %1926 = vmatprep.mubr.f32.mxu0 0.0
        %1927 = vmatmul.mubr.f32.gmra.mrb[0].mxu0 %v1213
        %v1928 = vpop.f32.mrb[0].mxu0
        %v1929 = vadd.f32 0.0, %v1928
        %v1930 = vpop.f32.mrb[0].mxu0
        %1931 = vmatprep.mubr.f32.mxu0 0.0
        %1932 = vmatmul.mubr.f32.gmra.mrb[0].mxu0 %v1215
        %v1933 = vpop.f32.mrb[0].mxu0
        %v1934 = vadd.f32 0.0, %v1933
        %v1935 = vpop.f32.mrb[0].mxu0
        %1936 = vmatprep.mubr.f32.mxu0 0.0
        %1937 = vmatmul.mubr.f32.gmra.mrb[0].mxu0 %v1217
        %v1938 = vpop.f32.mrb[0].mxu0
        %v1939 = vadd.f32 0.0, %v1938
        %v1940 = vpop.f32.mrb[0].mxu0
        %1941 = vmatprep.mubr.f32.mxu0 0.0
        %1942 = vmatmul.mubr.f32.gmra.mrb[0].mxu0 %v1219
        %v1943 = vpop.f32.mrb[0].mxu0
        %v1944 = vadd.f32 0.0, %v1943
        %v1945 = vpop.f32.mrb[0].mxu0
        %1946 = vmatprep.mubr.f32.mxu0 0.0
        %1947 = vmatmul.mubr.f32.gmra.mrb[0].mxu0 %v1221
        %v1948 = vpop.f32.mrb[0].mxu0
        %v1949 = vadd.f32 0.0, %v1948
        %v1950 = vpop.f32.mrb[0].mxu0
        %1951 = vmatprep.mubr.f32.mxu0 0.0
        %1952 = vmatmul.mubr.f32.gmra.mrb[0].mxu0 %v1223
        %v1953 = vpop.f32.mrb[0].mxu0
        %v1954 = vadd.f32 0.0, %v1953
        %v1955 = vpop.f32.mrb[0].mxu0
        %1956 = vmatprep.mubr.f32.mxu0 0.0
        %1957 = vmatmul.mubr.f32.gmra.mrb[0].mxu0 %v1225
        %v1958 = vpop.f32.mrb[0].mxu0
        %v1959 = vadd.f32 0.0, %v1958
        %v1960 = vpop.f32.mrb[0].mxu0
        %1961 = vmatprep.mubr.f32.mxu0 0.0
        %1962 = vmatmul.mubr.f32.gmra.mrb[0].mxu0 %v1227
        %v1963 = vpop.f32.mrb[0].mxu0
        %v1964 = vadd.f32 0.0, %v1963
        %v1965 = vpop.f32.mrb[0].mxu0
        %1966 = vmatprep.mubr.f32.mxu0 0.0
        %1967 = vmatmul.mubr.f32.gmra.mrb[0].mxu0 %v1229
        %v1968 = vpop.f32.mrb[0].mxu0
        %v1969 = vadd.f32 0.0, %v1968
        %v1970 = vpop.f32.mrb[0].mxu0
        %1971 = vmatprep.mubr.f32.mxu0 0.0
        %1972 = vmatmul.mubr.f32.gmra.mrb[0].mxu0 %v1231
        %v1973 = vpop.f32.mrb[0].mxu0
        %v1974 = vadd.f32 0.0, %v1973
        %v1975 = vpop.f32.mrb[0].mxu0
        %1976 = vmatprep.mubr.f32.mxu0 0.0
        %1977 = vmatmul.mubr.f32.gmra.mrb[0].mxu0 %v1233
        %v1978 = vpop.f32.mrb[0].mxu0
        %v1979 = vadd.f32 0.0, %v1978
        %v1980 = vpop.f32.mrb[0].mxu0
        %1981 = vmatprep.mubr.f32.mxu0 0.0
        %1982 = vmatmul.mubr.f32.gmra.mrb[0].mxu0 %v1235
        %v1983 = vpop.f32.mrb[0].mxu0
        %v1984 = vadd.f32 0.0, %v1983
        %v1985 = vpop.f32.mrb[0].mxu0
        %1986 = vmatprep.mubr.f32.mxu0 0.0
        %1987 = vmatmul.mubr.f32.gmra.mrb[0].mxu0 %v1237
        %v1988 = vpop.f32.mrb[0].mxu0
        %v1989 = vadd.f32 0.0, %v1988
        %v1990 = vpop.f32.mrb[0].mxu0
        %1991 = vmatprep.mubr.f32.mxu0 0.0
        %1992 = vmatmul.mubr.f32.gmra.mrb[0].mxu0 %v1830
        %v1993 = vpop.f32.mrb[0].mxu0
        %v1994 = vadd.f32 0.0, %v1993
        %v1995 = vpop.f32.mrb[0].mxu0
        %1996 = vmatprep.mubr.f32.mxu0 0.0
        %1997 = vmatmul.mubr.f32.gmra.mrb[0].mxu0 %v1832
        %v1998 = vpop.f32.mrb[0].mxu0
        %v1999 = vadd.f32 0.0, %v1998
        %v2000 = vpop.f32.mrb[0].mxu0
        %2001 = vdwg.mxu0
        %v2002 = vadd.f32 %v1803, %v1904
        %v2003 = vadd.f32 %v1804, %v1909
        %v2004 = vadd.f32 %v1805, %v1914
        %v2005 = vadd.f32 %v1806, %v1919
        %v2006 = vadd.f32 %v1807, %v1924
        %v2007 = vadd.f32 %v1808, %v1929
        %v2008 = vadd.f32 %v1809, %v1934
        %v2009 = vadd.f32 %v1810, %v1939
        %v2010 = vadd.f32 %v1811, %v1944
        %v2011 = vadd.f32 %v1812, %v1949
        %v2012 = vadd.f32 %v1813, %v1954
        %v2013 = vadd.f32 %v1814, %v1959
        %v2014 = vadd.f32 %v1815, %v1964
        %v2015 = vadd.f32 %v1816, %v1969
        %v2016 = vadd.f32 %v1817, %v1974
        %v2017 = vadd.f32 %v1818, %v1979
        %v2018 = vadd.f32 %v1819, %v1984
        %v2019 = vadd.f32 %v1820, %v1989
        %v2020 = vadd.f32 %v1821, %v1994
        %v2021 = vadd.f32 %v1822, %v1999
        %s2022 = scalar_lea.vmem [#allocation9], 24
        %v2023 = vld [vmem:[%s2022] sm:$0xf]
        %v2025 = vsel %vm526, %v642, 0
        %v2028 = vsel %vm526, %v643, 0
        %v2031 = vsel %vm769, %v2023, 0
        %2033 = vmatprep.subr.mxu0 0.0
        %2034 = vmatpush1.msra.mxu0 %v2031
        %2035 = vmatprep.subr.mxu0 0.0
        %2036 = vmatpush1.msra.mxu0 0.0
        %2037 = vmatprep.subr.mxu0 0.0
        %2038 = vmatpush1.msra.mxu0 0.0
        %2039 = vmatprep.subr.mxu0 0.0
        %2040 = vmatpush1.msra.mxu0 0.0
        %2041 = vmatprep.subr.mxu0 0.0
        %2042 = vmatpush1.msra.mxu0 0.0
        %2043 = vmatprep.subr.mxu0 0.0
        %2044 = vmatpush1.msra.mxu0 0.0
        %2045 = vmatprep.subr.mxu0 0.0
        %2046 = vmatpush1.msra.mxu0 0.0
        %2047 = vmatprep.subr.mxu0 0.0
        %2048 = vmatpush1.msra.mxu0 0.0
        %2049 = vmatprep.subr.mxu0 0.0
        %2050 = vmatpush1.msra.mxu0 0.0
        %2051 = vmatprep.subr.mxu0 0.0
        %2052 = vmatpush1.msra.mxu0 0.0
        %2053 = vmatprep.subr.mxu0 0.0
        %2054 = vmatpush1.msra.mxu0 0.0
        %2055 = vmatprep.subr.mxu0 0.0
        %2056 = vmatpush1.msra.mxu0 0.0
        %2057 = vmatprep.subr.mxu0 0.0
        %2058 = vmatpush1.msra.mxu0 0.0
        %2059 = vmatprep.subr.mxu0 0.0
        %2060 = vmatpush1.msra.mxu0 0.0
        %2061 = vmatprep.subr.mxu0 0.0
        %2062 = vmatpush1.msra.mxu0 0.0
        %2063 = vmatprep.subr.mxu0 0.0
        %2064 = vmatpush1.msra.mxu0 0.0
        %2065 = vmatprep.subr.mxu0 0.0
        %2066 = vmatpush1.msra.mxu0 0.0
        %2067 = vmatprep.subr.mxu0 0.0
        %2068 = vmatpush1.msra.mxu0 0.0
        %2069 = vmatprep.subr.mxu0 0.0
        %2070 = vmatpush1.msra.mxu0 0.0
        %2071 = vmatprep.subr.mxu0 0.0
        %2072 = vmatpush1.msra.mxu0 0.0
        %2073 = vmatprep.subr.mxu0 0.0
        %2074 = vmatpush1.msra.mxu0 0.0
        %2075 = vmatprep.subr.mxu0 0.0
        %2076 = vmatpush1.msra.mxu0 0.0
        %2077 = vmatprep.subr.mxu0 0.0
        %2078 = vmatpush1.msra.mxu0 0.0
        %2079 = vmatprep.subr.mxu0 0.0
        %2080 = vmatpush1.msra.mxu0 0.0
        %2081 = vmatprep.subr.mxu0 0.0
        %2082 = vmatpush1.msra.mxu0 0.0
        %2083 = vmatprep.subr.mxu0 0.0
        %2084 = vmatpush1.msra.mxu0 0.0
        %2085 = vmatprep.subr.mxu0 0.0
        %2086 = vmatpush1.msra.mxu0 0.0
        %2087 = vmatprep.subr.mxu0 0.0
        %2088 = vmatpush1.msra.mxu0 0.0
        %2089 = vmatprep.subr.mxu0 0.0
        %2090 = vmatpush1.msra.mxu0 0.0
        %2091 = vmatprep.subr.mxu0 0.0
        %2092 = vmatpush1.msra.mxu0 0.0
        %2093 = vmatprep.subr.mxu0 0.0
        %2094 = vmatpush1.msra.mxu0 0.0
        %2095 = vmatprep.subr.mxu0 0.0
        %2096 = vmatpush1.msra.mxu0 0.0
        %2097 = vmatprep.mubr.f32.mxu0 0.0
        %2098 = vmatmul.mubr.f32.gmra.mrb[0].mxu0 %v946
        %v2099 = vpop.f32.mrb[0].mxu0
        %v2100 = vadd.f32 0.0, %v2099
        %v2101 = vpop.f32.mrb[0].mxu0
        %2102 = vmatprep.mubr.f32.mxu0 0.0
        %2103 = vmatmul.mubr.f32.gmra.mrb[0].mxu0 %v948
        %v2104 = vpop.f32.mrb[0].mxu0
        %v2105 = vadd.f32 0.0, %v2104
        %v2106 = vpop.f32.mrb[0].mxu0
        %2107 = vmatprep.mubr.f32.mxu0 0.0
        %2108 = vmatmul.mubr.f32.gmra.mrb[0].mxu0 %v950
        %v2109 = vpop.f32.mrb[0].mxu0
        %v2110 = vadd.f32 0.0, %v2109
        %v2111 = vpop.f32.mrb[0].mxu0
        %2112 = vmatprep.mubr.f32.mxu0 0.0
        %2113 = vmatmul.mubr.f32.gmra.mrb[0].mxu0 %v952
        %v2114 = vpop.f32.mrb[0].mxu0
        %v2115 = vadd.f32 0.0, %v2114
        %v2116 = vpop.f32.mrb[0].mxu0
        %2117 = vmatprep.mubr.f32.mxu0 0.0
        %2118 = vmatmul.mubr.f32.gmra.mrb[0].mxu0 %v954
        %v2119 = vpop.f32.mrb[0].mxu0
        %v2120 = vadd.f32 0.0, %v2119
        %v2121 = vpop.f32.mrb[0].mxu0
        %2122 = vmatprep.mubr.f32.mxu0 0.0
        %2123 = vmatmul.mubr.f32.gmra.mrb[0].mxu0 %v956
        %v2124 = vpop.f32.mrb[0].mxu0
        %v2125 = vadd.f32 0.0, %v2124
        %v2126 = vpop.f32.mrb[0].mxu0
        %2127 = vmatprep.mubr.f32.mxu0 0.0
        %2128 = vmatmul.mubr.f32.gmra.mrb[0].mxu0 %v958
        %v2129 = vpop.f32.mrb[0].mxu0
        %v2130 = vadd.f32 0.0, %v2129
        %v2131 = vpop.f32.mrb[0].mxu0
        %2132 = vmatprep.mubr.f32.mxu0 0.0
        %2133 = vmatmul.mubr.f32.gmra.mrb[0].mxu0 %v960
        %v2134 = vpop.f32.mrb[0].mxu0
        %v2135 = vadd.f32 0.0, %v2134
        %v2136 = vpop.f32.mrb[0].mxu0
        %2137 = vmatprep.mubr.f32.mxu0 0.0
        %2138 = vmatmul.mubr.f32.gmra.mrb[0].mxu0 %v962
        %v2139 = vpop.f32.mrb[0].mxu0
        %v2140 = vadd.f32 0.0, %v2139
        %v2141 = vpop.f32.mrb[0].mxu0
        %2142 = vmatprep.mubr.f32.mxu0 0.0
        %2143 = vmatmul.mubr.f32.gmra.mrb[0].mxu0 %v964
        %v2144 = vpop.f32.mrb[0].mxu0
        %v2145 = vadd.f32 0.0, %v2144
        %v2146 = vpop.f32.mrb[0].mxu0
        %2147 = vmatprep.mubr.f32.mxu0 0.0
        %2148 = vmatmul.mubr.f32.gmra.mrb[0].mxu0 %v966
        %v2149 = vpop.f32.mrb[0].mxu0
        %v2150 = vadd.f32 0.0, %v2149
        %v2151 = vpop.f32.mrb[0].mxu0
        %2152 = vmatprep.mubr.f32.mxu0 0.0
        %2153 = vmatmul.mubr.f32.gmra.mrb[0].mxu0 %v968
        %v2154 = vpop.f32.mrb[0].mxu0
        %v2155 = vadd.f32 0.0, %v2154
        %v2156 = vpop.f32.mrb[0].mxu0
        %2157 = vmatprep.mubr.f32.mxu0 0.0
        %2158 = vmatmul.mubr.f32.gmra.mrb[0].mxu0 %v970
        %v2159 = vpop.f32.mrb[0].mxu0
        %v2160 = vadd.f32 0.0, %v2159
        %v2161 = vpop.f32.mrb[0].mxu0
        %2162 = vmatprep.mubr.f32.mxu0 0.0
        %2163 = vmatmul.mubr.f32.gmra.mrb[0].mxu0 %v972
        %v2164 = vpop.f32.mrb[0].mxu0
        %v2165 = vadd.f32 0.0, %v2164
        %v2166 = vpop.f32.mrb[0].mxu0
        %2167 = vmatprep.mubr.f32.mxu0 0.0
        %2168 = vmatmul.mubr.f32.gmra.mrb[0].mxu0 %v974
        %v2169 = vpop.f32.mrb[0].mxu0
        %v2170 = vadd.f32 0.0, %v2169
        %v2171 = vpop.f32.mrb[0].mxu0
        %2172 = vmatprep.mubr.f32.mxu0 0.0
        %2173 = vmatmul.mubr.f32.gmra.mrb[0].mxu0 %v976
        %v2174 = vpop.f32.mrb[0].mxu0
        %v2175 = vadd.f32 0.0, %v2174
        %v2176 = vpop.f32.mrb[0].mxu0
        %2177 = vmatprep.mubr.f32.mxu0 0.0
        %2178 = vmatmul.mubr.f32.gmra.mrb[0].mxu0 %v1430
        %v2179 = vpop.f32.mrb[0].mxu0
        %v2180 = vadd.f32 0.0, %v2179
        %v2181 = vpop.f32.mrb[0].mxu0
        %2182 = vmatprep.mubr.f32.mxu0 0.0
        %2183 = vmatmul.mubr.f32.gmra.mrb[0].mxu0 %v1433
        %v2184 = vpop.f32.mrb[0].mxu0
        %v2185 = vadd.f32 0.0, %v2184
        %v2186 = vpop.f32.mrb[0].mxu0
        %2187 = vmatprep.mubr.f32.mxu0 0.0
        %2188 = vmatmul.mubr.f32.gmra.mrb[0].mxu0 %v2025
        %v2189 = vpop.f32.mrb[0].mxu0
        %v2190 = vadd.f32 0.0, %v2189
        %v2191 = vpop.f32.mrb[0].mxu0
        %2192 = vmatprep.mubr.f32.mxu0 0.0
        %2193 = vmatmul.mubr.f32.gmra.mrb[0].mxu0 %v2028
        %v2194 = vpop.f32.mrb[0].mxu0
        %v2195 = vadd.f32 0.0, %v2194
        %v2196 = vpop.f32.mrb[0].mxu0
        %2197 = vdwg.mxu0
        %v2198 = vadd.f32 %v2002, %v2100
        %v2199 = vadd.f32 %v2003, %v2105
        %v2200 = vadd.f32 %v2004, %v2110
        %v2201 = vadd.f32 %v2005, %v2115
        %v2202 = vadd.f32 %v2006, %v2120
        %v2203 = vadd.f32 %v2007, %v2125
        %v2204 = vadd.f32 %v2008, %v2130
        %v2205 = vadd.f32 %v2009, %v2135
        %v2206 = vadd.f32 %v2010, %v2140
        %v2207 = vadd.f32 %v2011, %v2145
        %v2208 = vadd.f32 %v2012, %v2150
        %v2209 = vadd.f32 %v2013, %v2155
        %v2210 = vadd.f32 %v2014, %v2160
        %v2211 = vadd.f32 %v2015, %v2165
        %v2212 = vadd.f32 %v2016, %v2170
        %v2213 = vadd.f32 %v2017, %v2175
        %v2214 = vadd.f32 %v2018, %v2180
        %v2215 = vadd.f32 %v2019, %v2185
        %v2216 = vadd.f32 %v2020, %v2190
        %v2217 = vadd.f32 %v2021, %v2195
        %v2219 = vrot.slane %v642, 1
        %v2220 = vrot.slane %v643, 1
        %v2221 = vsel %vm676, %v2219, %v2220
        %v2222 = vrot.slane %v644, 1
        %v2223 = vsel %vm676, %v2220, %v2222
        %s2224 = scalar_lea.vmem [#allocation9], 28
        %v2225 = vld [vmem:[%s2224] sm:$0xf]
        %v2226 = vsel %vm526, %v2221, 0
        %v2228 = vsel %vm526, %v2223, 0
        %v2231 = vsel %vm769, %v2225, 0
        %2233 = vmatprep.subr.mxu0 0.0
        %2234 = vmatpush1.msra.mxu0 %v2231
        %2235 = vmatprep.subr.mxu0 0.0
        %2236 = vmatpush1.msra.mxu0 0.0
        %2237 = vmatprep.subr.mxu0 0.0
        %2238 = vmatpush1.msra.mxu0 0.0
        %2239 = vmatprep.subr.mxu0 0.0
        %2240 = vmatpush1.msra.mxu0 0.0
        %2241 = vmatprep.subr.mxu0 0.0
        %2242 = vmatpush1.msra.mxu0 0.0
        %2243 = vmatprep.subr.mxu0 0.0
        %2244 = vmatpush1.msra.mxu0 0.0
        %2245 = vmatprep.subr.mxu0 0.0
        %2246 = vmatpush1.msra.mxu0 0.0
        %2247 = vmatprep.subr.mxu0 0.0
        %2248 = vmatpush1.msra.mxu0 0.0
        %2249 = vmatprep.subr.mxu0 0.0
        %2250 = vmatpush1.msra.mxu0 0.0
        %2251 = vmatprep.subr.mxu0 0.0
        %2252 = vmatpush1.msra.mxu0 0.0
        %2253 = vmatprep.subr.mxu0 0.0
        %2254 = vmatpush1.msra.mxu0 0.0
        %2255 = vmatprep.subr.mxu0 0.0
        %2256 = vmatpush1.msra.mxu0 0.0
        %2257 = vmatprep.subr.mxu0 0.0
        %2258 = vmatpush1.msra.mxu0 0.0
        %2259 = vmatprep.subr.mxu0 0.0
        %2260 = vmatpush1.msra.mxu0 0.0
        %2261 = vmatprep.subr.mxu0 0.0
        %2262 = vmatpush1.msra.mxu0 0.0
        %2263 = vmatprep.subr.mxu0 0.0
        %2264 = vmatpush1.msra.mxu0 0.0
        %2265 = vmatprep.subr.mxu0 0.0
        %2266 = vmatpush1.msra.mxu0 0.0
        %2267 = vmatprep.subr.mxu0 0.0
        %2268 = vmatpush1.msra.mxu0 0.0
        %2269 = vmatprep.subr.mxu0 0.0
        %2270 = vmatpush1.msra.mxu0 0.0
        %2271 = vmatprep.subr.mxu0 0.0
        %2272 = vmatpush1.msra.mxu0 0.0
        %2273 = vmatprep.subr.mxu0 0.0
        %2274 = vmatpush1.msra.mxu0 0.0
        %2275 = vmatprep.subr.mxu0 0.0
        %2276 = vmatpush1.msra.mxu0 0.0
        %2277 = vmatprep.subr.mxu0 0.0
        %2278 = vmatpush1.msra.mxu0 0.0
        %2279 = vmatprep.subr.mxu0 0.0
        %2280 = vmatpush1.msra.mxu0 0.0
        %2281 = vmatprep.subr.mxu0 0.0
        %2282 = vmatpush1.msra.mxu0 0.0
        %2283 = vmatprep.subr.mxu0 0.0
        %2284 = vmatpush1.msra.mxu0 0.0
        %2285 = vmatprep.subr.mxu0 0.0
        %2286 = vmatpush1.msra.mxu0 0.0
        %2287 = vmatprep.subr.mxu0 0.0
        %2288 = vmatpush1.msra.mxu0 0.0
        %2289 = vmatprep.subr.mxu0 0.0
        %2290 = vmatpush1.msra.mxu0 0.0
        %2291 = vmatprep.subr.mxu0 0.0
        %2292 = vmatpush1.msra.mxu0 0.0
        %2293 = vmatprep.subr.mxu0 0.0
        %2294 = vmatpush1.msra.mxu0 0.0
        %2295 = vmatprep.subr.mxu0 0.0
        %2296 = vmatpush1.msra.mxu0 0.0
        %2297 = vmatprep.mubr.f32.mxu0 0.0
        %2298 = vmatmul.mubr.f32.gmra.mrb[0].mxu0 %v737
        %v2299 = vpop.f32.mrb[0].mxu0
        %v2300 = vadd.f32 0.0, %v2299
        %v2301 = vpop.f32.mrb[0].mxu0
        %2302 = vmatprep.mubr.f32.mxu0 0.0
        %2303 = vmatmul.mubr.f32.gmra.mrb[0].mxu0 %v739
        %v2304 = vpop.f32.mrb[0].mxu0
        %v2305 = vadd.f32 0.0, %v2304
        %v2306 = vpop.f32.mrb[0].mxu0
        %2307 = vmatprep.mubr.f32.mxu0 0.0
        %2308 = vmatmul.mubr.f32.gmra.mrb[0].mxu0 %v741
        %v2309 = vpop.f32.mrb[0].mxu0
        %v2310 = vadd.f32 0.0, %v2309
        %v2311 = vpop.f32.mrb[0].mxu0
        %2312 = vmatprep.mubr.f32.mxu0 0.0
        %2313 = vmatmul.mubr.f32.gmra.mrb[0].mxu0 %v743
        %v2314 = vpop.f32.mrb[0].mxu0
        %v2315 = vadd.f32 0.0, %v2314
        %v2316 = vpop.f32.mrb[0].mxu0
        %2317 = vmatprep.mubr.f32.mxu0 0.0
        %2318 = vmatmul.mubr.f32.gmra.mrb[0].mxu0 %v745
        %v2319 = vpop.f32.mrb[0].mxu0
        %v2320 = vadd.f32 0.0, %v2319
        %v2321 = vpop.f32.mrb[0].mxu0
        %2322 = vmatprep.mubr.f32.mxu0 0.0
        %2323 = vmatmul.mubr.f32.gmra.mrb[0].mxu0 %v747
        %v2324 = vpop.f32.mrb[0].mxu0
        %v2325 = vadd.f32 0.0, %v2324
        %v2326 = vpop.f32.mrb[0].mxu0
        %2327 = vmatprep.mubr.f32.mxu0 0.0
        %2328 = vmatmul.mubr.f32.gmra.mrb[0].mxu0 %v749
        %v2329 = vpop.f32.mrb[0].mxu0
        %v2330 = vadd.f32 0.0, %v2329
        %v2331 = vpop.f32.mrb[0].mxu0
        %2332 = vmatprep.mubr.f32.mxu0 0.0
        %2333 = vmatmul.mubr.f32.gmra.mrb[0].mxu0 %v751
        %v2334 = vpop.f32.mrb[0].mxu0
        %v2335 = vadd.f32 0.0, %v2334
        %v2336 = vpop.f32.mrb[0].mxu0
        %2337 = vmatprep.mubr.f32.mxu0 0.0
        %2338 = vmatmul.mubr.f32.gmra.mrb[0].mxu0 %v753
        %v2339 = vpop.f32.mrb[0].mxu0
        %v2340 = vadd.f32 0.0, %v2339
        %v2341 = vpop.f32.mrb[0].mxu0
        %2342 = vmatprep.mubr.f32.mxu0 0.0
        %2343 = vmatmul.mubr.f32.gmra.mrb[0].mxu0 %v755
        %v2344 = vpop.f32.mrb[0].mxu0
        %v2345 = vadd.f32 0.0, %v2344
        %v2346 = vpop.f32.mrb[0].mxu0
        %2347 = vmatprep.mubr.f32.mxu0 0.0
        %2348 = vmatmul.mubr.f32.gmra.mrb[0].mxu0 %v757
        %v2349 = vpop.f32.mrb[0].mxu0
        %v2350 = vadd.f32 0.0, %v2349
        %v2351 = vpop.f32.mrb[0].mxu0
        %2352 = vmatprep.mubr.f32.mxu0 0.0
        %2353 = vmatmul.mubr.f32.gmra.mrb[0].mxu0 %v759
        %v2354 = vpop.f32.mrb[0].mxu0
        %v2355 = vadd.f32 0.0, %v2354
        %v2356 = vpop.f32.mrb[0].mxu0
        %2357 = vmatprep.mubr.f32.mxu0 0.0
        %2358 = vmatmul.mubr.f32.gmra.mrb[0].mxu0 %v761
        %v2359 = vpop.f32.mrb[0].mxu0
        %v2360 = vadd.f32 0.0, %v2359
        %v2361 = vpop.f32.mrb[0].mxu0
        %2362 = vmatprep.mubr.f32.mxu0 0.0
        %2363 = vmatmul.mubr.f32.gmra.mrb[0].mxu0 %v763
        %v2364 = vpop.f32.mrb[0].mxu0
        %v2365 = vadd.f32 0.0, %v2364
        %v2366 = vpop.f32.mrb[0].mxu0
        %2367 = vmatprep.mubr.f32.mxu0 0.0
        %2368 = vmatmul.mubr.f32.gmra.mrb[0].mxu0 %v765
        %v2369 = vpop.f32.mrb[0].mxu0
        %v2370 = vadd.f32 0.0, %v2369
        %v2371 = vpop.f32.mrb[0].mxu0
        %2372 = vmatprep.mubr.f32.mxu0 0.0
        %2373 = vmatmul.mubr.f32.gmra.mrb[0].mxu0 %v767
        %v2374 = vpop.f32.mrb[0].mxu0
        %v2375 = vadd.f32 0.0, %v2374
        %v2376 = vpop.f32.mrb[0].mxu0
        %2377 = vmatprep.mubr.f32.mxu0 0.0
        %2378 = vmatmul.mubr.f32.gmra.mrb[0].mxu0 %v1631
        %v2379 = vpop.f32.mrb[0].mxu0
        %v2380 = vadd.f32 0.0, %v2379
        %v2381 = vpop.f32.mrb[0].mxu0
        %2382 = vmatprep.mubr.f32.mxu0 0.0
        %2383 = vmatmul.mubr.f32.gmra.mrb[0].mxu0 %v1633
        %v2384 = vpop.f32.mrb[0].mxu0
        %v2385 = vadd.f32 0.0, %v2384
        %v2386 = vpop.f32.mrb[0].mxu0
        %2387 = vmatprep.mubr.f32.mxu0 0.0
        %2388 = vmatmul.mubr.f32.gmra.mrb[0].mxu0 %v2226
        %v2389 = vpop.f32.mrb[0].mxu0
        %v2390 = vadd.f32 0.0, %v2389
        %v2391 = vpop.f32.mrb[0].mxu0
        %2392 = vmatprep.mubr.f32.mxu0 0.0
        %2393 = vmatmul.mubr.f32.gmra.mrb[0].mxu0 %v2228
        %v2394 = vpop.f32.mrb[0].mxu0
        %v2395 = vadd.f32 0.0, %v2394
        %v2396 = vpop.f32.mrb[0].mxu0
        %2397 = vdwg.mxu0
        %v2398 = vadd.f32 %v2198, %v2300
        %v2399 = vadd.f32 %v2199, %v2305
        %v2400 = vadd.f32 %v2200, %v2310
        %v2401 = vadd.f32 %v2201, %v2315
        %v2402 = vadd.f32 %v2202, %v2320
        %v2403 = vadd.f32 %v2203, %v2325
        %v2404 = vadd.f32 %v2204, %v2330
        %v2405 = vadd.f32 %v2205, %v2335
        %v2406 = vadd.f32 %v2206, %v2340
        %v2407 = vadd.f32 %v2207, %v2345
        %v2408 = vadd.f32 %v2208, %v2350
        %v2409 = vadd.f32 %v2209, %v2355
        %v2410 = vadd.f32 %v2210, %v2360
        %v2411 = vadd.f32 %v2211, %v2365
        %v2412 = vadd.f32 %v2212, %v2370
        %v2413 = vadd.f32 %v2213, %v2375
        %v2414 = vadd.f32 %v2214, %v2380
        %v2415 = vadd.f32 %v2215, %v2385
        %v2416 = vadd.f32 %v2216, %v2390
        %v2417 = vadd.f32 %v2217, %v2395
        %v2418 = vrot.slane %v642, 2
        %v2419 = vrot.slane %v643, 2
        %v2420 = vsel %vm1146, %v2418, %v2419
        %v2421 = vrot.slane %v644, 2
        %v2422 = vsel %vm1146, %v2419, %v2421
        %s2423 = scalar_lea.vmem [#allocation9], 32
        %v2424 = vld [vmem:[%s2423] sm:$0xf]
        %v2425 = vsel %vm526, %v2420, 0
        %v2427 = vsel %vm526, %v2422, 0
        %v2430 = vsel %vm769, %v2424, 0
        %2432 = vmatprep.subr.mxu0 0.0
        %2433 = vmatpush1.msra.mxu0 %v2430
        %2434 = vmatprep.subr.mxu0 0.0
        %2435 = vmatpush1.msra.mxu0 0.0
        %2436 = vmatprep.subr.mxu0 0.0
        %2437 = vmatpush1.msra.mxu0 0.0
        %2438 = vmatprep.subr.mxu0 0.0
        %2439 = vmatpush1.msra.mxu0 0.0
        %2440 = vmatprep.subr.mxu0 0.0
        %2441 = vmatpush1.msra.mxu0 0.0
        %2442 = vmatprep.subr.mxu0 0.0
        %2443 = vmatpush1.msra.mxu0 0.0
        %2444 = vmatprep.subr.mxu0 0.0
        %2445 = vmatpush1.msra.mxu0 0.0
        %2446 = vmatprep.subr.mxu0 0.0
        %2447 = vmatpush1.msra.mxu0 0.0
        %2448 = vmatprep.subr.mxu0 0.0
        %2449 = vmatpush1.msra.mxu0 0.0
        %2450 = vmatprep.subr.mxu0 0.0
        %2451 = vmatpush1.msra.mxu0 0.0
        %2452 = vmatprep.subr.mxu0 0.0
        %2453 = vmatpush1.msra.mxu0 0.0
        %2454 = vmatprep.subr.mxu0 0.0
        %2455 = vmatpush1.msra.mxu0 0.0
        %2456 = vmatprep.subr.mxu0 0.0
        %2457 = vmatpush1.msra.mxu0 0.0
        %2458 = vmatprep.subr.mxu0 0.0
        %2459 = vmatpush1.msra.mxu0 0.0
        %2460 = vmatprep.subr.mxu0 0.0
        %2461 = vmatpush1.msra.mxu0 0.0
        %2462 = vmatprep.subr.mxu0 0.0
        %2463 = vmatpush1.msra.mxu0 0.0
        %2464 = vmatprep.subr.mxu0 0.0
        %2465 = vmatpush1.msra.mxu0 0.0
        %2466 = vmatprep.subr.mxu0 0.0
        %2467 = vmatpush1.msra.mxu0 0.0
        %2468 = vmatprep.subr.mxu0 0.0
        %2469 = vmatpush1.msra.mxu0 0.0
        %2470 = vmatprep.subr.mxu0 0.0
        %2471 = vmatpush1.msra.mxu0 0.0
        %2472 = vmatprep.subr.mxu0 0.0
        %2473 = vmatpush1.msra.mxu0 0.0
        %2474 = vmatprep.subr.mxu0 0.0
        %2475 = vmatpush1.msra.mxu0 0.0
        %2476 = vmatprep.subr.mxu0 0.0
        %2477 = vmatpush1.msra.mxu0 0.0
        %2478 = vmatprep.subr.mxu0 0.0
        %2479 = vmatpush1.msra.mxu0 0.0
        %2480 = vmatprep.subr.mxu0 0.0
        %2481 = vmatpush1.msra.mxu0 0.0
        %2482 = vmatprep.subr.mxu0 0.0
        %2483 = vmatpush1.msra.mxu0 0.0
        %2484 = vmatprep.subr.mxu0 0.0
        %2485 = vmatpush1.msra.mxu0 0.0
        %2486 = vmatprep.subr.mxu0 0.0
        %2487 = vmatpush1.msra.mxu0 0.0
        %2488 = vmatprep.subr.mxu0 0.0
        %2489 = vmatpush1.msra.mxu0 0.0
        %2490 = vmatprep.subr.mxu0 0.0
        %2491 = vmatpush1.msra.mxu0 0.0
        %2492 = vmatprep.subr.mxu0 0.0
        %2493 = vmatpush1.msra.mxu0 0.0
        %2494 = vmatprep.subr.mxu0 0.0
        %2495 = vmatpush1.msra.mxu0 0.0
        %2496 = vmatprep.mubr.f32.mxu0 0.0
        %2497 = vmatmul.mubr.f32.gmra.mrb[0].mxu0 %v1207
        %v2498 = vpop.f32.mrb[0].mxu0
        %v2499 = vadd.f32 0.0, %v2498
        %v2500 = vpop.f32.mrb[0].mxu0
        %2501 = vmatprep.mubr.f32.mxu0 0.0
        %2502 = vmatmul.mubr.f32.gmra.mrb[0].mxu0 %v1209
        %v2503 = vpop.f32.mrb[0].mxu0
        %v2504 = vadd.f32 0.0, %v2503
        %v2505 = vpop.f32.mrb[0].mxu0
        %2506 = vmatprep.mubr.f32.mxu0 0.0
        %2507 = vmatmul.mubr.f32.gmra.mrb[0].mxu0 %v1211
        %v2508 = vpop.f32.mrb[0].mxu0
        %v2509 = vadd.f32 0.0, %v2508
        %v2510 = vpop.f32.mrb[0].mxu0
        %2511 = vmatprep.mubr.f32.mxu0 0.0
        %2512 = vmatmul.mubr.f32.gmra.mrb[0].mxu0 %v1213
        %v2513 = vpop.f32.mrb[0].mxu0
        %v2514 = vadd.f32 0.0, %v2513
        %v2515 = vpop.f32.mrb[0].mxu0
        %2516 = vmatprep.mubr.f32.mxu0 0.0
        %2517 = vmatmul.mubr.f32.gmra.mrb[0].mxu0 %v1215
        %v2518 = vpop.f32.mrb[0].mxu0
        %v2519 = vadd.f32 0.0, %v2518
        %v2520 = vpop.f32.mrb[0].mxu0
        %2521 = vmatprep.mubr.f32.mxu0 0.0
        %2522 = vmatmul.mubr.f32.gmra.mrb[0].mxu0 %v1217
        %v2523 = vpop.f32.mrb[0].mxu0
        %v2524 = vadd.f32 0.0, %v2523
        %v2525 = vpop.f32.mrb[0].mxu0
        %2526 = vmatprep.mubr.f32.mxu0 0.0
        %2527 = vmatmul.mubr.f32.gmra.mrb[0].mxu0 %v1219
        %v2528 = vpop.f32.mrb[0].mxu0
        %v2529 = vadd.f32 0.0, %v2528
        %v2530 = vpop.f32.mrb[0].mxu0
        %2531 = vmatprep.mubr.f32.mxu0 0.0
        %2532 = vmatmul.mubr.f32.gmra.mrb[0].mxu0 %v1221
        %v2533 = vpop.f32.mrb[0].mxu0
        %v2534 = vadd.f32 0.0, %v2533
        %v2535 = vpop.f32.mrb[0].mxu0
        %2536 = vmatprep.mubr.f32.mxu0 0.0
        %2537 = vmatmul.mubr.f32.gmra.mrb[0].mxu0 %v1223
        %v2538 = vpop.f32.mrb[0].mxu0
        %v2539 = vadd.f32 0.0, %v2538
        %v2540 = vpop.f32.mrb[0].mxu0
        %2541 = vmatprep.mubr.f32.mxu0 0.0
        %2542 = vmatmul.mubr.f32.gmra.mrb[0].mxu0 %v1225
        %v2543 = vpop.f32.mrb[0].mxu0
        %v2544 = vadd.f32 0.0, %v2543
        %v2545 = vpop.f32.mrb[0].mxu0
        %2546 = vmatprep.mubr.f32.mxu0 0.0
        %2547 = vmatmul.mubr.f32.gmra.mrb[0].mxu0 %v1227
        %v2548 = vpop.f32.mrb[0].mxu0
        %v2549 = vadd.f32 0.0, %v2548
        %v2550 = vpop.f32.mrb[0].mxu0
        %2551 = vmatprep.mubr.f32.mxu0 0.0
        %2552 = vmatmul.mubr.f32.gmra.mrb[0].mxu0 %v1229
        %v2553 = vpop.f32.mrb[0].mxu0
        %v2554 = vadd.f32 0.0, %v2553
        %v2555 = vpop.f32.mrb[0].mxu0
        %2556 = vmatprep.mubr.f32.mxu0 0.0
        %2557 = vmatmul.mubr.f32.gmra.mrb[0].mxu0 %v1231
        %v2558 = vpop.f32.mrb[0].mxu0
        %v2559 = vadd.f32 0.0, %v2558
        %v2560 = vpop.f32.mrb[0].mxu0
        %2561 = vmatprep.mubr.f32.mxu0 0.0
        %2562 = vmatmul.mubr.f32.gmra.mrb[0].mxu0 %v1233
        %v2563 = vpop.f32.mrb[0].mxu0
        %v2564 = vadd.f32 0.0, %v2563
        %v2565 = vpop.f32.mrb[0].mxu0
        %2566 = vmatprep.mubr.f32.mxu0 0.0
        %2567 = vmatmul.mubr.f32.gmra.mrb[0].mxu0 %v1235
        %v2568 = vpop.f32.mrb[0].mxu0
        %v2569 = vadd.f32 0.0, %v2568
        %v2570 = vpop.f32.mrb[0].mxu0
        %2571 = vmatprep.mubr.f32.mxu0 0.0
        %2572 = vmatmul.mubr.f32.gmra.mrb[0].mxu0 %v1237
        %v2573 = vpop.f32.mrb[0].mxu0
        %v2574 = vadd.f32 0.0, %v2573
        %v2575 = vpop.f32.mrb[0].mxu0
        %2576 = vmatprep.mubr.f32.mxu0 0.0
        %2577 = vmatmul.mubr.f32.gmra.mrb[0].mxu0 %v1830
        %v2578 = vpop.f32.mrb[0].mxu0
        %v2579 = vadd.f32 0.0, %v2578
        %v2580 = vpop.f32.mrb[0].mxu0
        %2581 = vmatprep.mubr.f32.mxu0 0.0
        %2582 = vmatmul.mubr.f32.gmra.mrb[0].mxu0 %v1832
        %v2583 = vpop.f32.mrb[0].mxu0
        %v2584 = vadd.f32 0.0, %v2583
        %v2585 = vpop.f32.mrb[0].mxu0
        %2586 = vmatprep.mubr.f32.mxu0 0.0
        %2587 = vmatmul.mubr.f32.gmra.mrb[0].mxu0 %v2425
        %v2588 = vpop.f32.mrb[0].mxu0
        %v2589 = vadd.f32 0.0, %v2588
        %v2590 = vpop.f32.mrb[0].mxu0
        %2591 = vmatprep.mubr.f32.mxu0 0.0
        %2592 = vmatmul.mubr.f32.gmra.mrb[0].mxu0 %v2427
        %v2593 = vpop.f32.mrb[0].mxu0
        %v2594 = vadd.f32 0.0, %v2593
        %v2595 = vpop.f32.mrb[0].mxu0
        %2596 = vdwg.mxu0
        %v2597 = vadd.f32 %v2398, %v2499
        %v2598 = vadd.f32 %v2399, %v2504
        %v2599 = vadd.f32 %v2400, %v2509
        %v2600 = vadd.f32 %v2401, %v2514
        %v2601 = vadd.f32 %v2402, %v2519
        %v2602 = vadd.f32 %v2403, %v2524
        %v2603 = vadd.f32 %v2404, %v2529
        %v2604 = vadd.f32 %v2405, %v2534
        %v2605 = vadd.f32 %v2406, %v2539
        %v2606 = vadd.f32 %v2407, %v2544
        %v2607 = vadd.f32 %v2408, %v2549
        %v2608 = vadd.f32 %v2409, %v2554
        %v2609 = vadd.f32 %v2410, %v2559
        %v2610 = vadd.f32 %v2411, %v2564
        %v2611 = vadd.f32 %v2412, %v2569
        %v2612 = vadd.f32 %v2413, %v2574
        %v2613 = vadd.f32 %v2414, %v2579
        %v2614 = vadd.f32 %v2415, %v2584
        %v2615 = vadd.f32 %v2416, %v2589
        %v2616 = vadd.f32 %v2417, %v2594
        %v2617 = vld [vmem:[#allocation11] sm:$0x1]
        %v2619 = vlaneseq
        %v2620 = vshrl.u32 %v2619, 7
        %v2621 = vsub.s32 0, %v2620
        %v2622 = vrot.slane %v2617, %v2621
        %v2624 = vadd.f32 %v2597, %v2622
        %v2625 = vadd.f32 %v2598, %v2622
        %v2626 = vadd.f32 %v2599, %v2622
        %v2627 = vadd.f32 %v2600, %v2622
        %v2628 = vadd.f32 %v2601, %v2622
        %v2629 = vadd.f32 %v2602, %v2622
        %v2630 = vadd.f32 %v2603, %v2622
        %v2631 = vadd.f32 %v2604, %v2622
        %v2632 = vadd.f32 %v2605, %v2622
        %v2633 = vadd.f32 %v2606, %v2622
        %v2634 = vadd.f32 %v2607, %v2622
        %v2635 = vadd.f32 %v2608, %v2622
        %v2636 = vadd.f32 %v2609, %v2622
        %v2637 = vadd.f32 %v2610, %v2622
        %v2638 = vadd.f32 %v2611, %v2622
        %v2639 = vadd.f32 %v2612, %v2622
        %v2640 = vadd.f32 %v2613, %v2622
        %v2641 = vadd.f32 %v2614, %v2622
        %v2642 = vadd.f32 %v2615, %v2622
        %v2643 = vadd.f32 %v2616, %v2622
        %v2644 = vmax.f32 %v2624, 0.0
        %v2645 = vmax.f32 %v2625, 0.0
        %v2646 = vmax.f32 %v2626, 0.0
        %v2647 = vmax.f32 %v2627, 0.0
        %v2648 = vmax.f32 %v2628, 0.0
        %v2649 = vmax.f32 %v2629, 0.0
        %v2650 = vmax.f32 %v2630, 0.0
        %v2651 = vmax.f32 %v2631, 0.0
        %v2652 = vmax.f32 %v2632, 0.0
        %v2653 = vmax.f32 %v2633, 0.0
        %v2654 = vmax.f32 %v2634, 0.0
        %v2655 = vmax.f32 %v2635, 0.0
        %v2656 = vmax.f32 %v2636, 0.0
        %v2657 = vmax.f32 %v2637, 0.0
        %v2658 = vmax.f32 %v2638, 0.0
        %v2659 = vmax.f32 %v2639, 0.0
        %v2660 = vmax.f32 %v2640, 0.0
        %v2661 = vmax.f32 %v2641, 0.0
        %v2662 = vmax.f32 %v2642, 0.0
        %v2663 = vmax.f32 %v2643, 0.0
        %s2664 = scalar_lea.vmem [#allocation2], 24
        %2665 = vst.msk [vmem:[%s2664 + $0x1] sm:$0xff] %vm526, %v2644
        %2666 = vst.msk [vmem:[%s2664 + $0x9] sm:$0xff] %vm526, %v2645
        %2667 = vst.msk [vmem:[%s2664 + $0x19] sm:$0xff] %vm526, %v2646
        %2668 = vst.msk [vmem:[%s2664 + $0x21] sm:$0xff] %vm526, %v2647
        %2669 = vst.msk [vmem:[%s2664 + $0x31] sm:$0xff] %vm526, %v2648
        %2670 = vst.msk [vmem:[%s2664 + $0x39] sm:$0xff] %vm526, %v2649
        %2671 = vst.msk [vmem:[%s2664 + $0x49] sm:$0xff] %vm526, %v2650
        %2672 = vst.msk [vmem:[%s2664 + $0x51] sm:$0xff] %vm526, %v2651
        %2673 = vst.msk [vmem:[%s2664 + $0x61] sm:$0xff] %vm526, %v2652
        %2674 = vst.msk [vmem:[%s2664 + $0x69] sm:$0xff] %vm526, %v2653
        %2675 = vst.msk [vmem:[%s2664 + $0x79] sm:$0xff] %vm526, %v2654
        %2676 = vst.msk [vmem:[%s2664 + $0x81] sm:$0xff] %vm526, %v2655
        %2677 = vst.msk [vmem:[%s2664 + $0x91] sm:$0xff] %vm526, %v2656
        %2678 = vst.msk [vmem:[%s2664 + $0x99] sm:$0xff] %vm526, %v2657
        %2679 = vst.msk [vmem:[%s2664 + $0xa9] sm:$0xff] %vm526, %v2658
        %2680 = vst.msk [vmem:[%s2664 + $0xb1] sm:$0xff] %vm526, %v2659
        %2681 = vst.msk [vmem:[%s2664 + $0xc1] sm:$0xff] %vm526, %v2660
        %2682 = vst.msk [vmem:[%s2664 + $0xc9] sm:$0xff] %vm526, %v2661
        %2683 = vst.msk [vmem:[%s2664 + $0xd9] sm:$0xff] %vm526, %v2662
        %2684 = vst.msk [vmem:[%s2664 + $0xe1] sm:$0xff] %vm526, %v2663
        // Predicated region
        $region85: #{tpu_custom_call.1} parent=47 // pred_check
          %p2685 = pneg %p593
        $region86: #{tpu_custom_call.1} parent=47 // pred_check_branch
          %2687 = sbr.rel (%p2685) target = $region88
        $region87: #{tpu_custom_call.1} parent=47 // pred_region
          %2688 = vst.msk [vmem:[%s2664 + $0x1] sm:$0xff] %vm526, 0.0
          %2689 = vst.msk [vmem:[%s2664 + $0x9] sm:$0xff] %vm526, 0.0
        $region88: #{tpu_custom_call.1} parent=47 // pred_fallthru
          _
        // Predicated region
        $region89: #{tpu_custom_call.1} parent=47 // pred_check
          %p2690 = pneg %p601
        $region90: #{tpu_custom_call.1} parent=47 // pred_check_branch
          %2692 = sbr.rel (%p2690) target = $region92
        $region91: #{tpu_custom_call.1} parent=47 // pred_region
          %2693 = vst.msk [vmem:[%s588 + $0x1] sm:$0xff] %vm526, 0.0
          %2694 = vst.msk [vmem:[%s588 + $0x9] sm:$0xff] %vm526, 0.0
        $region92: #{tpu_custom_call.1} parent=47 // pred_fallthru
          _
        %v2695 = vld [vmem:[#allocation2 + $0x18] sm:$0xff]
        %v2696 = vld [vmem:[#allocation2 + $0x20] sm:$0xff]
        %v2697 = vld [vmem:[#allocation2 + $0x28] sm:$0x3]
        %v2698 = vld [vmem:[#allocation2 + $0x30] sm:$0xff]
        %v2699 = vld [vmem:[#allocation2 + $0x38] sm:$0xff]
        %v2700 = vld [vmem:[#allocation2 + $0x40] sm:$0x3]
        %v2701 = vld [vmem:[#allocation2 + $0x48] sm:$0xff]
        %v2702 = vld [vmem:[#allocation2 + $0x50] sm:$0xff]
        %v2703 = vld [vmem:[#allocation2 + $0x58] sm:$0x3]
        %v2704 = vld [vmem:[#allocation2 + $0x60] sm:$0xff]
        %v2705 = vld [vmem:[#allocation2 + $0x68] sm:$0xff]
        %v2706 = vld [vmem:[#allocation2 + $0x70] sm:$0x3]
        %v2707 = vld [vmem:[#allocation2 + $0x78] sm:$0xff]
        %v2708 = vld [vmem:[#allocation2 + $0x80] sm:$0xff]
        %v2709 = vld [vmem:[#allocation2 + $0x88] sm:$0x3]
        %v2710 = vld [vmem:[#allocation2 + $0x90] sm:$0xff]
        %v2711 = vld [vmem:[#allocation2 + $0x98] sm:$0xff]
        %v2712 = vld [vmem:[#allocation2 + $0xa0] sm:$0x3]
        %v2713 = vld [vmem:[#allocation2 + $0xa8] sm:$0xff]
        %v2714 = vld [vmem:[#allocation2 + $0xb0] sm:$0xff]
        %v2715 = vld [vmem:[#allocation2 + $0xb8] sm:$0x3]
        %v2716 = vld [vmem:[#allocation2 + $0xc0] sm:$0xff]
        %v2717 = vld [vmem:[#allocation2 + $0xc8] sm:$0xff]
        %v2718 = vld [vmem:[#allocation2 + $0xd0] sm:$0x3]
        %v2719 = vld [vmem:[#allocation2 + $0xd8] sm:$0xff]
        %v2720 = vld [vmem:[#allocation2 + $0xe0] sm:$0xff]
        %v2721 = vld [vmem:[#allocation2 + $0xe8] sm:$0x3]
        %v2722 = vld [vmem:[#allocation2 + $0xf0] sm:$0xff]
        %v2723 = vld [vmem:[#allocation2 + $0xf8] sm:$0xff]
        %v2724 = vld [vmem:[#allocation2 + $0x100] sm:$0x3]
        %v2725 = vld [vmem:[#allocation12] sm:$0xf]
        %v2750 = vrot.slane %v2695, 1
        %v2751 = vrot.slane %v2696, 1
        %v2752 = vsel %vm676, %v2750, %v2751
        %v2753 = vrot.slane %v2697, 1
        %v2754 = vsel %vm676, %v2751, %v2753
        %v2755 = vrot.slane %v2698, 1
        %v2756 = vrot.slane %v2699, 1
        %v2757 = vsel %vm676, %v2755, %v2756
        %v2758 = vrot.slane %v2700, 1
        %v2759 = vsel %vm676, %v2756, %v2758
        %v2760 = vrot.slane %v2701, 1
        %v2761 = vrot.slane %v2702, 1
        %v2762 = vsel %vm676, %v2760, %v2761
        %v2763 = vrot.slane %v2703, 1
        %v2764 = vsel %vm676, %v2761, %v2763
        %v2765 = vrot.slane %v2704, 1
        %v2766 = vrot.slane %v2705, 1
        %v2767 = vsel %vm676, %v2765, %v2766
        %v2768 = vrot.slane %v2706, 1
        %v2769 = vsel %vm676, %v2766, %v2768
        %v2770 = vrot.slane %v2707, 1
        %v2771 = vrot.slane %v2708, 1
        %v2772 = vsel %vm676, %v2770, %v2771
        %v2773 = vrot.slane %v2709, 1
        %v2774 = vsel %vm676, %v2771, %v2773
        %v2775 = vrot.slane %v2710, 1
        %v2776 = vrot.slane %v2711, 1
        %v2777 = vsel %vm676, %v2775, %v2776
        %v2778 = vrot.slane %v2712, 1
        %v2779 = vsel %vm676, %v2776, %v2778
        %v2780 = vrot.slane %v2713, 1
        %v2781 = vrot.slane %v2714, 1
        %v2782 = vsel %vm676, %v2780, %v2781
        %v2783 = vrot.slane %v2715, 1
        %v2784 = vsel %vm676, %v2781, %v2783
        %v2785 = vrot.slane %v2716, 1
        %v2786 = vrot.slane %v2717, 1
        %v2787 = vsel %vm676, %v2785, %v2786
        %v2788 = vrot.slane %v2718, 1
        %v2789 = vsel %vm676, %v2786, %v2788
        %s2790 = scalar_lea.vmem [#allocation12], 4
        %v2791 = vld [vmem:[%s2790] sm:$0xf]
        %v2792 = vsel %vm526, %v2752, 0
        %v2794 = vsel %vm526, %v2754, 0
        %v2796 = vsel %vm526, %v2757, 0
        %v2798 = vsel %vm526, %v2759, 0
        %v2800 = vsel %vm526, %v2762, 0
        %v2802 = vsel %vm526, %v2764, 0
        %v2804 = vsel %vm526, %v2767, 0
        %v2806 = vsel %vm526, %v2769, 0
        %v2808 = vsel %vm526, %v2772, 0
        %v2810 = vsel %vm526, %v2774, 0
        %v2812 = vsel %vm526, %v2777, 0
        %v2814 = vsel %vm526, %v2779, 0
        %v2816 = vsel %vm526, %v2782, 0
        %v2818 = vsel %vm526, %v2784, 0
        %v2820 = vsel %vm526, %v2787, 0
        %v2822 = vsel %vm526, %v2789, 0
        %v2825 = vsel %vm769, %v2791, 0
        %2827 = vmatprep.subr.mxu0 0.0
        %2828 = vmatpush1.msra.mxu0 %v2825
        %2829 = vmatprep.subr.mxu0 0.0
        %2830 = vmatpush1.msra.mxu0 0.0
        %2831 = vmatprep.subr.mxu0 0.0
        %2832 = vmatpush1.msra.mxu0 0.0
        %2833 = vmatprep.subr.mxu0 0.0
        %2834 = vmatpush1.msra.mxu0 0.0
        %2835 = vmatprep.subr.mxu0 0.0
        %2836 = vmatpush1.msra.mxu0 0.0
        %2837 = vmatprep.subr.mxu0 0.0
        %2838 = vmatpush1.msra.mxu0 0.0
        %2839 = vmatprep.subr.mxu0 0.0
        %2840 = vmatpush1.msra.mxu0 0.0
        %2841 = vmatprep.subr.mxu0 0.0
        %2842 = vmatpush1.msra.mxu0 0.0
        %2843 = vmatprep.subr.mxu0 0.0
        %2844 = vmatpush1.msra.mxu0 0.0
        %2845 = vmatprep.subr.mxu0 0.0
        %2846 = vmatpush1.msra.mxu0 0.0
        %2847 = vmatprep.subr.mxu0 0.0
        %2848 = vmatpush1.msra.mxu0 0.0
        %2849 = vmatprep.subr.mxu0 0.0
        %2850 = vmatpush1.msra.mxu0 0.0
        %2851 = vmatprep.subr.mxu0 0.0
        %2852 = vmatpush1.msra.mxu0 0.0
        %2853 = vmatprep.subr.mxu0 0.0
        %2854 = vmatpush1.msra.mxu0 0.0
        %2855 = vmatprep.subr.mxu0 0.0
        %2856 = vmatpush1.msra.mxu0 0.0
        %2857 = vmatprep.subr.mxu0 0.0
        %2858 = vmatpush1.msra.mxu0 0.0
        %2859 = vmatprep.subr.mxu0 0.0
        %2860 = vmatpush1.msra.mxu0 0.0
        %2861 = vmatprep.subr.mxu0 0.0
        %2862 = vmatpush1.msra.mxu0 0.0
        %2863 = vmatprep.subr.mxu0 0.0
        %2864 = vmatpush1.msra.mxu0 0.0
        %2865 = vmatprep.subr.mxu0 0.0
        %2866 = vmatpush1.msra.mxu0 0.0
        %2867 = vmatprep.subr.mxu0 0.0
        %2868 = vmatpush1.msra.mxu0 0.0
        %2869 = vmatprep.subr.mxu0 0.0
        %2870 = vmatpush1.msra.mxu0 0.0
        %2871 = vmatprep.subr.mxu0 0.0
        %2872 = vmatpush1.msra.mxu0 0.0
        %2873 = vmatprep.subr.mxu0 0.0
        %2874 = vmatpush1.msra.mxu0 0.0
        %2875 = vmatprep.subr.mxu0 0.0
        %2876 = vmatpush1.msra.mxu0 0.0
        %2877 = vmatprep.subr.mxu0 0.0
        %2878 = vmatpush1.msra.mxu0 0.0
        %2879 = vmatprep.subr.mxu0 0.0
        %2880 = vmatpush1.msra.mxu0 0.0
        %2881 = vmatprep.subr.mxu0 0.0
        %2882 = vmatpush1.msra.mxu0 0.0
        %2883 = vmatprep.subr.mxu0 0.0
        %2884 = vmatpush1.msra.mxu0 0.0
        %2885 = vmatprep.subr.mxu0 0.0
        %2886 = vmatpush1.msra.mxu0 0.0
        %2887 = vmatprep.subr.mxu0 0.0
        %2888 = vmatpush1.msra.mxu0 0.0
        %2889 = vmatprep.subr.mxu0 0.0
        %2890 = vmatpush1.msra.mxu0 0.0
        %2891 = vmatprep.mubr.f32.mxu0 0.0
        %2892 = vmatmul.mubr.f32.gmra.mrb[0].mxu0 %v2792
        %v2893 = vpop.f32.mrb[0].mxu0
        %v2894 = vadd.f32 0.0, %v2893
        %v2895 = vpop.f32.mrb[0].mxu0
        %2896 = vmatprep.mubr.f32.mxu0 0.0
        %2897 = vmatmul.mubr.f32.gmra.mrb[0].mxu0 %v2794
        %v2898 = vpop.f32.mrb[0].mxu0
        %v2899 = vadd.f32 0.0, %v2898
        %v2900 = vpop.f32.mrb[0].mxu0
        %2901 = vmatprep.mubr.f32.mxu0 0.0
        %2902 = vmatmul.mubr.f32.gmra.mrb[0].mxu0 %v2796
        %v2903 = vpop.f32.mrb[0].mxu0
        %v2904 = vadd.f32 0.0, %v2903
        %v2905 = vpop.f32.mrb[0].mxu0
        %2906 = vmatprep.mubr.f32.mxu0 0.0
        %2907 = vmatmul.mubr.f32.gmra.mrb[0].mxu0 %v2798
        %v2908 = vpop.f32.mrb[0].mxu0
        %v2909 = vadd.f32 0.0, %v2908
        %v2910 = vpop.f32.mrb[0].mxu0
        %2911 = vmatprep.mubr.f32.mxu0 0.0
        %2912 = vmatmul.mubr.f32.gmra.mrb[0].mxu0 %v2800
        %v2913 = vpop.f32.mrb[0].mxu0
        %v2914 = vadd.f32 0.0, %v2913
        %v2915 = vpop.f32.mrb[0].mxu0
        %2916 = vmatprep.mubr.f32.mxu0 0.0
        %2917 = vmatmul.mubr.f32.gmra.mrb[0].mxu0 %v2802
        %v2918 = vpop.f32.mrb[0].mxu0
        %v2919 = vadd.f32 0.0, %v2918
        %v2920 = vpop.f32.mrb[0].mxu0
        %2921 = vmatprep.mubr.f32.mxu0 0.0
        %2922 = vmatmul.mubr.f32.gmra.mrb[0].mxu0 %v2804
        %v2923 = vpop.f32.mrb[0].mxu0
        %v2924 = vadd.f32 0.0, %v2923
        %v2925 = vpop.f32.mrb[0].mxu0
        %2926 = vmatprep.mubr.f32.mxu0 0.0
        %2927 = vmatmul.mubr.f32.gmra.mrb[0].mxu0 %v2806
        %v2928 = vpop.f32.mrb[0].mxu0
        %v2929 = vadd.f32 0.0, %v2928
        %v2930 = vpop.f32.mrb[0].mxu0
        %2931 = vmatprep.mubr.f32.mxu0 0.0
        %2932 = vmatmul.mubr.f32.gmra.mrb[0].mxu0 %v2808
        %v2933 = vpop.f32.mrb[0].mxu0
        %v2934 = vadd.f32 0.0, %v2933
        %v2935 = vpop.f32.mrb[0].mxu0
        %2936 = vmatprep.mubr.f32.mxu0 0.0
        %2937 = vmatmul.mubr.f32.gmra.mrb[0].mxu0 %v2810
        %v2938 = vpop.f32.mrb[0].mxu0
        %v2939 = vadd.f32 0.0, %v2938
        %v2940 = vpop.f32.mrb[0].mxu0
        %2941 = vmatprep.mubr.f32.mxu0 0.0
        %2942 = vmatmul.mubr.f32.gmra.mrb[0].mxu0 %v2812
        %v2943 = vpop.f32.mrb[0].mxu0
        %v2944 = vadd.f32 0.0, %v2943
        %v2945 = vpop.f32.mrb[0].mxu0
        %2946 = vmatprep.mubr.f32.mxu0 0.0
        %2947 = vmatmul.mubr.f32.gmra.mrb[0].mxu0 %v2814
        %v2948 = vpop.f32.mrb[0].mxu0
        %v2949 = vadd.f32 0.0, %v2948
        %v2950 = vpop.f32.mrb[0].mxu0
        %2951 = vmatprep.mubr.f32.mxu0 0.0
        %2952 = vmatmul.mubr.f32.gmra.mrb[0].mxu0 %v2816
        %v2953 = vpop.f32.mrb[0].mxu0
        %v2954 = vadd.f32 0.0, %v2953
        %v2955 = vpop.f32.mrb[0].mxu0
        %2956 = vmatprep.mubr.f32.mxu0 0.0
        %2957 = vmatmul.mubr.f32.gmra.mrb[0].mxu0 %v2818
        %v2958 = vpop.f32.mrb[0].mxu0
        %v2959 = vadd.f32 0.0, %v2958
        %v2960 = vpop.f32.mrb[0].mxu0
        %2961 = vmatprep.mubr.f32.mxu0 0.0
        %2962 = vmatmul.mubr.f32.gmra.mrb[0].mxu0 %v2820
        %v2963 = vpop.f32.mrb[0].mxu0
        %v2964 = vadd.f32 0.0, %v2963
        %v2965 = vpop.f32.mrb[0].mxu0
        %2966 = vmatprep.mubr.f32.mxu0 0.0
        %2967 = vmatmul.mubr.f32.gmra.mrb[0].mxu0 %v2822
        %v2968 = vpop.f32.mrb[0].mxu0
        %v2969 = vadd.f32 0.0, %v2968
        %v2970 = vpop.f32.mrb[0].mxu0
        %2971 = vdwg.mxu0
        %v2972 = vsel %vm526, %v2695, 0
        %v2974 = vsel %vm526, %v2696, 0
        %v2976 = vsel %vm526, %v2698, 0
        %v2978 = vsel %vm526, %v2699, 0
        %v2980 = vsel %vm526, %v2701, 0
        %v2982 = vsel %vm526, %v2702, 0
        %v2984 = vsel %vm526, %v2704, 0
        %v2986 = vsel %vm526, %v2705, 0
        %v2988 = vsel %vm526, %v2707, 0
        %v2990 = vsel %vm526, %v2708, 0
        %v2992 = vsel %vm526, %v2710, 0
        %v2994 = vsel %vm526, %v2711, 0
        %v2996 = vsel %vm526, %v2713, 0
        %v2998 = vsel %vm526, %v2714, 0
        %v3000 = vsel %vm526, %v2716, 0
        %v3002 = vsel %vm526, %v2717, 0
        %v3005 = vsel %vm769, %v2725, 0
        %3007 = vmatprep.subr.mxu0 0.0
        %3008 = vmatpush1.msra.mxu0 %v3005
        %3009 = vmatprep.subr.mxu0 0.0
        %3010 = vmatpush1.msra.mxu0 0.0
        %3011 = vmatprep.subr.mxu0 0.0
        %3012 = vmatpush1.msra.mxu0 0.0
        %3013 = vmatprep.subr.mxu0 0.0
        %3014 = vmatpush1.msra.mxu0 0.0
        %3015 = vmatprep.subr.mxu0 0.0
        %3016 = vmatpush1.msra.mxu0 0.0
        %3017 = vmatprep.subr.mxu0 0.0
        %3018 = vmatpush1.msra.mxu0 0.0
        %3019 = vmatprep.subr.mxu0 0.0
        %3020 = vmatpush1.msra.mxu0 0.0
        %3021 = vmatprep.subr.mxu0 0.0
        %3022 = vmatpush1.msra.mxu0 0.0
        %3023 = vmatprep.subr.mxu0 0.0
        %3024 = vmatpush1.msra.mxu0 0.0
        %3025 = vmatprep.subr.mxu0 0.0
        %3026 = vmatpush1.msra.mxu0 0.0
        %3027 = vmatprep.subr.mxu0 0.0
        %3028 = vmatpush1.msra.mxu0 0.0
        %3029 = vmatprep.subr.mxu0 0.0
        %3030 = vmatpush1.msra.mxu0 0.0
        %3031 = vmatprep.subr.mxu0 0.0
        %3032 = vmatpush1.msra.mxu0 0.0
        %3033 = vmatprep.subr.mxu0 0.0
        %3034 = vmatpush1.msra.mxu0 0.0
        %3035 = vmatprep.subr.mxu0 0.0
        %3036 = vmatpush1.msra.mxu0 0.0
        %3037 = vmatprep.subr.mxu0 0.0
        %3038 = vmatpush1.msra.mxu0 0.0
        %3039 = vmatprep.subr.mxu0 0.0
        %3040 = vmatpush1.msra.mxu0 0.0
        %3041 = vmatprep.subr.mxu0 0.0
        %3042 = vmatpush1.msra.mxu0 0.0
        %3043 = vmatprep.subr.mxu0 0.0
        %3044 = vmatpush1.msra.mxu0 0.0
        %3045 = vmatprep.subr.mxu0 0.0
        %3046 = vmatpush1.msra.mxu0 0.0
        %3047 = vmatprep.subr.mxu0 0.0
        %3048 = vmatpush1.msra.mxu0 0.0
        %3049 = vmatprep.subr.mxu0 0.0
        %3050 = vmatpush1.msra.mxu0 0.0
        %3051 = vmatprep.subr.mxu0 0.0
        %3052 = vmatpush1.msra.mxu0 0.0
        %3053 = vmatprep.subr.mxu0 0.0
        %3054 = vmatpush1.msra.mxu0 0.0
        %3055 = vmatprep.subr.mxu0 0.0
        %3056 = vmatpush1.msra.mxu0 0.0
        %3057 = vmatprep.subr.mxu0 0.0
        %3058 = vmatpush1.msra.mxu0 0.0
        %3059 = vmatprep.subr.mxu0 0.0
        %3060 = vmatpush1.msra.mxu0 0.0
        %3061 = vmatprep.subr.mxu0 0.0
        %3062 = vmatpush1.msra.mxu0 0.0
        %3063 = vmatprep.subr.mxu0 0.0
        %3064 = vmatpush1.msra.mxu0 0.0
        %3065 = vmatprep.subr.mxu0 0.0
        %3066 = vmatpush1.msra.mxu0 0.0
        %3067 = vmatprep.subr.mxu0 0.0
        %3068 = vmatpush1.msra.mxu0 0.0
        %3069 = vmatprep.subr.mxu0 0.0
        %3070 = vmatpush1.msra.mxu0 0.0
        %3071 = vmatprep.mubr.f32.mxu0 0.0
        %3072 = vmatmul.mubr.f32.gmra.mrb[0].mxu0 %v2972
        %v3073 = vpop.f32.mrb[0].mxu0
        %v3074 = vadd.f32 %v2894, %v3073
        %v3075 = vpop.f32.mrb[0].mxu0
        %3076 = vmatprep.mubr.f32.mxu0 0.0
        %3077 = vmatmul.mubr.f32.gmra.mrb[0].mxu0 %v2974
        %v3078 = vpop.f32.mrb[0].mxu0
        %v3079 = vadd.f32 %v2899, %v3078
        %v3080 = vpop.f32.mrb[0].mxu0
        %3081 = vmatprep.mubr.f32.mxu0 0.0
        %3082 = vmatmul.mubr.f32.gmra.mrb[0].mxu0 %v2976
        %v3083 = vpop.f32.mrb[0].mxu0
        %v3084 = vadd.f32 %v2904, %v3083
        %v3085 = vpop.f32.mrb[0].mxu0
        %3086 = vmatprep.mubr.f32.mxu0 0.0
        %3087 = vmatmul.mubr.f32.gmra.mrb[0].mxu0 %v2978
        %v3088 = vpop.f32.mrb[0].mxu0
        %v3089 = vadd.f32 %v2909, %v3088
        %v3090 = vpop.f32.mrb[0].mxu0
        %3091 = vmatprep.mubr.f32.mxu0 0.0
        %3092 = vmatmul.mubr.f32.gmra.mrb[0].mxu0 %v2980
        %v3093 = vpop.f32.mrb[0].mxu0
        %v3094 = vadd.f32 %v2914, %v3093
        %v3095 = vpop.f32.mrb[0].mxu0
        %3096 = vmatprep.mubr.f32.mxu0 0.0
        %3097 = vmatmul.mubr.f32.gmra.mrb[0].mxu0 %v2982
        %v3098 = vpop.f32.mrb[0].mxu0
        %v3099 = vadd.f32 %v2919, %v3098
        %v3100 = vpop.f32.mrb[0].mxu0
        %3101 = vmatprep.mubr.f32.mxu0 0.0
        %3102 = vmatmul.mubr.f32.gmra.mrb[0].mxu0 %v2984
        %v3103 = vpop.f32.mrb[0].mxu0
        %v3104 = vadd.f32 %v2924, %v3103
        %v3105 = vpop.f32.mrb[0].mxu0
        %3106 = vmatprep.mubr.f32.mxu0 0.0
        %3107 = vmatmul.mubr.f32.gmra.mrb[0].mxu0 %v2986
        %v3108 = vpop.f32.mrb[0].mxu0
        %v3109 = vadd.f32 %v2929, %v3108
        %v3110 = vpop.f32.mrb[0].mxu0
        %3111 = vmatprep.mubr.f32.mxu0 0.0
        %3112 = vmatmul.mubr.f32.gmra.mrb[0].mxu0 %v2988
        %v3113 = vpop.f32.mrb[0].mxu0
        %v3114 = vadd.f32 %v2934, %v3113
        %v3115 = vpop.f32.mrb[0].mxu0
        %3116 = vmatprep.mubr.f32.mxu0 0.0
        %3117 = vmatmul.mubr.f32.gmra.mrb[0].mxu0 %v2990
        %v3118 = vpop.f32.mrb[0].mxu0
        %v3119 = vadd.f32 %v2939, %v3118
        %v3120 = vpop.f32.mrb[0].mxu0
        %3121 = vmatprep.mubr.f32.mxu0 0.0
        %3122 = vmatmul.mubr.f32.gmra.mrb[0].mxu0 %v2992
        %v3123 = vpop.f32.mrb[0].mxu0
        %v3124 = vadd.f32 %v2944, %v3123
        %v3125 = vpop.f32.mrb[0].mxu0
        %3126 = vmatprep.mubr.f32.mxu0 0.0
        %3127 = vmatmul.mubr.f32.gmra.mrb[0].mxu0 %v2994
        %v3128 = vpop.f32.mrb[0].mxu0
        %v3129 = vadd.f32 %v2949, %v3128
        %v3130 = vpop.f32.mrb[0].mxu0
        %3131 = vmatprep.mubr.f32.mxu0 0.0
        %3132 = vmatmul.mubr.f32.gmra.mrb[0].mxu0 %v2996
        %v3133 = vpop.f32.mrb[0].mxu0
        %v3134 = vadd.f32 %v2954, %v3133
        %v3135 = vpop.f32.mrb[0].mxu0
        %3136 = vmatprep.mubr.f32.mxu0 0.0
        %3137 = vmatmul.mubr.f32.gmra.mrb[0].mxu0 %v2998
        %v3138 = vpop.f32.mrb[0].mxu0
        %v3139 = vadd.f32 %v2959, %v3138
        %v3140 = vpop.f32.mrb[0].mxu0
        %3141 = vmatprep.mubr.f32.mxu0 0.0
        %3142 = vmatmul.mubr.f32.gmra.mrb[0].mxu0 %v3000
        %v3143 = vpop.f32.mrb[0].mxu0
        %v3144 = vadd.f32 %v2964, %v3143
        %v3145 = vpop.f32.mrb[0].mxu0
        %3146 = vmatprep.mubr.f32.mxu0 0.0
        %3147 = vmatmul.mubr.f32.gmra.mrb[0].mxu0 %v3002
        %v3148 = vpop.f32.mrb[0].mxu0
        %v3149 = vadd.f32 %v2969, %v3148
        %v3150 = vpop.f32.mrb[0].mxu0
        %3151 = vdwg.mxu0
        %v3152 = vrot.slane %v2695, 2
        %v3153 = vrot.slane %v2696, 2
        %v3154 = vsel %vm1146, %v3152, %v3153
        %v3155 = vrot.slane %v2697, 2
        %v3156 = vsel %vm1146, %v3153, %v3155
        %v3157 = vrot.slane %v2698, 2
        %v3158 = vrot.slane %v2699, 2
        %v3159 = vsel %vm1146, %v3157, %v3158
        %v3160 = vrot.slane %v2700, 2
        %v3161 = vsel %vm1146, %v3158, %v3160
        %v3162 = vrot.slane %v2701, 2
        %v3163 = vrot.slane %v2702, 2
        %v3164 = vsel %vm1146, %v3162, %v3163
        %v3165 = vrot.slane %v2703, 2
        %v3166 = vsel %vm1146, %v3163, %v3165
        %v3167 = vrot.slane %v2704, 2
        %v3168 = vrot.slane %v2705, 2
        %v3169 = vsel %vm1146, %v3167, %v3168
        %v3170 = vrot.slane %v2706, 2
        %v3171 = vsel %vm1146, %v3168, %v3170
        %v3172 = vrot.slane %v2707, 2
        %v3173 = vrot.slane %v2708, 2
        %v3174 = vsel %vm1146, %v3172, %v3173
        %v3175 = vrot.slane %v2709, 2
        %v3176 = vsel %vm1146, %v3173, %v3175
        %v3177 = vrot.slane %v2710, 2
        %v3178 = vrot.slane %v2711, 2
        %v3179 = vsel %vm1146, %v3177, %v3178
        %v3180 = vrot.slane %v2712, 2
        %v3181 = vsel %vm1146, %v3178, %v3180
        %v3182 = vrot.slane %v2713, 2
        %v3183 = vrot.slane %v2714, 2
        %v3184 = vsel %vm1146, %v3182, %v3183
        %v3185 = vrot.slane %v2715, 2
        %v3186 = vsel %vm1146, %v3183, %v3185
        %v3187 = vrot.slane %v2716, 2
        %v3188 = vrot.slane %v2717, 2
        %v3189 = vsel %vm1146, %v3187, %v3188
        %v3190 = vrot.slane %v2718, 2
        %v3191 = vsel %vm1146, %v3188, %v3190
        %s3192 = scalar_lea.vmem [#allocation12], 8
        %v3193 = vld [vmem:[%s3192] sm:$0xf]
        %v3194 = vsel %vm526, %v3154, 0
        %v3196 = vsel %vm526, %v3156, 0
        %v3198 = vsel %vm526, %v3159, 0
        %v3200 = vsel %vm526, %v3161, 0
        %v3202 = vsel %vm526, %v3164, 0
        %v3204 = vsel %vm526, %v3166, 0
        %v3206 = vsel %vm526, %v3169, 0
        %v3208 = vsel %vm526, %v3171, 0
        %v3210 = vsel %vm526, %v3174, 0
        %v3212 = vsel %vm526, %v3176, 0
        %v3214 = vsel %vm526, %v3179, 0
        %v3216 = vsel %vm526, %v3181, 0
        %v3218 = vsel %vm526, %v3184, 0
        %v3220 = vsel %vm526, %v3186, 0
        %v3222 = vsel %vm526, %v3189, 0
        %v3224 = vsel %vm526, %v3191, 0
        %v3227 = vsel %vm769, %v3193, 0
        %3229 = vmatprep.subr.mxu0 0.0
        %3230 = vmatpush1.msra.mxu0 %v3227
        %3231 = vmatprep.subr.mxu0 0.0
        %3232 = vmatpush1.msra.mxu0 0.0
        %3233 = vmatprep.subr.mxu0 0.0
        %3234 = vmatpush1.msra.mxu0 0.0
        %3235 = vmatprep.subr.mxu0 0.0
        %3236 = vmatpush1.msra.mxu0 0.0
        %3237 = vmatprep.subr.mxu0 0.0
        %3238 = vmatpush1.msra.mxu0 0.0
        %3239 = vmatprep.subr.mxu0 0.0
        %3240 = vmatpush1.msra.mxu0 0.0
        %3241 = vmatprep.subr.mxu0 0.0
        %3242 = vmatpush1.msra.mxu0 0.0
        %3243 = vmatprep.subr.mxu0 0.0
        %3244 = vmatpush1.msra.mxu0 0.0
        %3245 = vmatprep.subr.mxu0 0.0
        %3246 = vmatpush1.msra.mxu0 0.0
        %3247 = vmatprep.subr.mxu0 0.0
        %3248 = vmatpush1.msra.mxu0 0.0
        %3249 = vmatprep.subr.mxu0 0.0
        %3250 = vmatpush1.msra.mxu0 0.0
        %3251 = vmatprep.subr.mxu0 0.0
        %3252 = vmatpush1.msra.mxu0 0.0
        %3253 = vmatprep.subr.mxu0 0.0
        %3254 = vmatpush1.msra.mxu0 0.0
        %3255 = vmatprep.subr.mxu0 0.0
        %3256 = vmatpush1.msra.mxu0 0.0
        %3257 = vmatprep.subr.mxu0 0.0
        %3258 = vmatpush1.msra.mxu0 0.0
        %3259 = vmatprep.subr.mxu0 0.0
        %3260 = vmatpush1.msra.mxu0 0.0
        %3261 = vmatprep.subr.mxu0 0.0
        %3262 = vmatpush1.msra.mxu0 0.0
        %3263 = vmatprep.subr.mxu0 0.0
        %3264 = vmatpush1.msra.mxu0 0.0
        %3265 = vmatprep.subr.mxu0 0.0
        %3266 = vmatpush1.msra.mxu0 0.0
        %3267 = vmatprep.subr.mxu0 0.0
        %3268 = vmatpush1.msra.mxu0 0.0
        %3269 = vmatprep.subr.mxu0 0.0
        %3270 = vmatpush1.msra.mxu0 0.0
        %3271 = vmatprep.subr.mxu0 0.0
        %3272 = vmatpush1.msra.mxu0 0.0
        %3273 = vmatprep.subr.mxu0 0.0
        %3274 = vmatpush1.msra.mxu0 0.0
        %3275 = vmatprep.subr.mxu0 0.0
        %3276 = vmatpush1.msra.mxu0 0.0
        %3277 = vmatprep.subr.mxu0 0.0
        %3278 = vmatpush1.msra.mxu0 0.0
        %3279 = vmatprep.subr.mxu0 0.0
        %3280 = vmatpush1.msra.mxu0 0.0
        %3281 = vmatprep.subr.mxu0 0.0
        %3282 = vmatpush1.msra.mxu0 0.0
        %3283 = vmatprep.subr.mxu0 0.0
        %3284 = vmatpush1.msra.mxu0 0.0
        %3285 = vmatprep.subr.mxu0 0.0
        %3286 = vmatpush1.msra.mxu0 0.0
        %3287 = vmatprep.subr.mxu0 0.0
        %3288 = vmatpush1.msra.mxu0 0.0
        %3289 = vmatprep.subr.mxu0 0.0
        %3290 = vmatpush1.msra.mxu0 0.0
        %3291 = vmatprep.subr.mxu0 0.0
        %3292 = vmatpush1.msra.mxu0 0.0
        %3293 = vmatprep.mubr.f32.mxu0 0.0
        %3294 = vmatmul.mubr.f32.gmra.mrb[0].mxu0 %v3194
        %v3295 = vpop.f32.mrb[0].mxu0
        %v3296 = vadd.f32 0.0, %v3295
        %v3297 = vpop.f32.mrb[0].mxu0
        %3298 = vmatprep.mubr.f32.mxu0 0.0
        %3299 = vmatmul.mubr.f32.gmra.mrb[0].mxu0 %v3196
        %v3300 = vpop.f32.mrb[0].mxu0
        %v3301 = vadd.f32 0.0, %v3300
        %v3302 = vpop.f32.mrb[0].mxu0
        %3303 = vmatprep.mubr.f32.mxu0 0.0
        %3304 = vmatmul.mubr.f32.gmra.mrb[0].mxu0 %v3198
        %v3305 = vpop.f32.mrb[0].mxu0
        %v3306 = vadd.f32 0.0, %v3305
        %v3307 = vpop.f32.mrb[0].mxu0
        %3308 = vmatprep.mubr.f32.mxu0 0.0
        %3309 = vmatmul.mubr.f32.gmra.mrb[0].mxu0 %v3200
        %v3310 = vpop.f32.mrb[0].mxu0
        %v3311 = vadd.f32 0.0, %v3310
        %v3312 = vpop.f32.mrb[0].mxu0
        %3313 = vmatprep.mubr.f32.mxu0 0.0
        %3314 = vmatmul.mubr.f32.gmra.mrb[0].mxu0 %v3202
        %v3315 = vpop.f32.mrb[0].mxu0
        %v3316 = vadd.f32 0.0, %v3315
        %v3317 = vpop.f32.mrb[0].mxu0
        %3318 = vmatprep.mubr.f32.mxu0 0.0
        %3319 = vmatmul.mubr.f32.gmra.mrb[0].mxu0 %v3204
        %v3320 = vpop.f32.mrb[0].mxu0
        %v3321 = vadd.f32 0.0, %v3320
        %v3322 = vpop.f32.mrb[0].mxu0
        %3323 = vmatprep.mubr.f32.mxu0 0.0
        %3324 = vmatmul.mubr.f32.gmra.mrb[0].mxu0 %v3206
        %v3325 = vpop.f32.mrb[0].mxu0
        %v3326 = vadd.f32 0.0, %v3325
        %v3327 = vpop.f32.mrb[0].mxu0
        %3328 = vmatprep.mubr.f32.mxu0 0.0
        %3329 = vmatmul.mubr.f32.gmra.mrb[0].mxu0 %v3208
        %v3330 = vpop.f32.mrb[0].mxu0
        %v3331 = vadd.f32 0.0, %v3330
        %v3332 = vpop.f32.mrb[0].mxu0
        %3333 = vmatprep.mubr.f32.mxu0 0.0
        %3334 = vmatmul.mubr.f32.gmra.mrb[0].mxu0 %v3210
        %v3335 = vpop.f32.mrb[0].mxu0
        %v3336 = vadd.f32 0.0, %v3335
        %v3337 = vpop.f32.mrb[0].mxu0
        %3338 = vmatprep.mubr.f32.mxu0 0.0
        %3339 = vmatmul.mubr.f32.gmra.mrb[0].mxu0 %v3212
        %v3340 = vpop.f32.mrb[0].mxu0
        %v3341 = vadd.f32 0.0, %v3340
        %v3342 = vpop.f32.mrb[0].mxu0
        %3343 = vmatprep.mubr.f32.mxu0 0.0
        %3344 = vmatmul.mubr.f32.gmra.mrb[0].mxu0 %v3214
        %v3345 = vpop.f32.mrb[0].mxu0
        %v3346 = vadd.f32 0.0, %v3345
        %v3347 = vpop.f32.mrb[0].mxu0
        %3348 = vmatprep.mubr.f32.mxu0 0.0
        %3349 = vmatmul.mubr.f32.gmra.mrb[0].mxu0 %v3216
        %v3350 = vpop.f32.mrb[0].mxu0
        %v3351 = vadd.f32 0.0, %v3350
        %v3352 = vpop.f32.mrb[0].mxu0
        %3353 = vmatprep.mubr.f32.mxu0 0.0
        %3354 = vmatmul.mubr.f32.gmra.mrb[0].mxu0 %v3218
        %v3355 = vpop.f32.mrb[0].mxu0
        %v3356 = vadd.f32 0.0, %v3355
        %v3357 = vpop.f32.mrb[0].mxu0
        %3358 = vmatprep.mubr.f32.mxu0 0.0
        %3359 = vmatmul.mubr.f32.gmra.mrb[0].mxu0 %v3220
        %v3360 = vpop.f32.mrb[0].mxu0
        %v3361 = vadd.f32 0.0, %v3360
        %v3362 = vpop.f32.mrb[0].mxu0
        %3363 = vmatprep.mubr.f32.mxu0 0.0
        %3364 = vmatmul.mubr.f32.gmra.mrb[0].mxu0 %v3222
        %v3365 = vpop.f32.mrb[0].mxu0
        %v3366 = vadd.f32 0.0, %v3365
        %v3367 = vpop.f32.mrb[0].mxu0
        %3368 = vmatprep.mubr.f32.mxu0 0.0
        %3369 = vmatmul.mubr.f32.gmra.mrb[0].mxu0 %v3224
        %v3370 = vpop.f32.mrb[0].mxu0
        %v3371 = vadd.f32 0.0, %v3370
        %v3372 = vpop.f32.mrb[0].mxu0
        %3373 = vdwg.mxu0
        %v3374 = vadd.f32 %v3074, %v3296
        %v3375 = vadd.f32 %v3079, %v3301
        %v3376 = vadd.f32 %v3084, %v3306
        %v3377 = vadd.f32 %v3089, %v3311
        %v3378 = vadd.f32 %v3094, %v3316
        %v3379 = vadd.f32 %v3099, %v3321
        %v3380 = vadd.f32 %v3104, %v3326
        %v3381 = vadd.f32 %v3109, %v3331
        %v3382 = vadd.f32 %v3114, %v3336
        %v3383 = vadd.f32 %v3119, %v3341
        %v3384 = vadd.f32 %v3124, %v3346
        %v3385 = vadd.f32 %v3129, %v3351
        %v3386 = vadd.f32 %v3134, %v3356
        %v3387 = vadd.f32 %v3139, %v3361
        %v3388 = vadd.f32 %v3144, %v3366
        %v3389 = vadd.f32 %v3149, %v3371
        %s3390 = scalar_lea.vmem [#allocation12], 12
        %v3391 = vld [vmem:[%s3390] sm:$0xf]
        %v3393 = vsel %vm526, %v2719, 0
        %v3396 = vsel %vm526, %v2720, 0
        %v3399 = vsel %vm769, %v3391, 0
        %3401 = vmatprep.subr.mxu0 0.0
        %3402 = vmatpush1.msra.mxu0 %v3399
        %3403 = vmatprep.subr.mxu0 0.0
        %3404 = vmatpush1.msra.mxu0 0.0
        %3405 = vmatprep.subr.mxu0 0.0
        %3406 = vmatpush1.msra.mxu0 0.0
        %3407 = vmatprep.subr.mxu0 0.0
        %3408 = vmatpush1.msra.mxu0 0.0
        %3409 = vmatprep.subr.mxu0 0.0
        %3410 = vmatpush1.msra.mxu0 0.0
        %3411 = vmatprep.subr.mxu0 0.0
        %3412 = vmatpush1.msra.mxu0 0.0
        %3413 = vmatprep.subr.mxu0 0.0
        %3414 = vmatpush1.msra.mxu0 0.0
        %3415 = vmatprep.subr.mxu0 0.0
        %3416 = vmatpush1.msra.mxu0 0.0
        %3417 = vmatprep.subr.mxu0 0.0
        %3418 = vmatpush1.msra.mxu0 0.0
        %3419 = vmatprep.subr.mxu0 0.0
        %3420 = vmatpush1.msra.mxu0 0.0
        %3421 = vmatprep.subr.mxu0 0.0
        %3422 = vmatpush1.msra.mxu0 0.0
        %3423 = vmatprep.subr.mxu0 0.0
        %3424 = vmatpush1.msra.mxu0 0.0
        %3425 = vmatprep.subr.mxu0 0.0
        %3426 = vmatpush1.msra.mxu0 0.0
        %3427 = vmatprep.subr.mxu0 0.0
        %3428 = vmatpush1.msra.mxu0 0.0
        %3429 = vmatprep.subr.mxu0 0.0
        %3430 = vmatpush1.msra.mxu0 0.0
        %3431 = vmatprep.subr.mxu0 0.0
        %3432 = vmatpush1.msra.mxu0 0.0
        %3433 = vmatprep.subr.mxu0 0.0
        %3434 = vmatpush1.msra.mxu0 0.0
        %3435 = vmatprep.subr.mxu0 0.0
        %3436 = vmatpush1.msra.mxu0 0.0
        %3437 = vmatprep.subr.mxu0 0.0
        %3438 = vmatpush1.msra.mxu0 0.0
        %3439 = vmatprep.subr.mxu0 0.0
        %3440 = vmatpush1.msra.mxu0 0.0
        %3441 = vmatprep.subr.mxu0 0.0
        %3442 = vmatpush1.msra.mxu0 0.0
        %3443 = vmatprep.subr.mxu0 0.0
        %3444 = vmatpush1.msra.mxu0 0.0
        %3445 = vmatprep.subr.mxu0 0.0
        %3446 = vmatpush1.msra.mxu0 0.0
        %3447 = vmatprep.subr.mxu0 0.0
        %3448 = vmatpush1.msra.mxu0 0.0
        %3449 = vmatprep.subr.mxu0 0.0
        %3450 = vmatpush1.msra.mxu0 0.0
        %3451 = vmatprep.subr.mxu0 0.0
        %3452 = vmatpush1.msra.mxu0 0.0
        %3453 = vmatprep.subr.mxu0 0.0
        %3454 = vmatpush1.msra.mxu0 0.0
        %3455 = vmatprep.subr.mxu0 0.0
        %3456 = vmatpush1.msra.mxu0 0.0
        %3457 = vmatprep.subr.mxu0 0.0
        %3458 = vmatpush1.msra.mxu0 0.0
        %3459 = vmatprep.subr.mxu0 0.0
        %3460 = vmatpush1.msra.mxu0 0.0
        %3461 = vmatprep.subr.mxu0 0.0
        %3462 = vmatpush1.msra.mxu0 0.0
        %3463 = vmatprep.subr.mxu0 0.0
        %3464 = vmatpush1.msra.mxu0 0.0
        %3465 = vmatprep.mubr.f32.mxu0 0.0
        %3466 = vmatmul.mubr.f32.gmra.mrb[0].mxu0 %v2976
        %v3467 = vpop.f32.mrb[0].mxu0
        %v3468 = vadd.f32 0.0, %v3467
        %v3469 = vpop.f32.mrb[0].mxu0
        %3470 = vmatprep.mubr.f32.mxu0 0.0
        %3471 = vmatmul.mubr.f32.gmra.mrb[0].mxu0 %v2978
        %v3472 = vpop.f32.mrb[0].mxu0
        %v3473 = vadd.f32 0.0, %v3472
        %v3474 = vpop.f32.mrb[0].mxu0
        %3475 = vmatprep.mubr.f32.mxu0 0.0
        %3476 = vmatmul.mubr.f32.gmra.mrb[0].mxu0 %v2980
        %v3477 = vpop.f32.mrb[0].mxu0
        %v3478 = vadd.f32 0.0, %v3477
        %v3479 = vpop.f32.mrb[0].mxu0
        %3480 = vmatprep.mubr.f32.mxu0 0.0
        %3481 = vmatmul.mubr.f32.gmra.mrb[0].mxu0 %v2982
        %v3482 = vpop.f32.mrb[0].mxu0
        %v3483 = vadd.f32 0.0, %v3482
        %v3484 = vpop.f32.mrb[0].mxu0
        %3485 = vmatprep.mubr.f32.mxu0 0.0
        %3486 = vmatmul.mubr.f32.gmra.mrb[0].mxu0 %v2984
        %v3487 = vpop.f32.mrb[0].mxu0
        %v3488 = vadd.f32 0.0, %v3487
        %v3489 = vpop.f32.mrb[0].mxu0
        %3490 = vmatprep.mubr.f32.mxu0 0.0
        %3491 = vmatmul.mubr.f32.gmra.mrb[0].mxu0 %v2986
        %v3492 = vpop.f32.mrb[0].mxu0
        %v3493 = vadd.f32 0.0, %v3492
        %v3494 = vpop.f32.mrb[0].mxu0
        %3495 = vmatprep.mubr.f32.mxu0 0.0
        %3496 = vmatmul.mubr.f32.gmra.mrb[0].mxu0 %v2988
        %v3497 = vpop.f32.mrb[0].mxu0
        %v3498 = vadd.f32 0.0, %v3497
        %v3499 = vpop.f32.mrb[0].mxu0
        %3500 = vmatprep.mubr.f32.mxu0 0.0
        %3501 = vmatmul.mubr.f32.gmra.mrb[0].mxu0 %v2990
        %v3502 = vpop.f32.mrb[0].mxu0
        %v3503 = vadd.f32 0.0, %v3502
        %v3504 = vpop.f32.mrb[0].mxu0
        %3505 = vmatprep.mubr.f32.mxu0 0.0
        %3506 = vmatmul.mubr.f32.gmra.mrb[0].mxu0 %v2992
        %v3507 = vpop.f32.mrb[0].mxu0
        %v3508 = vadd.f32 0.0, %v3507
        %v3509 = vpop.f32.mrb[0].mxu0
        %3510 = vmatprep.mubr.f32.mxu0 0.0
        %3511 = vmatmul.mubr.f32.gmra.mrb[0].mxu0 %v2994
        %v3512 = vpop.f32.mrb[0].mxu0
        %v3513 = vadd.f32 0.0, %v3512
        %v3514 = vpop.f32.mrb[0].mxu0
        %3515 = vmatprep.mubr.f32.mxu0 0.0
        %3516 = vmatmul.mubr.f32.gmra.mrb[0].mxu0 %v2996
        %v3517 = vpop.f32.mrb[0].mxu0
        %v3518 = vadd.f32 0.0, %v3517
        %v3519 = vpop.f32.mrb[0].mxu0
        %3520 = vmatprep.mubr.f32.mxu0 0.0
        %3521 = vmatmul.mubr.f32.gmra.mrb[0].mxu0 %v2998
        %v3522 = vpop.f32.mrb[0].mxu0
        %v3523 = vadd.f32 0.0, %v3522
        %v3524 = vpop.f32.mrb[0].mxu0
        %3525 = vmatprep.mubr.f32.mxu0 0.0
        %3526 = vmatmul.mubr.f32.gmra.mrb[0].mxu0 %v3000
        %v3527 = vpop.f32.mrb[0].mxu0
        %v3528 = vadd.f32 0.0, %v3527
        %v3529 = vpop.f32.mrb[0].mxu0
        %3530 = vmatprep.mubr.f32.mxu0 0.0
        %3531 = vmatmul.mubr.f32.gmra.mrb[0].mxu0 %v3002
        %v3532 = vpop.f32.mrb[0].mxu0
        %v3533 = vadd.f32 0.0, %v3532
        %v3534 = vpop.f32.mrb[0].mxu0
        %3535 = vmatprep.mubr.f32.mxu0 0.0
        %3536 = vmatmul.mubr.f32.gmra.mrb[0].mxu0 %v3393
        %v3537 = vpop.f32.mrb[0].mxu0
        %v3538 = vadd.f32 0.0, %v3537
        %v3539 = vpop.f32.mrb[0].mxu0
        %3540 = vmatprep.mubr.f32.mxu0 0.0
        %3541 = vmatmul.mubr.f32.gmra.mrb[0].mxu0 %v3396
        %v3542 = vpop.f32.mrb[0].mxu0
        %v3543 = vadd.f32 0.0, %v3542
        %v3544 = vpop.f32.mrb[0].mxu0
        %3545 = vdwg.mxu0
        %v3546 = vadd.f32 %v3374, %v3468
        %v3547 = vadd.f32 %v3375, %v3473
        %v3548 = vadd.f32 %v3376, %v3478
        %v3549 = vadd.f32 %v3377, %v3483
        %v3550 = vadd.f32 %v3378, %v3488
        %v3551 = vadd.f32 %v3379, %v3493
        %v3552 = vadd.f32 %v3380, %v3498
        %v3553 = vadd.f32 %v3381, %v3503
        %v3554 = vadd.f32 %v3382, %v3508
        %v3555 = vadd.f32 %v3383, %v3513
        %v3556 = vadd.f32 %v3384, %v3518
        %v3557 = vadd.f32 %v3385, %v3523
        %v3558 = vadd.f32 %v3386, %v3528
        %v3559 = vadd.f32 %v3387, %v3533
        %v3560 = vadd.f32 %v3388, %v3538
        %v3561 = vadd.f32 %v3389, %v3543
        %v3563 = vrot.slane %v2719, 1
        %v3564 = vrot.slane %v2720, 1
        %v3565 = vsel %vm676, %v3563, %v3564
        %v3566 = vrot.slane %v2721, 1
        %v3567 = vsel %vm676, %v3564, %v3566
        %s3568 = scalar_lea.vmem [#allocation12], 16
        %v3569 = vld [vmem:[%s3568] sm:$0xf]
        %v3570 = vsel %vm526, %v3565, 0
        %v3572 = vsel %vm526, %v3567, 0
        %v3575 = vsel %vm769, %v3569, 0
        %3577 = vmatprep.subr.mxu0 0.0
        %3578 = vmatpush1.msra.mxu0 %v3575
        %3579 = vmatprep.subr.mxu0 0.0
        %3580 = vmatpush1.msra.mxu0 0.0
        %3581 = vmatprep.subr.mxu0 0.0
        %3582 = vmatpush1.msra.mxu0 0.0
        %3583 = vmatprep.subr.mxu0 0.0
        %3584 = vmatpush1.msra.mxu0 0.0
        %3585 = vmatprep.subr.mxu0 0.0
        %3586 = vmatpush1.msra.mxu0 0.0
        %3587 = vmatprep.subr.mxu0 0.0
        %3588 = vmatpush1.msra.mxu0 0.0
        %3589 = vmatprep.subr.mxu0 0.0
        %3590 = vmatpush1.msra.mxu0 0.0
        %3591 = vmatprep.subr.mxu0 0.0
        %3592 = vmatpush1.msra.mxu0 0.0
        %3593 = vmatprep.subr.mxu0 0.0
        %3594 = vmatpush1.msra.mxu0 0.0
        %3595 = vmatprep.subr.mxu0 0.0
        %3596 = vmatpush1.msra.mxu0 0.0
        %3597 = vmatprep.subr.mxu0 0.0
        %3598 = vmatpush1.msra.mxu0 0.0
        %3599 = vmatprep.subr.mxu0 0.0
        %3600 = vmatpush1.msra.mxu0 0.0
        %3601 = vmatprep.subr.mxu0 0.0
        %3602 = vmatpush1.msra.mxu0 0.0
        %3603 = vmatprep.subr.mxu0 0.0
        %3604 = vmatpush1.msra.mxu0 0.0
        %3605 = vmatprep.subr.mxu0 0.0
        %3606 = vmatpush1.msra.mxu0 0.0
        %3607 = vmatprep.subr.mxu0 0.0
        %3608 = vmatpush1.msra.mxu0 0.0
        %3609 = vmatprep.subr.mxu0 0.0
        %3610 = vmatpush1.msra.mxu0 0.0
        %3611 = vmatprep.subr.mxu0 0.0
        %3612 = vmatpush1.msra.mxu0 0.0
        %3613 = vmatprep.subr.mxu0 0.0
        %3614 = vmatpush1.msra.mxu0 0.0
        %3615 = vmatprep.subr.mxu0 0.0
        %3616 = vmatpush1.msra.mxu0 0.0
        %3617 = vmatprep.subr.mxu0 0.0
        %3618 = vmatpush1.msra.mxu0 0.0
        %3619 = vmatprep.subr.mxu0 0.0
        %3620 = vmatpush1.msra.mxu0 0.0
        %3621 = vmatprep.subr.mxu0 0.0
        %3622 = vmatpush1.msra.mxu0 0.0
        %3623 = vmatprep.subr.mxu0 0.0
        %3624 = vmatpush1.msra.mxu0 0.0
        %3625 = vmatprep.subr.mxu0 0.0
        %3626 = vmatpush1.msra.mxu0 0.0
        %3627 = vmatprep.subr.mxu0 0.0
        %3628 = vmatpush1.msra.mxu0 0.0
        %3629 = vmatprep.subr.mxu0 0.0
        %3630 = vmatpush1.msra.mxu0 0.0
        %3631 = vmatprep.subr.mxu0 0.0
        %3632 = vmatpush1.msra.mxu0 0.0
        %3633 = vmatprep.subr.mxu0 0.0
        %3634 = vmatpush1.msra.mxu0 0.0
        %3635 = vmatprep.subr.mxu0 0.0
        %3636 = vmatpush1.msra.mxu0 0.0
        %3637 = vmatprep.subr.mxu0 0.0
        %3638 = vmatpush1.msra.mxu0 0.0
        %3639 = vmatprep.subr.mxu0 0.0
        %3640 = vmatpush1.msra.mxu0 0.0
        %3641 = vmatprep.mubr.f32.mxu0 0.0
        %3642 = vmatmul.mubr.f32.gmra.mrb[0].mxu0 %v2796
        %v3643 = vpop.f32.mrb[0].mxu0
        %v3644 = vadd.f32 0.0, %v3643
        %v3645 = vpop.f32.mrb[0].mxu0
        %3646 = vmatprep.mubr.f32.mxu0 0.0
        %3647 = vmatmul.mubr.f32.gmra.mrb[0].mxu0 %v2798
        %v3648 = vpop.f32.mrb[0].mxu0
        %v3649 = vadd.f32 0.0, %v3648
        %v3650 = vpop.f32.mrb[0].mxu0
        %3651 = vmatprep.mubr.f32.mxu0 0.0
        %3652 = vmatmul.mubr.f32.gmra.mrb[0].mxu0 %v2800
        %v3653 = vpop.f32.mrb[0].mxu0
        %v3654 = vadd.f32 0.0, %v3653
        %v3655 = vpop.f32.mrb[0].mxu0
        %3656 = vmatprep.mubr.f32.mxu0 0.0
        %3657 = vmatmul.mubr.f32.gmra.mrb[0].mxu0 %v2802
        %v3658 = vpop.f32.mrb[0].mxu0
        %v3659 = vadd.f32 0.0, %v3658
        %v3660 = vpop.f32.mrb[0].mxu0
        %3661 = vmatprep.mubr.f32.mxu0 0.0
        %3662 = vmatmul.mubr.f32.gmra.mrb[0].mxu0 %v2804
        %v3663 = vpop.f32.mrb[0].mxu0
        %v3664 = vadd.f32 0.0, %v3663
        %v3665 = vpop.f32.mrb[0].mxu0
        %3666 = vmatprep.mubr.f32.mxu0 0.0
        %3667 = vmatmul.mubr.f32.gmra.mrb[0].mxu0 %v2806
        %v3668 = vpop.f32.mrb[0].mxu0
        %v3669 = vadd.f32 0.0, %v3668
        %v3670 = vpop.f32.mrb[0].mxu0
        %3671 = vmatprep.mubr.f32.mxu0 0.0
        %3672 = vmatmul.mubr.f32.gmra.mrb[0].mxu0 %v2808
        %v3673 = vpop.f32.mrb[0].mxu0
        %v3674 = vadd.f32 0.0, %v3673
        %v3675 = vpop.f32.mrb[0].mxu0
        %3676 = vmatprep.mubr.f32.mxu0 0.0
        %3677 = vmatmul.mubr.f32.gmra.mrb[0].mxu0 %v2810
        %v3678 = vpop.f32.mrb[0].mxu0
        %v3679 = vadd.f32 0.0, %v3678
        %v3680 = vpop.f32.mrb[0].mxu0
        %3681 = vmatprep.mubr.f32.mxu0 0.0
        %3682 = vmatmul.mubr.f32.gmra.mrb[0].mxu0 %v2812
        %v3683 = vpop.f32.mrb[0].mxu0
        %v3684 = vadd.f32 0.0, %v3683
        %v3685 = vpop.f32.mrb[0].mxu0
        %3686 = vmatprep.mubr.f32.mxu0 0.0
        %3687 = vmatmul.mubr.f32.gmra.mrb[0].mxu0 %v2814
        %v3688 = vpop.f32.mrb[0].mxu0
        %v3689 = vadd.f32 0.0, %v3688
        %v3690 = vpop.f32.mrb[0].mxu0
        %3691 = vmatprep.mubr.f32.mxu0 0.0
        %3692 = vmatmul.mubr.f32.gmra.mrb[0].mxu0 %v2816
        %v3693 = vpop.f32.mrb[0].mxu0
        %v3694 = vadd.f32 0.0, %v3693
        %v3695 = vpop.f32.mrb[0].mxu0
        %3696 = vmatprep.mubr.f32.mxu0 0.0
        %3697 = vmatmul.mubr.f32.gmra.mrb[0].mxu0 %v2818
        %v3698 = vpop.f32.mrb[0].mxu0
        %v3699 = vadd.f32 0.0, %v3698
        %v3700 = vpop.f32.mrb[0].mxu0
        %3701 = vmatprep.mubr.f32.mxu0 0.0
        %3702 = vmatmul.mubr.f32.gmra.mrb[0].mxu0 %v2820
        %v3703 = vpop.f32.mrb[0].mxu0
        %v3704 = vadd.f32 0.0, %v3703
        %v3705 = vpop.f32.mrb[0].mxu0
        %3706 = vmatprep.mubr.f32.mxu0 0.0
        %3707 = vmatmul.mubr.f32.gmra.mrb[0].mxu0 %v2822
        %v3708 = vpop.f32.mrb[0].mxu0
        %v3709 = vadd.f32 0.0, %v3708
        %v3710 = vpop.f32.mrb[0].mxu0
        %3711 = vmatprep.mubr.f32.mxu0 0.0
        %3712 = vmatmul.mubr.f32.gmra.mrb[0].mxu0 %v3570
        %v3713 = vpop.f32.mrb[0].mxu0
        %v3714 = vadd.f32 0.0, %v3713
        %v3715 = vpop.f32.mrb[0].mxu0
        %3716 = vmatprep.mubr.f32.mxu0 0.0
        %3717 = vmatmul.mubr.f32.gmra.mrb[0].mxu0 %v3572
        %v3718 = vpop.f32.mrb[0].mxu0
        %v3719 = vadd.f32 0.0, %v3718
        %v3720 = vpop.f32.mrb[0].mxu0
        %3721 = vdwg.mxu0
        %v3722 = vadd.f32 %v3546, %v3644
        %v3723 = vadd.f32 %v3547, %v3649
        %v3724 = vadd.f32 %v3548, %v3654
        %v3725 = vadd.f32 %v3549, %v3659
        %v3726 = vadd.f32 %v3550, %v3664
        %v3727 = vadd.f32 %v3551, %v3669
        %v3728 = vadd.f32 %v3552, %v3674
        %v3729 = vadd.f32 %v3553, %v3679
        %v3730 = vadd.f32 %v3554, %v3684
        %v3731 = vadd.f32 %v3555, %v3689
        %v3732 = vadd.f32 %v3556, %v3694
        %v3733 = vadd.f32 %v3557, %v3699
        %v3734 = vadd.f32 %v3558, %v3704
        %v3735 = vadd.f32 %v3559, %v3709
        %v3736 = vadd.f32 %v3560, %v3714
        %v3737 = vadd.f32 %v3561, %v3719
        %v3738 = vrot.slane %v2719, 2
        %v3739 = vrot.slane %v2720, 2
        %v3740 = vsel %vm1146, %v3738, %v3739
        %v3741 = vrot.slane %v2721, 2
        %v3742 = vsel %vm1146, %v3739, %v3741
        %s3743 = scalar_lea.vmem [#allocation12], 20
        %v3744 = vld [vmem:[%s3743] sm:$0xf]
        %v3745 = vsel %vm526, %v3740, 0
        %v3747 = vsel %vm526, %v3742, 0
        %v3750 = vsel %vm769, %v3744, 0
        %3752 = vmatprep.subr.mxu0 0.0
        %3753 = vmatpush1.msra.mxu0 %v3750
        %3754 = vmatprep.subr.mxu0 0.0
        %3755 = vmatpush1.msra.mxu0 0.0
        %3756 = vmatprep.subr.mxu0 0.0
        %3757 = vmatpush1.msra.mxu0 0.0
        %3758 = vmatprep.subr.mxu0 0.0
        %3759 = vmatpush1.msra.mxu0 0.0
        %3760 = vmatprep.subr.mxu0 0.0
        %3761 = vmatpush1.msra.mxu0 0.0
        %3762 = vmatprep.subr.mxu0 0.0
        %3763 = vmatpush1.msra.mxu0 0.0
        %3764 = vmatprep.subr.mxu0 0.0
        %3765 = vmatpush1.msra.mxu0 0.0
        %3766 = vmatprep.subr.mxu0 0.0
        %3767 = vmatpush1.msra.mxu0 0.0
        %3768 = vmatprep.subr.mxu0 0.0
        %3769 = vmatpush1.msra.mxu0 0.0
        %3770 = vmatprep.subr.mxu0 0.0
        %3771 = vmatpush1.msra.mxu0 0.0
        %3772 = vmatprep.subr.mxu0 0.0
        %3773 = vmatpush1.msra.mxu0 0.0
        %3774 = vmatprep.subr.mxu0 0.0
        %3775 = vmatpush1.msra.mxu0 0.0
        %3776 = vmatprep.subr.mxu0 0.0
        %3777 = vmatpush1.msra.mxu0 0.0
        %3778 = vmatprep.subr.mxu0 0.0
        %3779 = vmatpush1.msra.mxu0 0.0
        %3780 = vmatprep.subr.mxu0 0.0
        %3781 = vmatpush1.msra.mxu0 0.0
        %3782 = vmatprep.subr.mxu0 0.0
        %3783 = vmatpush1.msra.mxu0 0.0
        %3784 = vmatprep.subr.mxu0 0.0
        %3785 = vmatpush1.msra.mxu0 0.0
        %3786 = vmatprep.subr.mxu0 0.0
        %3787 = vmatpush1.msra.mxu0 0.0
        %3788 = vmatprep.subr.mxu0 0.0
        %3789 = vmatpush1.msra.mxu0 0.0
        %3790 = vmatprep.subr.mxu0 0.0
        %3791 = vmatpush1.msra.mxu0 0.0
        %3792 = vmatprep.subr.mxu0 0.0
        %3793 = vmatpush1.msra.mxu0 0.0
        %3794 = vmatprep.subr.mxu0 0.0
        %3795 = vmatpush1.msra.mxu0 0.0
        %3796 = vmatprep.subr.mxu0 0.0
        %3797 = vmatpush1.msra.mxu0 0.0
        %3798 = vmatprep.subr.mxu0 0.0
        %3799 = vmatpush1.msra.mxu0 0.0
        %3800 = vmatprep.subr.mxu0 0.0
        %3801 = vmatpush1.msra.mxu0 0.0
        %3802 = vmatprep.subr.mxu0 0.0
        %3803 = vmatpush1.msra.mxu0 0.0
        %3804 = vmatprep.subr.mxu0 0.0
        %3805 = vmatpush1.msra.mxu0 0.0
        %3806 = vmatprep.subr.mxu0 0.0
        %3807 = vmatpush1.msra.mxu0 0.0
        %3808 = vmatprep.subr.mxu0 0.0
        %3809 = vmatpush1.msra.mxu0 0.0
        %3810 = vmatprep.subr.mxu0 0.0
        %3811 = vmatpush1.msra.mxu0 0.0
        %3812 = vmatprep.subr.mxu0 0.0
        %3813 = vmatpush1.msra.mxu0 0.0
        %3814 = vmatprep.subr.mxu0 0.0
        %3815 = vmatpush1.msra.mxu0 0.0
        %3816 = vmatprep.mubr.f32.mxu0 0.0
        %3817 = vmatmul.mubr.f32.gmra.mrb[0].mxu0 %v3198
        %v3818 = vpop.f32.mrb[0].mxu0
        %v3819 = vadd.f32 0.0, %v3818
        %v3820 = vpop.f32.mrb[0].mxu0
        %3821 = vmatprep.mubr.f32.mxu0 0.0
        %3822 = vmatmul.mubr.f32.gmra.mrb[0].mxu0 %v3200
        %v3823 = vpop.f32.mrb[0].mxu0
        %v3824 = vadd.f32 0.0, %v3823
        %v3825 = vpop.f32.mrb[0].mxu0
        %3826 = vmatprep.mubr.f32.mxu0 0.0
        %3827 = vmatmul.mubr.f32.gmra.mrb[0].mxu0 %v3202
        %v3828 = vpop.f32.mrb[0].mxu0
        %v3829 = vadd.f32 0.0, %v3828
        %v3830 = vpop.f32.mrb[0].mxu0
        %3831 = vmatprep.mubr.f32.mxu0 0.0
        %3832 = vmatmul.mubr.f32.gmra.mrb[0].mxu0 %v3204
        %v3833 = vpop.f32.mrb[0].mxu0
        %v3834 = vadd.f32 0.0, %v3833
        %v3835 = vpop.f32.mrb[0].mxu0
        %3836 = vmatprep.mubr.f32.mxu0 0.0
        %3837 = vmatmul.mubr.f32.gmra.mrb[0].mxu0 %v3206
        %v3838 = vpop.f32.mrb[0].mxu0
        %v3839 = vadd.f32 0.0, %v3838
        %v3840 = vpop.f32.mrb[0].mxu0
        %3841 = vmatprep.mubr.f32.mxu0 0.0
        %3842 = vmatmul.mubr.f32.gmra.mrb[0].mxu0 %v3208
        %v3843 = vpop.f32.mrb[0].mxu0
        %v3844 = vadd.f32 0.0, %v3843
        %v3845 = vpop.f32.mrb[0].mxu0
        %3846 = vmatprep.mubr.f32.mxu0 0.0
        %3847 = vmatmul.mubr.f32.gmra.mrb[0].mxu0 %v3210
        %v3848 = vpop.f32.mrb[0].mxu0
        %v3849 = vadd.f32 0.0, %v3848
        %v3850 = vpop.f32.mrb[0].mxu0
        %3851 = vmatprep.mubr.f32.mxu0 0.0
        %3852 = vmatmul.mubr.f32.gmra.mrb[0].mxu0 %v3212
        %v3853 = vpop.f32.mrb[0].mxu0
        %v3854 = vadd.f32 0.0, %v3853
        %v3855 = vpop.f32.mrb[0].mxu0
        %3856 = vmatprep.mubr.f32.mxu0 0.0
        %3857 = vmatmul.mubr.f32.gmra.mrb[0].mxu0 %v3214
        %v3858 = vpop.f32.mrb[0].mxu0
        %v3859 = vadd.f32 0.0, %v3858
        %v3860 = vpop.f32.mrb[0].mxu0
        %3861 = vmatprep.mubr.f32.mxu0 0.0
        %3862 = vmatmul.mubr.f32.gmra.mrb[0].mxu0 %v3216
        %v3863 = vpop.f32.mrb[0].mxu0
        %v3864 = vadd.f32 0.0, %v3863
        %v3865 = vpop.f32.mrb[0].mxu0
        %3866 = vmatprep.mubr.f32.mxu0 0.0
        %3867 = vmatmul.mubr.f32.gmra.mrb[0].mxu0 %v3218
        %v3868 = vpop.f32.mrb[0].mxu0
        %v3869 = vadd.f32 0.0, %v3868
        %v3870 = vpop.f32.mrb[0].mxu0
        %3871 = vmatprep.mubr.f32.mxu0 0.0
        %3872 = vmatmul.mubr.f32.gmra.mrb[0].mxu0 %v3220
        %v3873 = vpop.f32.mrb[0].mxu0
        %v3874 = vadd.f32 0.0, %v3873
        %v3875 = vpop.f32.mrb[0].mxu0
        %3876 = vmatprep.mubr.f32.mxu0 0.0
        %3877 = vmatmul.mubr.f32.gmra.mrb[0].mxu0 %v3222
        %v3878 = vpop.f32.mrb[0].mxu0
        %v3879 = vadd.f32 0.0, %v3878
        %v3880 = vpop.f32.mrb[0].mxu0
        %3881 = vmatprep.mubr.f32.mxu0 0.0
        %3882 = vmatmul.mubr.f32.gmra.mrb[0].mxu0 %v3224
        %v3883 = vpop.f32.mrb[0].mxu0
        %v3884 = vadd.f32 0.0, %v3883
        %v3885 = vpop.f32.mrb[0].mxu0
        %3886 = vmatprep.mubr.f32.mxu0 0.0
        %3887 = vmatmul.mubr.f32.gmra.mrb[0].mxu0 %v3745
        %v3888 = vpop.f32.mrb[0].mxu0
        %v3889 = vadd.f32 0.0, %v3888
        %v3890 = vpop.f32.mrb[0].mxu0
        %3891 = vmatprep.mubr.f32.mxu0 0.0
        %3892 = vmatmul.mubr.f32.gmra.mrb[0].mxu0 %v3747
        %v3893 = vpop.f32.mrb[0].mxu0
        %v3894 = vadd.f32 0.0, %v3893
        %v3895 = vpop.f32.mrb[0].mxu0
        %3896 = vdwg.mxu0
        %v3897 = vadd.f32 %v3722, %v3819
        %v3898 = vadd.f32 %v3723, %v3824
        %v3899 = vadd.f32 %v3724, %v3829
        %v3900 = vadd.f32 %v3725, %v3834
        %v3901 = vadd.f32 %v3726, %v3839
        %v3902 = vadd.f32 %v3727, %v3844
        %v3903 = vadd.f32 %v3728, %v3849
        %v3904 = vadd.f32 %v3729, %v3854
        %v3905 = vadd.f32 %v3730, %v3859
        %v3906 = vadd.f32 %v3731, %v3864
        %v3907 = vadd.f32 %v3732, %v3869
        %v3908 = vadd.f32 %v3733, %v3874
        %v3909 = vadd.f32 %v3734, %v3879
        %v3910 = vadd.f32 %v3735, %v3884
        %v3911 = vadd.f32 %v3736, %v3889
        %v3912 = vadd.f32 %v3737, %v3894
        %s3913 = scalar_lea.vmem [#allocation12], 24
        %v3914 = vld [vmem:[%s3913] sm:$0xf]
        %v3916 = vsel %vm526, %v2722, 0
        %v3919 = vsel %vm526, %v2723, 0
        %v3922 = vsel %vm769, %v3914, 0
        %3924 = vmatprep.subr.mxu0 0.0
        %3925 = vmatpush1.msra.mxu0 %v3922
        %3926 = vmatprep.subr.mxu0 0.0
        %3927 = vmatpush1.msra.mxu0 0.0
        %3928 = vmatprep.subr.mxu0 0.0
        %3929 = vmatpush1.msra.mxu0 0.0
        %3930 = vmatprep.subr.mxu0 0.0
        %3931 = vmatpush1.msra.mxu0 0.0
        %3932 = vmatprep.subr.mxu0 0.0
        %3933 = vmatpush1.msra.mxu0 0.0
        %3934 = vmatprep.subr.mxu0 0.0
        %3935 = vmatpush1.msra.mxu0 0.0
        %3936 = vmatprep.subr.mxu0 0.0
        %3937 = vmatpush1.msra.mxu0 0.0
        %3938 = vmatprep.subr.mxu0 0.0
        %3939 = vmatpush1.msra.mxu0 0.0
        %3940 = vmatprep.subr.mxu0 0.0
        %3941 = vmatpush1.msra.mxu0 0.0
        %3942 = vmatprep.subr.mxu0 0.0
        %3943 = vmatpush1.msra.mxu0 0.0
        %3944 = vmatprep.subr.mxu0 0.0
        %3945 = vmatpush1.msra.mxu0 0.0
        %3946 = vmatprep.subr.mxu0 0.0
        %3947 = vmatpush1.msra.mxu0 0.0
        %3948 = vmatprep.subr.mxu0 0.0
        %3949 = vmatpush1.msra.mxu0 0.0
        %3950 = vmatprep.subr.mxu0 0.0
        %3951 = vmatpush1.msra.mxu0 0.0
        %3952 = vmatprep.subr.mxu0 0.0
        %3953 = vmatpush1.msra.mxu0 0.0
        %3954 = vmatprep.subr.mxu0 0.0
        %3955 = vmatpush1.msra.mxu0 0.0
        %3956 = vmatprep.subr.mxu0 0.0
        %3957 = vmatpush1.msra.mxu0 0.0
        %3958 = vmatprep.subr.mxu0 0.0
        %3959 = vmatpush1.msra.mxu0 0.0
        %3960 = vmatprep.subr.mxu0 0.0
        %3961 = vmatpush1.msra.mxu0 0.0
        %3962 = vmatprep.subr.mxu0 0.0
        %3963 = vmatpush1.msra.mxu0 0.0
        %3964 = vmatprep.subr.mxu0 0.0
        %3965 = vmatpush1.msra.mxu0 0.0
        %3966 = vmatprep.subr.mxu0 0.0
        %3967 = vmatpush1.msra.mxu0 0.0
        %3968 = vmatprep.subr.mxu0 0.0
        %3969 = vmatpush1.msra.mxu0 0.0
        %3970 = vmatprep.subr.mxu0 0.0
        %3971 = vmatpush1.msra.mxu0 0.0
        %3972 = vmatprep.subr.mxu0 0.0
        %3973 = vmatpush1.msra.mxu0 0.0
        %3974 = vmatprep.subr.mxu0 0.0
        %3975 = vmatpush1.msra.mxu0 0.0
        %3976 = vmatprep.subr.mxu0 0.0
        %3977 = vmatpush1.msra.mxu0 0.0
        %3978 = vmatprep.subr.mxu0 0.0
        %3979 = vmatpush1.msra.mxu0 0.0
        %3980 = vmatprep.subr.mxu0 0.0
        %3981 = vmatpush1.msra.mxu0 0.0
        %3982 = vmatprep.subr.mxu0 0.0
        %3983 = vmatpush1.msra.mxu0 0.0
        %3984 = vmatprep.subr.mxu0 0.0
        %3985 = vmatpush1.msra.mxu0 0.0
        %3986 = vmatprep.subr.mxu0 0.0
        %3987 = vmatpush1.msra.mxu0 0.0
        %3988 = vmatprep.mubr.f32.mxu0 0.0
        %3989 = vmatmul.mubr.f32.gmra.mrb[0].mxu0 %v2980
        %v3990 = vpop.f32.mrb[0].mxu0
        %v3991 = vadd.f32 0.0, %v3990
        %v3992 = vpop.f32.mrb[0].mxu0
        %3993 = vmatprep.mubr.f32.mxu0 0.0
        %3994 = vmatmul.mubr.f32.gmra.mrb[0].mxu0 %v2982
        %v3995 = vpop.f32.mrb[0].mxu0
        %v3996 = vadd.f32 0.0, %v3995
        %v3997 = vpop.f32.mrb[0].mxu0
        %3998 = vmatprep.mubr.f32.mxu0 0.0
        %3999 = vmatmul.mubr.f32.gmra.mrb[0].mxu0 %v2984
        %v4000 = vpop.f32.mrb[0].mxu0
        %v4001 = vadd.f32 0.0, %v4000
        %v4002 = vpop.f32.mrb[0].mxu0
        %4003 = vmatprep.mubr.f32.mxu0 0.0
        %4004 = vmatmul.mubr.f32.gmra.mrb[0].mxu0 %v2986
        %v4005 = vpop.f32.mrb[0].mxu0
        %v4006 = vadd.f32 0.0, %v4005
        %v4007 = vpop.f32.mrb[0].mxu0
        %4008 = vmatprep.mubr.f32.mxu0 0.0
        %4009 = vmatmul.mubr.f32.gmra.mrb[0].mxu0 %v2988
        %v4010 = vpop.f32.mrb[0].mxu0
        %v4011 = vadd.f32 0.0, %v4010
        %v4012 = vpop.f32.mrb[0].mxu0
        %4013 = vmatprep.mubr.f32.mxu0 0.0
        %4014 = vmatmul.mubr.f32.gmra.mrb[0].mxu0 %v2990
        %v4015 = vpop.f32.mrb[0].mxu0
        %v4016 = vadd.f32 0.0, %v4015
        %v4017 = vpop.f32.mrb[0].mxu0
        %4018 = vmatprep.mubr.f32.mxu0 0.0
        %4019 = vmatmul.mubr.f32.gmra.mrb[0].mxu0 %v2992
        %v4020 = vpop.f32.mrb[0].mxu0
        %v4021 = vadd.f32 0.0, %v4020
        %v4022 = vpop.f32.mrb[0].mxu0
        %4023 = vmatprep.mubr.f32.mxu0 0.0
        %4024 = vmatmul.mubr.f32.gmra.mrb[0].mxu0 %v2994
        %v4025 = vpop.f32.mrb[0].mxu0
        %v4026 = vadd.f32 0.0, %v4025
        %v4027 = vpop.f32.mrb[0].mxu0
        %4028 = vmatprep.mubr.f32.mxu0 0.0
        %4029 = vmatmul.mubr.f32.gmra.mrb[0].mxu0 %v2996
        %v4030 = vpop.f32.mrb[0].mxu0
        %v4031 = vadd.f32 0.0, %v4030
        %v4032 = vpop.f32.mrb[0].mxu0
        %4033 = vmatprep.mubr.f32.mxu0 0.0
        %4034 = vmatmul.mubr.f32.gmra.mrb[0].mxu0 %v2998
        %v4035 = vpop.f32.mrb[0].mxu0
        %v4036 = vadd.f32 0.0, %v4035
        %v4037 = vpop.f32.mrb[0].mxu0
        %4038 = vmatprep.mubr.f32.mxu0 0.0
        %4039 = vmatmul.mubr.f32.gmra.mrb[0].mxu0 %v3000
        %v4040 = vpop.f32.mrb[0].mxu0
        %v4041 = vadd.f32 0.0, %v4040
        %v4042 = vpop.f32.mrb[0].mxu0
        %4043 = vmatprep.mubr.f32.mxu0 0.0
        %4044 = vmatmul.mubr.f32.gmra.mrb[0].mxu0 %v3002
        %v4045 = vpop.f32.mrb[0].mxu0
        %v4046 = vadd.f32 0.0, %v4045
        %v4047 = vpop.f32.mrb[0].mxu0
        %4048 = vmatprep.mubr.f32.mxu0 0.0
        %4049 = vmatmul.mubr.f32.gmra.mrb[0].mxu0 %v3393
        %v4050 = vpop.f32.mrb[0].mxu0
        %v4051 = vadd.f32 0.0, %v4050
        %v4052 = vpop.f32.mrb[0].mxu0
        %4053 = vmatprep.mubr.f32.mxu0 0.0
        %4054 = vmatmul.mubr.f32.gmra.mrb[0].mxu0 %v3396
        %v4055 = vpop.f32.mrb[0].mxu0
        %v4056 = vadd.f32 0.0, %v4055
        %v4057 = vpop.f32.mrb[0].mxu0
        %4058 = vmatprep.mubr.f32.mxu0 0.0
        %4059 = vmatmul.mubr.f32.gmra.mrb[0].mxu0 %v3916
        %v4060 = vpop.f32.mrb[0].mxu0
        %v4061 = vadd.f32 0.0, %v4060
        %v4062 = vpop.f32.mrb[0].mxu0
        %4063 = vmatprep.mubr.f32.mxu0 0.0
        %4064 = vmatmul.mubr.f32.gmra.mrb[0].mxu0 %v3919
        %v4065 = vpop.f32.mrb[0].mxu0
        %v4066 = vadd.f32 0.0, %v4065
        %v4067 = vpop.f32.mrb[0].mxu0
        %4068 = vdwg.mxu0
        %v4069 = vadd.f32 %v3897, %v3991
        %v4070 = vadd.f32 %v3898, %v3996
        %v4071 = vadd.f32 %v3899, %v4001
        %v4072 = vadd.f32 %v3900, %v4006
        %v4073 = vadd.f32 %v3901, %v4011
        %v4074 = vadd.f32 %v3902, %v4016
        %v4075 = vadd.f32 %v3903, %v4021
        %v4076 = vadd.f32 %v3904, %v4026
        %v4077 = vadd.f32 %v3905, %v4031
        %v4078 = vadd.f32 %v3906, %v4036
        %v4079 = vadd.f32 %v3907, %v4041
        %v4080 = vadd.f32 %v3908, %v4046
        %v4081 = vadd.f32 %v3909, %v4051
        %v4082 = vadd.f32 %v3910, %v4056
        %v4083 = vadd.f32 %v3911, %v4061
        %v4084 = vadd.f32 %v3912, %v4066
        %v4086 = vrot.slane %v2722, 1
        %v4087 = vrot.slane %v2723, 1
        %v4088 = vsel %vm676, %v4086, %v4087
        %v4089 = vrot.slane %v2724, 1
        %v4090 = vsel %vm676, %v4087, %v4089
        %s4091 = scalar_lea.vmem [#allocation12], 28
        %v4092 = vld [vmem:[%s4091] sm:$0xf]
        %v4093 = vsel %vm526, %v4088, 0
        %v4095 = vsel %vm526, %v4090, 0
        %v4098 = vsel %vm769, %v4092, 0
        %4100 = vmatprep.subr.mxu0 0.0
        %4101 = vmatpush1.msra.mxu0 %v4098
        %4102 = vmatprep.subr.mxu0 0.0
        %4103 = vmatpush1.msra.mxu0 0.0
        %4104 = vmatprep.subr.mxu0 0.0
        %4105 = vmatpush1.msra.mxu0 0.0
        %4106 = vmatprep.subr.mxu0 0.0
        %4107 = vmatpush1.msra.mxu0 0.0
        %4108 = vmatprep.subr.mxu0 0.0
        %4109 = vmatpush1.msra.mxu0 0.0
        %4110 = vmatprep.subr.mxu0 0.0
        %4111 = vmatpush1.msra.mxu0 0.0
        %4112 = vmatprep.subr.mxu0 0.0
        %4113 = vmatpush1.msra.mxu0 0.0
        %4114 = vmatprep.subr.mxu0 0.0
        %4115 = vmatpush1.msra.mxu0 0.0
        %4116 = vmatprep.subr.mxu0 0.0
        %4117 = vmatpush1.msra.mxu0 0.0
        %4118 = vmatprep.subr.mxu0 0.0
        %4119 = vmatpush1.msra.mxu0 0.0
        %4120 = vmatprep.subr.mxu0 0.0
        %4121 = vmatpush1.msra.mxu0 0.0
        %4122 = vmatprep.subr.mxu0 0.0
        %4123 = vmatpush1.msra.mxu0 0.0
        %4124 = vmatprep.subr.mxu0 0.0
        %4125 = vmatpush1.msra.mxu0 0.0
        %4126 = vmatprep.subr.mxu0 0.0
        %4127 = vmatpush1.msra.mxu0 0.0
        %4128 = vmatprep.subr.mxu0 0.0
        %4129 = vmatpush1.msra.mxu0 0.0
        %4130 = vmatprep.subr.mxu0 0.0
        %4131 = vmatpush1.msra.mxu0 0.0
        %4132 = vmatprep.subr.mxu0 0.0
        %4133 = vmatpush1.msra.mxu0 0.0
        %4134 = vmatprep.subr.mxu0 0.0
        %4135 = vmatpush1.msra.mxu0 0.0
        %4136 = vmatprep.subr.mxu0 0.0
        %4137 = vmatpush1.msra.mxu0 0.0
        %4138 = vmatprep.subr.mxu0 0.0
        %4139 = vmatpush1.msra.mxu0 0.0
        %4140 = vmatprep.subr.mxu0 0.0
        %4141 = vmatpush1.msra.mxu0 0.0
        %4142 = vmatprep.subr.mxu0 0.0
        %4143 = vmatpush1.msra.mxu0 0.0
        %4144 = vmatprep.subr.mxu0 0.0
        %4145 = vmatpush1.msra.mxu0 0.0
        %4146 = vmatprep.subr.mxu0 0.0
        %4147 = vmatpush1.msra.mxu0 0.0
        %4148 = vmatprep.subr.mxu0 0.0
        %4149 = vmatpush1.msra.mxu0 0.0
        %4150 = vmatprep.subr.mxu0 0.0
        %4151 = vmatpush1.msra.mxu0 0.0
        %4152 = vmatprep.subr.mxu0 0.0
        %4153 = vmatpush1.msra.mxu0 0.0
        %4154 = vmatprep.subr.mxu0 0.0
        %4155 = vmatpush1.msra.mxu0 0.0
        %4156 = vmatprep.subr.mxu0 0.0
        %4157 = vmatpush1.msra.mxu0 0.0
        %4158 = vmatprep.subr.mxu0 0.0
        %4159 = vmatpush1.msra.mxu0 0.0
        %4160 = vmatprep.subr.mxu0 0.0
        %4161 = vmatpush1.msra.mxu0 0.0
        %4162 = vmatprep.subr.mxu0 0.0
        %4163 = vmatpush1.msra.mxu0 0.0
        %4164 = vmatprep.mubr.f32.mxu0 0.0
        %4165 = vmatmul.mubr.f32.gmra.mrb[0].mxu0 %v2800
        %v4166 = vpop.f32.mrb[0].mxu0
        %v4167 = vadd.f32 0.0, %v4166
        %v4168 = vpop.f32.mrb[0].mxu0
        %4169 = vmatprep.mubr.f32.mxu0 0.0
        %4170 = vmatmul.mubr.f32.gmra.mrb[0].mxu0 %v2802
        %v4171 = vpop.f32.mrb[0].mxu0
        %v4172 = vadd.f32 0.0, %v4171
        %v4173 = vpop.f32.mrb[0].mxu0
        %4174 = vmatprep.mubr.f32.mxu0 0.0
        %4175 = vmatmul.mubr.f32.gmra.mrb[0].mxu0 %v2804
        %v4176 = vpop.f32.mrb[0].mxu0
        %v4177 = vadd.f32 0.0, %v4176
        %v4178 = vpop.f32.mrb[0].mxu0
        %4179 = vmatprep.mubr.f32.mxu0 0.0
        %4180 = vmatmul.mubr.f32.gmra.mrb[0].mxu0 %v2806
        %v4181 = vpop.f32.mrb[0].mxu0
        %v4182 = vadd.f32 0.0, %v4181
        %v4183 = vpop.f32.mrb[0].mxu0
        %4184 = vmatprep.mubr.f32.mxu0 0.0
        %4185 = vmatmul.mubr.f32.gmra.mrb[0].mxu0 %v2808
        %v4186 = vpop.f32.mrb[0].mxu0
        %v4187 = vadd.f32 0.0, %v4186
        %v4188 = vpop.f32.mrb[0].mxu0
        %4189 = vmatprep.mubr.f32.mxu0 0.0
        %4190 = vmatmul.mubr.f32.gmra.mrb[0].mxu0 %v2810
        %v4191 = vpop.f32.mrb[0].mxu0
        %v4192 = vadd.f32 0.0, %v4191
        %v4193 = vpop.f32.mrb[0].mxu0
        %4194 = vmatprep.mubr.f32.mxu0 0.0
        %4195 = vmatmul.mubr.f32.gmra.mrb[0].mxu0 %v2812
        %v4196 = vpop.f32.mrb[0].mxu0
        %v4197 = vadd.f32 0.0, %v4196
        %v4198 = vpop.f32.mrb[0].mxu0
        %4199 = vmatprep.mubr.f32.mxu0 0.0
        %4200 = vmatmul.mubr.f32.gmra.mrb[0].mxu0 %v2814
        %v4201 = vpop.f32.mrb[0].mxu0
        %v4202 = vadd.f32 0.0, %v4201
        %v4203 = vpop.f32.mrb[0].mxu0
        %4204 = vmatprep.mubr.f32.mxu0 0.0
        %4205 = vmatmul.mubr.f32.gmra.mrb[0].mxu0 %v2816
        %v4206 = vpop.f32.mrb[0].mxu0
        %v4207 = vadd.f32 0.0, %v4206
        %v4208 = vpop.f32.mrb[0].mxu0
        %4209 = vmatprep.mubr.f32.mxu0 0.0
        %4210 = vmatmul.mubr.f32.gmra.mrb[0].mxu0 %v2818
        %v4211 = vpop.f32.mrb[0].mxu0
        %v4212 = vadd.f32 0.0, %v4211
        %v4213 = vpop.f32.mrb[0].mxu0
        %4214 = vmatprep.mubr.f32.mxu0 0.0
        %4215 = vmatmul.mubr.f32.gmra.mrb[0].mxu0 %v2820
        %v4216 = vpop.f32.mrb[0].mxu0
        %v4217 = vadd.f32 0.0, %v4216
        %v4218 = vpop.f32.mrb[0].mxu0
        %4219 = vmatprep.mubr.f32.mxu0 0.0
        %4220 = vmatmul.mubr.f32.gmra.mrb[0].mxu0 %v2822
        %v4221 = vpop.f32.mrb[0].mxu0
        %v4222 = vadd.f32 0.0, %v4221
        %v4223 = vpop.f32.mrb[0].mxu0
        %4224 = vmatprep.mubr.f32.mxu0 0.0
        %4225 = vmatmul.mubr.f32.gmra.mrb[0].mxu0 %v3570
        %v4226 = vpop.f32.mrb[0].mxu0
        %v4227 = vadd.f32 0.0, %v4226
        %v4228 = vpop.f32.mrb[0].mxu0
        %4229 = vmatprep.mubr.f32.mxu0 0.0
        %4230 = vmatmul.mubr.f32.gmra.mrb[0].mxu0 %v3572
        %v4231 = vpop.f32.mrb[0].mxu0
        %v4232 = vadd.f32 0.0, %v4231
        %v4233 = vpop.f32.mrb[0].mxu0
        %4234 = vmatprep.mubr.f32.mxu0 0.0
        %4235 = vmatmul.mubr.f32.gmra.mrb[0].mxu0 %v4093
        %v4236 = vpop.f32.mrb[0].mxu0
        %v4237 = vadd.f32 0.0, %v4236
        %v4238 = vpop.f32.mrb[0].mxu0
        %4239 = vmatprep.mubr.f32.mxu0 0.0
        %4240 = vmatmul.mubr.f32.gmra.mrb[0].mxu0 %v4095
        %v4241 = vpop.f32.mrb[0].mxu0
        %v4242 = vadd.f32 0.0, %v4241
        %v4243 = vpop.f32.mrb[0].mxu0
        %4244 = vdwg.mxu0
        %v4245 = vadd.f32 %v4069, %v4167
        %v4246 = vadd.f32 %v4070, %v4172
        %v4247 = vadd.f32 %v4071, %v4177
        %v4248 = vadd.f32 %v4072, %v4182
        %v4249 = vadd.f32 %v4073, %v4187
        %v4250 = vadd.f32 %v4074, %v4192
        %v4251 = vadd.f32 %v4075, %v4197
        %v4252 = vadd.f32 %v4076, %v4202
        %v4253 = vadd.f32 %v4077, %v4207
        %v4254 = vadd.f32 %v4078, %v4212
        %v4255 = vadd.f32 %v4079, %v4217
        %v4256 = vadd.f32 %v4080, %v4222
        %v4257 = vadd.f32 %v4081, %v4227
        %v4258 = vadd.f32 %v4082, %v4232
        %v4259 = vadd.f32 %v4083, %v4237
        %v4260 = vadd.f32 %v4084, %v4242
        %v4261 = vrot.slane %v2722, 2
        %v4262 = vrot.slane %v2723, 2
        %v4263 = vsel %vm1146, %v4261, %v4262
        %v4264 = vrot.slane %v2724, 2
        %v4265 = vsel %vm1146, %v4262, %v4264
        %s4266 = scalar_lea.vmem [#allocation12], 32
        %v4267 = vld [vmem:[%s4266] sm:$0xf]
        %v4268 = vsel %vm526, %v4263, 0
        %v4270 = vsel %vm526, %v4265, 0
        %v4273 = vsel %vm769, %v4267, 0
        %4275 = vmatprep.subr.mxu0 0.0
        %4276 = vmatpush1.msra.mxu0 %v4273
        %4277 = vmatprep.subr.mxu0 0.0
        %4278 = vmatpush1.msra.mxu0 0.0
        %4279 = vmatprep.subr.mxu0 0.0
        %4280 = vmatpush1.msra.mxu0 0.0
        %4281 = vmatprep.subr.mxu0 0.0
        %4282 = vmatpush1.msra.mxu0 0.0
        %4283 = vmatprep.subr.mxu0 0.0
        %4284 = vmatpush1.msra.mxu0 0.0
        %4285 = vmatprep.subr.mxu0 0.0
        %4286 = vmatpush1.msra.mxu0 0.0
        %4287 = vmatprep.subr.mxu0 0.0
        %4288 = vmatpush1.msra.mxu0 0.0
        %4289 = vmatprep.subr.mxu0 0.0
        %4290 = vmatpush1.msra.mxu0 0.0
        %4291 = vmatprep.subr.mxu0 0.0
        %4292 = vmatpush1.msra.mxu0 0.0
        %4293 = vmatprep.subr.mxu0 0.0
        %4294 = vmatpush1.msra.mxu0 0.0
        %4295 = vmatprep.subr.mxu0 0.0
        %4296 = vmatpush1.msra.mxu0 0.0
        %4297 = vmatprep.subr.mxu0 0.0
        %4298 = vmatpush1.msra.mxu0 0.0
        %4299 = vmatprep.subr.mxu0 0.0
        %4300 = vmatpush1.msra.mxu0 0.0
        %4301 = vmatprep.subr.mxu0 0.0
        %4302 = vmatpush1.msra.mxu0 0.0
        %4303 = vmatprep.subr.mxu0 0.0
        %4304 = vmatpush1.msra.mxu0 0.0
        %4305 = vmatprep.subr.mxu0 0.0
        %4306 = vmatpush1.msra.mxu0 0.0
        %4307 = vmatprep.subr.mxu0 0.0
        %4308 = vmatpush1.msra.mxu0 0.0
        %4309 = vmatprep.subr.mxu0 0.0
        %4310 = vmatpush1.msra.mxu0 0.0
        %4311 = vmatprep.subr.mxu0 0.0
        %4312 = vmatpush1.msra.mxu0 0.0
        %4313 = vmatprep.subr.mxu0 0.0
        %4314 = vmatpush1.msra.mxu0 0.0
        %4315 = vmatprep.subr.mxu0 0.0
        %4316 = vmatpush1.msra.mxu0 0.0
        %4317 = vmatprep.subr.mxu0 0.0
        %4318 = vmatpush1.msra.mxu0 0.0
        %4319 = vmatprep.subr.mxu0 0.0
        %4320 = vmatpush1.msra.mxu0 0.0
        %4321 = vmatprep.subr.mxu0 0.0
        %4322 = vmatpush1.msra.mxu0 0.0
        %4323 = vmatprep.subr.mxu0 0.0
        %4324 = vmatpush1.msra.mxu0 0.0
        %4325 = vmatprep.subr.mxu0 0.0
        %4326 = vmatpush1.msra.mxu0 0.0
        %4327 = vmatprep.subr.mxu0 0.0
        %4328 = vmatpush1.msra.mxu0 0.0
        %4329 = vmatprep.subr.mxu0 0.0
        %4330 = vmatpush1.msra.mxu0 0.0
        %4331 = vmatprep.subr.mxu0 0.0
        %4332 = vmatpush1.msra.mxu0 0.0
        %4333 = vmatprep.subr.mxu0 0.0
        %4334 = vmatpush1.msra.mxu0 0.0
        %4335 = vmatprep.subr.mxu0 0.0
        %4336 = vmatpush1.msra.mxu0 0.0
        %4337 = vmatprep.subr.mxu0 0.0
        %4338 = vmatpush1.msra.mxu0 0.0
        %4339 = vmatprep.mubr.f32.mxu0 0.0
        %4340 = vmatmul.mubr.f32.gmra.mrb[0].mxu0 %v3202
        %v4341 = vpop.f32.mrb[0].mxu0
        %v4342 = vadd.f32 0.0, %v4341
        %v4343 = vpop.f32.mrb[0].mxu0
        %4344 = vmatprep.mubr.f32.mxu0 0.0
        %4345 = vmatmul.mubr.f32.gmra.mrb[0].mxu0 %v3204
        %v4346 = vpop.f32.mrb[0].mxu0
        %v4347 = vadd.f32 0.0, %v4346
        %v4348 = vpop.f32.mrb[0].mxu0
        %4349 = vmatprep.mubr.f32.mxu0 0.0
        %4350 = vmatmul.mubr.f32.gmra.mrb[0].mxu0 %v3206
        %v4351 = vpop.f32.mrb[0].mxu0
        %v4352 = vadd.f32 0.0, %v4351
        %v4353 = vpop.f32.mrb[0].mxu0
        %4354 = vmatprep.mubr.f32.mxu0 0.0
        %4355 = vmatmul.mubr.f32.gmra.mrb[0].mxu0 %v3208
        %v4356 = vpop.f32.mrb[0].mxu0
        %v4357 = vadd.f32 0.0, %v4356
        %v4358 = vpop.f32.mrb[0].mxu0
        %4359 = vmatprep.mubr.f32.mxu0 0.0
        %4360 = vmatmul.mubr.f32.gmra.mrb[0].mxu0 %v3210
        %v4361 = vpop.f32.mrb[0].mxu0
        %v4362 = vadd.f32 0.0, %v4361
        %v4363 = vpop.f32.mrb[0].mxu0
        %4364 = vmatprep.mubr.f32.mxu0 0.0
        %4365 = vmatmul.mubr.f32.gmra.mrb[0].mxu0 %v3212
        %v4366 = vpop.f32.mrb[0].mxu0
        %v4367 = vadd.f32 0.0, %v4366
        %v4368 = vpop.f32.mrb[0].mxu0
        %4369 = vmatprep.mubr.f32.mxu0 0.0
        %4370 = vmatmul.mubr.f32.gmra.mrb[0].mxu0 %v3214
        %v4371 = vpop.f32.mrb[0].mxu0
        %v4372 = vadd.f32 0.0, %v4371
        %v4373 = vpop.f32.mrb[0].mxu0
        %4374 = vmatprep.mubr.f32.mxu0 0.0
        %4375 = vmatmul.mubr.f32.gmra.mrb[0].mxu0 %v3216
        %v4376 = vpop.f32.mrb[0].mxu0
        %v4377 = vadd.f32 0.0, %v4376
        %v4378 = vpop.f32.mrb[0].mxu0
        %4379 = vmatprep.mubr.f32.mxu0 0.0
        %4380 = vmatmul.mubr.f32.gmra.mrb[0].mxu0 %v3218
        %v4381 = vpop.f32.mrb[0].mxu0
        %v4382 = vadd.f32 0.0, %v4381
        %v4383 = vpop.f32.mrb[0].mxu0
        %4384 = vmatprep.mubr.f32.mxu0 0.0
        %4385 = vmatmul.mubr.f32.gmra.mrb[0].mxu0 %v3220
        %v4386 = vpop.f32.mrb[0].mxu0
        %v4387 = vadd.f32 0.0, %v4386
        %v4388 = vpop.f32.mrb[0].mxu0
        %4389 = vmatprep.mubr.f32.mxu0 0.0
        %4390 = vmatmul.mubr.f32.gmra.mrb[0].mxu0 %v3222
        %v4391 = vpop.f32.mrb[0].mxu0
        %v4392 = vadd.f32 0.0, %v4391
        %v4393 = vpop.f32.mrb[0].mxu0
        %4394 = vmatprep.mubr.f32.mxu0 0.0
        %4395 = vmatmul.mubr.f32.gmra.mrb[0].mxu0 %v3224
        %v4396 = vpop.f32.mrb[0].mxu0
        %v4397 = vadd.f32 0.0, %v4396
        %v4398 = vpop.f32.mrb[0].mxu0
        %4399 = vmatprep.mubr.f32.mxu0 0.0
        %4400 = vmatmul.mubr.f32.gmra.mrb[0].mxu0 %v3745
        %v4401 = vpop.f32.mrb[0].mxu0
        %v4402 = vadd.f32 0.0, %v4401
        %v4403 = vpop.f32.mrb[0].mxu0
        %4404 = vmatprep.mubr.f32.mxu0 0.0
        %4405 = vmatmul.mubr.f32.gmra.mrb[0].mxu0 %v3747
        %v4406 = vpop.f32.mrb[0].mxu0
        %v4407 = vadd.f32 0.0, %v4406
        %v4408 = vpop.f32.mrb[0].mxu0
        %4409 = vmatprep.mubr.f32.mxu0 0.0
        %4410 = vmatmul.mubr.f32.gmra.mrb[0].mxu0 %v4268
        %v4411 = vpop.f32.mrb[0].mxu0
        %v4412 = vadd.f32 0.0, %v4411
        %v4413 = vpop.f32.mrb[0].mxu0
        %4414 = vmatprep.mubr.f32.mxu0 0.0
        %4415 = vmatmul.mubr.f32.gmra.mrb[0].mxu0 %v4270
        %v4416 = vpop.f32.mrb[0].mxu0
        %v4417 = vadd.f32 0.0, %v4416
        %v4418 = vpop.f32.mrb[0].mxu0
        %4419 = vdwg.mxu0
        %v4420 = vadd.f32 %v4245, %v4342
        %v4421 = vadd.f32 %v4246, %v4347
        %v4422 = vadd.f32 %v4247, %v4352
        %v4423 = vadd.f32 %v4248, %v4357
        %v4424 = vadd.f32 %v4249, %v4362
        %v4425 = vadd.f32 %v4250, %v4367
        %v4426 = vadd.f32 %v4251, %v4372
        %v4427 = vadd.f32 %v4252, %v4377
        %v4428 = vadd.f32 %v4253, %v4382
        %v4429 = vadd.f32 %v4254, %v4387
        %v4430 = vadd.f32 %v4255, %v4392
        %v4431 = vadd.f32 %v4256, %v4397
        %v4432 = vadd.f32 %v4257, %v4402
        %v4433 = vadd.f32 %v4258, %v4407
        %v4434 = vadd.f32 %v4259, %v4412
        %v4435 = vadd.f32 %v4260, %v4417
        %v4436 = vld [vmem:[#allocation14] sm:$0x1]
        %v4438 = vlaneseq
        %v4439 = vshrl.u32 %v4438, 7
        %v4440 = vsub.s32 0, %v4439
        %v4441 = vrot.slane %v4436, %v4440
        %v4443 = vadd.f32 %v4420, %v4441
        %v4444 = vadd.f32 %v4421, %v4441
        %v4445 = vadd.f32 %v4422, %v4441
        %v4446 = vadd.f32 %v4423, %v4441
        %v4447 = vadd.f32 %v4424, %v4441
        %v4448 = vadd.f32 %v4425, %v4441
        %v4449 = vadd.f32 %v4426, %v4441
        %v4450 = vadd.f32 %v4427, %v4441
        %v4451 = vadd.f32 %v4428, %v4441
        %v4452 = vadd.f32 %v4429, %v4441
        %v4453 = vadd.f32 %v4430, %v4441
        %v4454 = vadd.f32 %v4431, %v4441
        %v4455 = vadd.f32 %v4432, %v4441
        %v4456 = vadd.f32 %v4433, %v4441
        %v4457 = vadd.f32 %v4434, %v4441
        %v4458 = vadd.f32 %v4435, %v4441
        %v4459 = vld [vmem:[%s406] sm:$0xff]
        %v4460 = vld [vmem:[%s406 + $0x8] sm:$0xff]
        %v4461 = vld [vmem:[%s406 + $0x10] sm:$0xff]
        %v4462 = vld [vmem:[%s406 + $0x18] sm:$0xff]
        %v4463 = vld [vmem:[%s406 + $0x20] sm:$0xff]
        %v4464 = vld [vmem:[%s406 + $0x28] sm:$0xff]
        %v4465 = vld [vmem:[%s406 + $0x30] sm:$0xff]
        %v4466 = vld [vmem:[%s406 + $0x38] sm:$0xff]
        %v4467 = vld [vmem:[%s406 + $0x40] sm:$0xff]
        %v4468 = vld [vmem:[%s406 + $0x48] sm:$0xff]
        %v4469 = vld [vmem:[%s406 + $0x50] sm:$0xff]
        %v4470 = vld [vmem:[%s406 + $0x58] sm:$0xff]
        %v4471 = vld [vmem:[%s406 + $0x60] sm:$0xff]
        %v4472 = vld [vmem:[%s406 + $0x68] sm:$0xff]
        %v4473 = vld [vmem:[%s406 + $0x70] sm:$0xff]
        %v4474 = vld [vmem:[%s406 + $0x78] sm:$0xff]
        %v4475 = vadd.f32 %v4443, %v4459
        %v4476 = vadd.f32 %v4444, %v4460
        %v4477 = vadd.f32 %v4445, %v4461
        %v4478 = vadd.f32 %v4446, %v4462
        %v4479 = vadd.f32 %v4447, %v4463
        %v4480 = vadd.f32 %v4448, %v4464
        %v4481 = vadd.f32 %v4449, %v4465
        %v4482 = vadd.f32 %v4450, %v4466
        %v4483 = vadd.f32 %v4451, %v4467
        %v4484 = vadd.f32 %v4452, %v4468
        %v4485 = vadd.f32 %v4453, %v4469
        %v4486 = vadd.f32 %v4454, %v4470
        %v4487 = vadd.f32 %v4455, %v4471
        %v4488 = vadd.f32 %v4456, %v4472
        %v4489 = vadd.f32 %v4457, %v4473
        %v4490 = vadd.f32 %v4458, %v4474
        %4491 = vst.msk [vmem:[%s480] sm:$0xff] %vm526, %v4475
        %4492 = vst.msk [vmem:[%s480 + $0x8] sm:$0xff] %vm526, %v4476
        %4493 = vst.msk [vmem:[%s480 + $0x10] sm:$0xff] %vm526, %v4477
        %4494 = vst.msk [vmem:[%s480 + $0x18] sm:$0xff] %vm526, %v4478
        %4495 = vst.msk [vmem:[%s480 + $0x20] sm:$0xff] %vm526, %v4479
        %4496 = vst.msk [vmem:[%s480 + $0x28] sm:$0xff] %vm526, %v4480
        %4497 = vst.msk [vmem:[%s480 + $0x30] sm:$0xff] %vm526, %v4481
        %4498 = vst.msk [vmem:[%s480 + $0x38] sm:$0xff] %vm526, %v4482
        %4499 = vst.msk [vmem:[%s480 + $0x40] sm:$0xff] %vm526, %v4483
        %4500 = vst.msk [vmem:[%s480 + $0x48] sm:$0xff] %vm526, %v4484
        %4501 = vst.msk [vmem:[%s480 + $0x50] sm:$0xff] %vm526, %v4485
        %4502 = vst.msk [vmem:[%s480 + $0x58] sm:$0xff] %vm526, %v4486
        %4503 = vst.msk [vmem:[%s480 + $0x60] sm:$0xff] %vm526, %v4487
        %4504 = vst.msk [vmem:[%s480 + $0x68] sm:$0xff] %vm526, %v4488
        %4505 = vst.msk [vmem:[%s480 + $0x70] sm:$0xff] %vm526, %v4489
        %4506 = vst.msk [vmem:[%s480 + $0x78] sm:$0xff] %vm526, %v4490
        %s4507 = sand.u32 %s235, 1
        %s4508 = scalar_lea.sflag [#allocation5], %s4507
        %s4509 = sand.u32 %s235, 1
        %s4510 = smul.addr %s4509, 128
        %s4511 = scalar_lea.vmem [#allocation15], %s4510
        // Predicated region
        $region93: #{tpu_custom_call.1} parent=47 // pred_check
          %p4512 = pneg %p245
        $region94: #{tpu_custom_call.1} parent=47 // pred_check_branch
          %4514 = sbr.rel (%p4512) target = $region96
        $region95: #{tpu_custom_call.1} parent=47 // pred_region
          %s4515 = smul.u32 8, %s34
          %s4517 = ssub.s32 2048, 2048
          %4518 = vsyncadd %s4508, %s4517
          %s4519 = smul.addr %s4515, 2
          %s4520 = smul.addr %s33, 32
          %s4521 = sadd.s32 %s4519, %s4520
          %s4522 = smul.addr %s4521, 128
          %s4523 = scalar_lea.hbm %s7, %s4522
          %s4524 = sshll.u32 %s4511, 4
          %s4525 = int_to_ptr.vmem [resolvable:$true] %s4524
          %4530 = dma.vmem_to_hbm [thread:$0]  %s4525, 2048, %s4523, %s4508, 128, 128, 8
        $region96: #{tpu_custom_call.1} parent=47 // pred_fallthru
          _
      $region48: #{tpu_custom_call.1} parent=5 // pred_fallthru
        _
      %p4531 = scmp.le.s32.totalorder 2, %s24
      // Predicated region
      $region97: #{tpu_custom_call.1} parent=5 // pred_check
        %p4532 = pneg %p4531
      $region98: #{tpu_custom_call.1} parent=5 // pred_check_branch
        %4534 = sbr.rel (%p4532) target = $region100
      $region99: #{tpu_custom_call.1} parent=5 // pred_region
        %s4535 = ssub.s32 %s24, 2
        // Predicated region
        $region101: #{tpu_custom_call.1} parent=99 // pred_check
          %p4536 = pneg %p251
        $region102: #{tpu_custom_call.1} parent=99 // pred_check_branch
          %4538 = sbr.rel (%p4536) target = $region104
        $region103: #{tpu_custom_call.1} parent=99 // pred_region
          %s4539 = sand.u32 %s236, 1
          %s4540 = scalar_lea.sflag [#allocation5], %s4539
          %s4541 = sand.u32 %s236, 1
          %s4542 = smul.addr %s4541, 128
          %s4543 = scalar_lea.vmem [#allocation15], %s4542
          %4544 = dma.done %s4540, 2048
        $region104: #{tpu_custom_call.1} parent=99 // pred_fallthru
          _
      $region100: #{tpu_custom_call.1} parent=5 // pred_fallthru
        _
    $region6: #{tpu_custom_call.1} parent=1 // loop_footer
      %s28 = sadd.s32 1, %s24
    $region7: #{tpu_custom_call.1} parent=1 // loop_footer_branch
      %23 = sbr.rel target = $region3
    $region8: #{tpu_custom_call.1} parent=1 // loop_exit
      _
    %4545 = vsyncpa [#allocation4], 1
    %s4546 = scalar_lea.sflag [#allocation4], 1
    %4547 = vsyncpa %s4546, 1
    %4548 = vsyncpa [#allocation7], 1
    %s4549 = scalar_lea.sflag [#allocation7], 1
    %4550 = vsyncpa %s4549, 1
    %4551 = vsyncpa [#allocation10], 1
    %4552 = vsyncpa [#allocation13], 1
    %4553 = vsyncpa [#allocation5], 1
    %s4554 = scalar_lea.sflag [#allocation5], 1
    %4555 = vsyncpa %s4554, 1

</llo_original>
